<compile_context>
chip_gen: v7x
topology: tpu7x:2x2x1
jax: 0.10.0
libtpu: 0.0.40
codegen_flags: <defaults>
</compile_context>

<pallas_src>
import jax
import jax.numpy as jnp
from jax.experimental import pallas as pl
from jax.experimental.pallas import tpu as pltpu

H_PAD = 128    # hidden dim 100 padded to one full lane group
NH_PAD = 128   # fused head width (10 + 2*c_size) padded lane-dense


def _make_q_kernel(nc, c):
    """nc = classify width (10), c = c_size. Closed over as static constants."""
    lo, hi = nc + c, nc + 2 * c  # var column range in the fused head slab

    def q_kernel(x_ref, w1_ref, b1_ref, wh_ref, bh_ref, out_ref):
        # Hot path: (B, 8192) @ (8192, 128) on the MXU, bf16 operands, f32 acc.
        h = jnp.maximum(
            jnp.dot(x_ref[...].astype(jnp.bfloat16), w1_ref[...],
                    preferred_element_type=jnp.float32) + b1_ref[...],
            0.0)

        # Single fused head matmul: (B, 128) @ (128, 128), f32.
        heads = (jnp.dot(h, wh_ref[...], preferred_element_type=jnp.float32)
                 + bh_ref[...])

        # exp() only on the var columns; other columns pass through unchanged.
        col = jax.lax.broadcasted_iota(jnp.int32, heads.shape, 1)
        is_var = (col >= lo) & (col < hi)
        out_ref[...] = jnp.where(is_var, jnp.exp(heads), heads)

    return q_kernel


def prepare_params(params):
    """Host-side re-layout of the f32 (in,out) params for the kernel:
       - pad hidden 100 -> 128 with zeros,
       - stream W1 as bf16,
       - fuse the three head weights/biases into one (128, 128) / (1, 128)
         lane-dense slab (zero-padded)."""
    w1, b1, wc, bc, wm, bm, wv, bv = params
    h = w1.shape[1]
    hp = H_PAD - h
    nc, c = int(wc.shape[1]), int(wm.shape[1])
    nh = nc + 2 * c
    whp = NH_PAD - nh

    w1p = jnp.pad(w1, ((0, 0), (0, hp))).astype(jnp.bfloat16)
    b1p = jnp.pad(b1, ((0, 0), (0, hp)))
    wh = jnp.pad(jnp.concatenate([wc, wm, wv], axis=1), ((0, hp), (0, whp)))
    bh = jnp.pad(jnp.concatenate([bc, bm, bv], axis=1), ((0, 0), (0, whp)))
    return w1p, b1p, wh, bh, nc, c


def q_forward(x, prepared):
    """x: (B, 8192) float32. Returns (label, mu, var) matching torch semantics."""
    w1p, b1p, wh, bh, nc, c = prepared
    B, K = x.shape

    out = pl.pallas_call(
        _make_q_kernel(nc, c),
        out_shape=jax.ShapeDtypeStruct((B, NH_PAD), jnp.float32),
        grid=(1,),
        in_specs=[
            pl.BlockSpec((B, K), lambda k: (0, 0)),          # x (full)
            pl.BlockSpec((K, H_PAD), lambda k: (0, 0)),      # W1 (bf16, padded)
            pl.BlockSpec((1, H_PAD), lambda k: (0, 0)),      # b1 (padded)
            pl.BlockSpec((H_PAD, NH_PAD), lambda k: (0, 0)), # fused head W
            pl.BlockSpec((1, NH_PAD), lambda k: (0, 0)),     # fused head b
        ],
        out_specs=pl.BlockSpec((B, NH_PAD), lambda k: (0, 0)),
        compiler_params=pltpu.CompilerParams(
            dimension_semantics=("arbitrary",)),
    )(x, w1p, b1p, wh, bh)

    label = out[:, :nc]
    # PyTorch `.squeeze()` on mu / var (squeezes all unit dims).
    mu = jnp.squeeze(out[:, nc:nc + c])
    var = jnp.squeeze(out[:, nc + c:nc + 2 * c])
    return label, mu, var


def init_params(key, c_size):
    """Deterministic synthetic params matching the shapes in Q.__init__.
    Weights stored as (in, out) = transpose of torch's (out, in)."""
    ks = jax.random.split(key, 8)

    def lin(kw, kb, fan_in, fan_out):
        bound = 1.0 / jnp.sqrt(fan_in)
        w = jax.random.uniform(kw, (fan_in, fan_out), jnp.float32, -bound, bound)
        b = jax.random.uniform(kb, (1, fan_out), jnp.float32, -bound, bound)
        return w, b

    w1, b1 = lin(ks[0], ks[1], 8192, 100)
    wc, bc = lin(ks[2], ks[3], 100, 10)
    wm, bm = lin(ks[4], ks[5], 100, c_size)
    wv, bv = lin(ks[6], ks[7], 100, c_size)
    return (w1, b1, wc, bc, wm, bm, wv, bv)


def q_reference(x, params, *, quantize_w1=False):
    """Pure-JAX reference. With quantize_w1=True it applies the same bf16
    quantization of x / W1 that the kernel uses (f32 math otherwise)."""
    w1, b1, wc, bc, wm, bm, wv, bv = params
    if quantize_w1:
        x = x.astype(jnp.bfloat16).astype(jnp.float32)
        w1 = w1.astype(jnp.bfloat16).astype(jnp.float32)
    h = jnp.maximum(x @ w1 + b1, 0.0)
    label = h @ wc + bc
    mu = jnp.squeeze(h @ wm + bm)
    var = jnp.squeeze(jnp.exp(h @ wv + bv))
    return label, mu, var


if __name__ == "__main__":
    key = jax.random.PRNGKey(0)
    kx, kp = jax.random.split(key)

    B, F, C_SIZE = 2, 8192, 4
    x = jax.random.normal(kx, (B, F), jnp.float32)
    params = init_params(kp, C_SIZE)
    prepared = prepare_params(params)

    label, mu, var = q_forward(x, prepared)
    jax.block_until_ready((label, mu, var))

    # Strict check vs. a reference using the same bf16 weight quantization.
    rl, rm, rv = q_reference(x, params, quantize_w1=True)
    assert jnp.allclose(label, rl, atol=1e-3, rtol=1e-3)
    assert jnp.allclose(mu, rm, atol=1e-3, rtol=1e-3)
    assert jnp.allclose(var, rv, atol=1e-3, rtol=1e-3)

    # Loose sanity check vs. the exact f32 PyTorch-equivalent reference
    # (bounds the bf16-W1 quantization error over the 8192-long reduction).
    fl, fm, fv = q_reference(x, params, quantize_w1=False)
    assert jnp.allclose(label, fl, atol=2e-2, rtol=2e-2)
    assert jnp.allclose(mu, fm, atol=2e-2, rtol=2e-2)
    assert jnp.allclose(var, fv, atol=2e-2, rtol=2e-2)

    assert label.shape == (B, 10) and mu.shape == (B, C_SIZE) and var.shape == (B, C_SIZE)

    print("KERNEL_OK")
</pallas_src>

<mosaic_0001>
module attributes {stable_mosaic.version = 11 : i64} {
  func.func @q_kernel(%arg0: i32, %arg1: memref<2x8192xf32, #tpu.memory_space<vmem>>, %arg2: memref<8192x128xbf16, #tpu.memory_space<vmem>>, %arg3: memref<1x128xf32, #tpu.memory_space<vmem>>, %arg4: memref<128x128xf32, #tpu.memory_space<vmem>>, %arg5: memref<1x128xf32, #tpu.memory_space<vmem>>, %arg6: memref<2x128xf32, #tpu.memory_space<vmem>>) attributes {dimension_semantics = [#tpu.dimension_semantics<arbitrary>], iteration_bounds = array<i64: 1>, scalar_prefetch = 0 : i64, scratch_operands = 0 : i64, tpu.core_type = #tpu.core_type<tc>, window_params = [{pipeline_mode = #tpu.pipeline_mode<synchronous>, transform_indices = @transform_0, window_bounds = array<i64: 2, 8192>}, {pipeline_mode = #tpu.pipeline_mode<synchronous>, transform_indices = @transform_1, window_bounds = array<i64: 8192, 128>}, {pipeline_mode = #tpu.pipeline_mode<synchronous>, transform_indices = @transform_2, window_bounds = array<i64: 1, 128>}, {pipeline_mode = #tpu.pipeline_mode<synchronous>, transform_indices = @transform_3, window_bounds = array<i64: 128, 128>}, {pipeline_mode = #tpu.pipeline_mode<synchronous>, transform_indices = @transform_4, window_bounds = array<i64: 1, 128>}, {pipeline_mode = #tpu.pipeline_mode<synchronous>, transform_indices = @transform_5, window_bounds = array<i64: 2, 128>}]} {
    %c0 = arith.constant 0 : index
    %c0_0 = arith.constant 0 : index
    %0 = vector.load %arg1[%c0, %c0_0] : memref<2x8192xf32, #tpu.memory_space<vmem>>, vector<2x8192xf32>
    %1 = arith.truncf %0 : vector<2x8192xf32> to vector<2x8192xbf16>
    %c0_1 = arith.constant 0 : index
    %c0_2 = arith.constant 0 : index
    %2 = vector.load %arg2[%c0_1, %c0_2] : memref<8192x128xbf16, #tpu.memory_space<vmem>>, vector<8192x128xbf16>
    %cst = arith.constant dense<0.000000e+00> : vector<2x128xf32>
    %3 = tpu.matmul %1, %2, %cst {dimension_numbers = #tpu.dot_dimension_numbers<[1], [0], [0], [1], [0, 0, 1, 1], [], []>} : vector<2x8192xbf16>, vector<8192x128xbf16>, vector<2x128xf32> -> vector<2x128xf32>
    %c0_3 = arith.constant 0 : index
    %c0_4 = arith.constant 0 : index
    %4 = vector.load %arg3[%c0_3, %c0_4] : memref<1x128xf32, #tpu.memory_space<vmem>>, vector<1x128xf32>
    %5 = vector.broadcast %4 : vector<1x128xf32> to vector<2x128xf32>
    %6 = arith.addf %3, %5 : vector<2x128xf32>
    %cst_5 = arith.constant 0.000000e+00 : f32
    %7 = vector.broadcast %cst_5 : f32 to vector<2x128xf32>
    %8 = arith.maximumf %6, %7 : vector<2x128xf32>
    %c0_6 = arith.constant 0 : index
    %c0_7 = arith.constant 0 : index
    %9 = vector.load %arg4[%c0_6, %c0_7] : memref<128x128xf32, #tpu.memory_space<vmem>>, vector<128x128xf32>
    %cst_8 = arith.constant dense<0.000000e+00> : vector<2x128xf32>
    %10 = tpu.matmul %8, %9, %cst_8 {dimension_numbers = #tpu.dot_dimension_numbers<[1], [0], [0], [1], [0, 0, 1, 1], [], []>} : vector<2x128xf32>, vector<128x128xf32>, vector<2x128xf32> -> vector<2x128xf32>
    %c0_9 = arith.constant 0 : index
    %c0_10 = arith.constant 0 : index
    %11 = vector.load %arg5[%c0_9, %c0_10] : memref<1x128xf32, #tpu.memory_space<vmem>>, vector<1x128xf32>
    %12 = vector.broadcast %11 : vector<1x128xf32> to vector<2x128xf32>
    %13 = arith.addf %10, %12 : vector<2x128xf32>
    %14 = tpu.iota {dimensions = array<i32: 1>} : vector<2x128xi32>
    %c14_i32 = arith.constant 14 : i32
    %15 = vector.broadcast %c14_i32 : i32 to vector<2x128xi32>
    %16 = arith.cmpi sge, %14, %15 : vector<2x128xi32>
    %c18_i32 = arith.constant 18 : i32
    %17 = vector.broadcast %c18_i32 : i32 to vector<2x128xi32>
    %18 = arith.cmpi slt, %14, %17 : vector<2x128xi32>
    %19 = arith.andi %16, %18 : vector<2x128xi1>
    %20 = math.exp %13 : vector<2x128xf32>
    %21 = arith.select %19, %20, %13 : vector<2x128xi1>, vector<2x128xf32>
    %c0_11 = arith.constant 0 : index
    %c0_12 = arith.constant 0 : index
    %22 = vector.load %arg6[%c0_11, %c0_12] : memref<2x128xf32, #tpu.memory_space<vmem>>, vector<2x128xf32>
    tpu.vector_store %arg6[%c0_11, %c0_12], %21 {strides = array<i32>} : memref<2x128xf32, #tpu.memory_space<vmem>>, vector<2x128xf32>,
    return
  }
  func.func @transform_0(%arg0: i32) -> (i32, i32) {
    %c0_i32 = arith.constant 0 : i32
    %c0_i32_0 = arith.constant 0 : i32
    %c0_i32_1 = arith.constant 0 : i32
    return %c0_i32, %c0_i32_0 : i32, i32
  }
  func.func @transform_1(%arg0: i32) -> (i32, i32) {
    %c0_i32 = arith.constant 0 : i32
    %c0_i32_0 = arith.constant 0 : i32
    %c0_i32_1 = arith.constant 0 : i32
    return %c0_i32, %c0_i32_0 : i32, i32
  }
  func.func @transform_2(%arg0: i32) -> (i32, i32) {
    %c0_i32 = arith.constant 0 : i32
    %c0_i32_0 = arith.constant 0 : i32
    %c0_i32_1 = arith.constant 0 : i32
    return %c0_i32, %c0_i32_0 : i32, i32
  }
  func.func @transform_3(%arg0: i32) -> (i32, i32) {
    %c0_i32 = arith.constant 0 : i32
    %c0_i32_0 = arith.constant 0 : i32
    %c0_i32_1 = arith.constant 0 : i32
    return %c0_i32, %c0_i32_0 : i32, i32
  }
  func.func @transform_4(%arg0: i32) -> (i32, i32) {
    %c0_i32 = arith.constant 0 : i32
    %c0_i32_0 = arith.constant 0 : i32
    %c0_i32_1 = arith.constant 0 : i32
    return %c0_i32, %c0_i32_0 : i32, i32
  }
  func.func @transform_5(%arg0: i32) -> (i32, i32) {
    %c0_i32 = arith.constant 0 : i32
    %c0_i32_0 = arith.constant 0 : i32
    %c0_i32_1 = arith.constant 0 : i32
    return %c0_i32, %c0_i32_0 : i32, i32
  }
}

</mosaic_0001>

<llo_original>
// kernel: tpu_custom_call.1
$region0: #{tpu_custom_call.1}
  #allocation0 [shape = 'u32[]', space=smem, size = 0x4, offset = 0x4, fixed_abs, tag = 'smem constant byte address 0x4 - core index']
  #allocation1 [shape = 'u32[144,128]{1,0:T(1,128)}', space=vmem, size = 0x12000, scoped, tag = 'internal scratch']
  %s0 = inlined_call_operand.hbm [shape: f32[2,8192], index: 0, kind: input, shape index: {}]
  %s1 = inlined_call_operand.hbm [shape: bf16[8192,128], index: 1, kind: input, shape index: {}]
  %s2 = inlined_call_operand.hbm [shape: f32[1,128], index: 2, kind: input, shape index: {}]
  %s3 = inlined_call_operand.hbm [shape: f32[128,128], index: 3, kind: input, shape index: {}]
  %s4 = inlined_call_operand.hbm [shape: f32[1,128], index: 4, kind: input, shape index: {}]
  %s5 = inlined_call_operand.hbm [shape: f32[2,128], index: 5, kind: output, shape index: {}]
  %s6 = sld [smem:[#allocation0]]
  $region50: #{tpu_custom_call.1} parent=0
    _
  %s8 = ssub.s32 1, %s6
  %s9 = scalar_select 0, %s8, %s6
  $region1: #{tpu_custom_call.1} parent=0
    #allocation2 [shape = 'u8[65536]{0}', space=vmem, size = 0x10000, scoped, tag = 'input window, operand 0, single buffered']
    #allocation3 [shape = 's32[1]{0}', space=sflag, size = 0x4, scoped, tag = 'scoped memory for tpu_custom_call.1']
    #allocation4 [shape = 's32[1]{0}', space=sflag, size = 0x4, scoped, tag = 'scoped memory for tpu_custom_call.1']
    #allocation5 [shape = 'u8[2097152]{0}', space=vmem, size = 0x200000, scoped, tag = 'input window, operand 1, single buffered']
    #allocation6 [shape = 's32[1]{0}', space=sflag, size = 0x4, scoped, tag = 'scoped memory for tpu_custom_call.1']
    #allocation7 [shape = 'u8[512]{0}', space=vmem, size = 0x400, scoped, tag = 'input window, operand 2, single buffered']
    #allocation8 [shape = 'u8[65536]{0}', space=vmem, size = 0x10000, scoped, tag = 'input window, operand 3, single buffered']
    #allocation9 [shape = 's32[1]{0}', space=sflag, size = 0x4, scoped, tag = 'scoped memory for tpu_custom_call.1']
    #allocation10 [shape = 'u8[512]{0}', space=vmem, size = 0x400, scoped, tag = 'input window, operand 4, single buffered']
    #allocation11 [shape = 'u8[1024]{0}', space=vmem, size = 0x400, scoped, tag = 'output window, operand 0, single buffered']
    %10 = vsyncpa [#allocation3], 0
    %11 = vsyncpa [#allocation6], 0
    %12 = vsyncpa [#allocation9], 0
    %13 = vsyncpa [#allocation4], 0
    // Predicated region
    $region2: #{tpu_custom_call.1} parent=1 // pred_check
      _
    $region3: #{tpu_custom_call.1} parent=1 // pred_check_branch
      %15 = sbr.rel (0) target = $region5
    $region4: #{tpu_custom_call.1} parent=1 // pred_region
      %s17 = ssub.s32 2048, 2048
      %18 = vsyncadd [#allocation3], %s17
      %s20 = sshll.u32 [#allocation2], 4
      %s21 = int_to_ptr.vmem [resolvable:$true] %s20
      %23 = dma.hbm_to_vmem [thread:$0]  %s0, 2048, %s21, [#allocation3]
    $region5: #{tpu_custom_call.1} parent=1 // pred_fallthru
      _
    // Predicated region
    $region6: #{tpu_custom_call.1} parent=1 // pred_check
      _
    $region7: #{tpu_custom_call.1} parent=1 // pred_check_branch
      %25 = sbr.rel (0) target = $region9
    $region8: #{tpu_custom_call.1} parent=1 // pred_region
      %s27 = ssub.s32 65536, 65536
      %28 = vsyncadd [#allocation6], %s27
      %s29 = sshll.u32 [#allocation5], 4
      %s30 = int_to_ptr.vmem [resolvable:$true] %s29
      %35 = dma.hbm_to_vmem [thread:$0]  %s1, 65536, %s30, [#allocation6], 64, 64, 4
    $region9: #{tpu_custom_call.1} parent=1 // pred_fallthru
      _
    // Predicated region
    $region10: #{tpu_custom_call.1} parent=1 // pred_check
      _
    $region11: #{tpu_custom_call.1} parent=1 // pred_check_branch
      %37 = sbr.rel (0) target = $region13
    $region12: #{tpu_custom_call.1} parent=1 // pred_region
      %s39 = ssub.s32 16, 16
      %40 = vsyncadd [#allocation6], %s39
      %s42 = sshll.u32 [#allocation7], 4
      %s43 = int_to_ptr.vmem [resolvable:$true] %s42
      %45 = dma.hbm_to_vmem [thread:$0]  %s2, 16, %s43, [#allocation6]
    $region13: #{tpu_custom_call.1} parent=1 // pred_fallthru
      _
    // Predicated region
    $region14: #{tpu_custom_call.1} parent=1 // pred_check
      _
    $region15: #{tpu_custom_call.1} parent=1 // pred_check_branch
      %47 = sbr.rel (0) target = $region17
    $region16: #{tpu_custom_call.1} parent=1 // pred_region
      %s49 = ssub.s32 2048, 2048
      %50 = vsyncadd [#allocation9], %s49
      %s51 = sshll.u32 [#allocation8], 4
      %s52 = int_to_ptr.vmem [resolvable:$true] %s51
      %57 = dma.hbm_to_vmem [thread:$0]  %s3, 2048, %s52, [#allocation9], 128, 128, 8
    $region17: #{tpu_custom_call.1} parent=1 // pred_fallthru
      _
    // Predicated region
    $region18: #{tpu_custom_call.1} parent=1 // pred_check
      _
    $region19: #{tpu_custom_call.1} parent=1 // pred_check_branch
      %59 = sbr.rel (0) target = $region21
    $region20: #{tpu_custom_call.1} parent=1 // pred_region
      %s61 = ssub.s32 16, 16
      %62 = vsyncadd [#allocation9], %s61
      %s64 = sshll.u32 [#allocation10], 4
      %s65 = int_to_ptr.vmem [resolvable:$true] %s64
      %67 = dma.hbm_to_vmem [thread:$0]  %s4, 16, %s65, [#allocation9]
    $region21: #{tpu_custom_call.1} parent=1 // pred_fallthru
      _
    // Predicated region
    $region22: #{tpu_custom_call.1} parent=1 // pred_check
      _
    $region23: #{tpu_custom_call.1} parent=1 // pred_check_branch
      %69 = sbr.rel (0) target = $region25
    $region24: #{tpu_custom_call.1} parent=1 // pred_region
      %70 = dma.done [#allocation3], 2048
    $region25: #{tpu_custom_call.1} parent=1 // pred_fallthru
      _
    // Predicated region
    $region26: #{tpu_custom_call.1} parent=1 // pred_check
      _
    $region27: #{tpu_custom_call.1} parent=1 // pred_check_branch
      %72 = sbr.rel (0) target = $region29
    $region28: #{tpu_custom_call.1} parent=1 // pred_region
      %73 = dma.done [#allocation6], 65536
    $region29: #{tpu_custom_call.1} parent=1 // pred_fallthru
      _
    // Predicated region
    $region30: #{tpu_custom_call.1} parent=1 // pred_check
      _
    $region31: #{tpu_custom_call.1} parent=1 // pred_check_branch
      %75 = sbr.rel (0) target = $region33
    $region32: #{tpu_custom_call.1} parent=1 // pred_region
      %76 = dma.done [#allocation6], 16
    $region33: #{tpu_custom_call.1} parent=1 // pred_fallthru
      _
    // Predicated region
    $region34: #{tpu_custom_call.1} parent=1 // pred_check
      _
    $region35: #{tpu_custom_call.1} parent=1 // pred_check_branch
      %78 = sbr.rel (0) target = $region37
    $region36: #{tpu_custom_call.1} parent=1 // pred_region
      %79 = dma.done [#allocation9], 2048
    $region37: #{tpu_custom_call.1} parent=1 // pred_fallthru
      _
    // Predicated region
    $region38: #{tpu_custom_call.1} parent=1 // pred_check
      _
    $region39: #{tpu_custom_call.1} parent=1 // pred_check_branch
      %81 = sbr.rel (0) target = $region41
    $region40: #{tpu_custom_call.1} parent=1 // pred_region
      %82 = dma.done [#allocation9], 16
    $region41: #{tpu_custom_call.1} parent=1 // pred_fallthru
      _
    %v84 = vld [vmem:[#allocation2] sm:$0xff]
    %v85 = vld [vmem:[#allocation2 + $0x8] sm:$0xff]
    %v86 = vld [vmem:[#allocation2 + $0x10] sm:$0xff]
    %v87 = vld [vmem:[#allocation2 + $0x18] sm:$0xff]
    %v88 = vld [vmem:[#allocation2 + $0x20] sm:$0xff]
    %v89 = vld [vmem:[#allocation2 + $0x28] sm:$0xff]
    %v90 = vld [vmem:[#allocation2 + $0x30] sm:$0xff]
    %v91 = vld [vmem:[#allocation2 + $0x38] sm:$0xff]
    %v92 = vld [vmem:[#allocation2 + $0x40] sm:$0xff]
    %v93 = vld [vmem:[#allocation2 + $0x48] sm:$0xff]
    %v94 = vld [vmem:[#allocation2 + $0x50] sm:$0xff]
    %v95 = vld [vmem:[#allocation2 + $0x58] sm:$0xff]
    %v96 = vld [vmem:[#allocation2 + $0x60] sm:$0xff]
    %v97 = vld [vmem:[#allocation2 + $0x68] sm:$0xff]
    %v98 = vld [vmem:[#allocation2 + $0x70] sm:$0xff]
    %v99 = vld [vmem:[#allocation2 + $0x78] sm:$0xff]
    %v116 = vcombine.high %v84, %v84
    %v118 = vunpack.c.l.s4 1983009808
    %v119 = vunpack.c.0.s8 %v118
    %v120 = vlaneseq
    %v121 = vshrl.u32 %v120, 7
    %v122 = vsub.s32 %v119, %v121
    %v123 = vrot.slane %v84, %v122
    %v125 = vunpack.c.l.s4 1983009808
    %v126 = vunpack.c.0.s8 %v125
    %v127 = vlaneseq
    %v128 = vshrl.u32 %v127, 7
    %v129 = vsub.s32 %v126, %v128
    %v130 = vrot.slane %v116, %v129
    %v131 = vcombine.high %v123, %v123
    %v132 = vcombine.high %v130, %v130
    %v133 = vcombine.high %v85, %v85
    %v135 = vunpack.c.l.s4 1983009808
    %v136 = vunpack.c.0.s8 %v135
    %v137 = vlaneseq
    %v138 = vshrl.u32 %v137, 7
    %v139 = vsub.s32 %v136, %v138
    %v140 = vrot.slane %v85, %v139
    %v142 = vunpack.c.l.s4 1983009808
    %v143 = vunpack.c.0.s8 %v142
    %v144 = vlaneseq
    %v145 = vshrl.u32 %v144, 7
    %v146 = vsub.s32 %v143, %v145
    %v147 = vrot.slane %v133, %v146
    %v148 = vcombine.high %v140, %v140
    %v149 = vcombine.high %v147, %v147
    %v150 = vcombine.high %v86, %v86
    %v152 = vunpack.c.l.s4 1983009808
    %v153 = vunpack.c.0.s8 %v152
    %v154 = vlaneseq
    %v155 = vshrl.u32 %v154, 7
    %v156 = vsub.s32 %v153, %v155
    %v157 = vrot.slane %v86, %v156
    %v159 = vunpack.c.l.s4 1983009808
    %v160 = vunpack.c.0.s8 %v159
    %v161 = vlaneseq
    %v162 = vshrl.u32 %v161, 7
    %v163 = vsub.s32 %v160, %v162
    %v164 = vrot.slane %v150, %v163
    %v165 = vcombine.high %v157, %v157
    %v166 = vcombine.high %v164, %v164
    %v167 = vcombine.high %v87, %v87
    %v169 = vunpack.c.l.s4 1983009808
    %v170 = vunpack.c.0.s8 %v169
    %v171 = vlaneseq
    %v172 = vshrl.u32 %v171, 7
    %v173 = vsub.s32 %v170, %v172
    %v174 = vrot.slane %v87, %v173
    %v176 = vunpack.c.l.s4 1983009808
    %v177 = vunpack.c.0.s8 %v176
    %v178 = vlaneseq
    %v179 = vshrl.u32 %v178, 7
    %v180 = vsub.s32 %v177, %v179
    %v181 = vrot.slane %v167, %v180
    %v182 = vcombine.high %v174, %v174
    %v183 = vcombine.high %v181, %v181
    %v184 = vcombine.high %v88, %v88
    %v186 = vunpack.c.l.s4 1983009808
    %v187 = vunpack.c.0.s8 %v186
    %v188 = vlaneseq
    %v189 = vshrl.u32 %v188, 7
    %v190 = vsub.s32 %v187, %v189
    %v191 = vrot.slane %v88, %v190
    %v193 = vunpack.c.l.s4 1983009808
    %v194 = vunpack.c.0.s8 %v193
    %v195 = vlaneseq
    %v196 = vshrl.u32 %v195, 7
    %v197 = vsub.s32 %v194, %v196
    %v198 = vrot.slane %v184, %v197
    %v199 = vcombine.high %v191, %v191
    %v200 = vcombine.high %v198, %v198
    %v201 = vcombine.high %v89, %v89
    %v203 = vunpack.c.l.s4 1983009808
    %v204 = vunpack.c.0.s8 %v203
    %v205 = vlaneseq
    %v206 = vshrl.u32 %v205, 7
    %v207 = vsub.s32 %v204, %v206
    %v208 = vrot.slane %v89, %v207
    %v210 = vunpack.c.l.s4 1983009808
    %v211 = vunpack.c.0.s8 %v210
    %v212 = vlaneseq
    %v213 = vshrl.u32 %v212, 7
    %v214 = vsub.s32 %v211, %v213
    %v215 = vrot.slane %v201, %v214
    %v216 = vcombine.high %v208, %v208
    %v217 = vcombine.high %v215, %v215
    %v218 = vcombine.high %v90, %v90
    %v220 = vunpack.c.l.s4 1983009808
    %v221 = vunpack.c.0.s8 %v220
    %v222 = vlaneseq
    %v223 = vshrl.u32 %v222, 7
    %v224 = vsub.s32 %v221, %v223
    %v225 = vrot.slane %v90, %v224
    %v227 = vunpack.c.l.s4 1983009808
    %v228 = vunpack.c.0.s8 %v227
    %v229 = vlaneseq
    %v230 = vshrl.u32 %v229, 7
    %v231 = vsub.s32 %v228, %v230
    %v232 = vrot.slane %v218, %v231
    %v233 = vcombine.high %v225, %v225
    %v234 = vcombine.high %v232, %v232
    %v235 = vcombine.high %v91, %v91
    %v237 = vunpack.c.l.s4 1983009808
    %v238 = vunpack.c.0.s8 %v237
    %v239 = vlaneseq
    %v240 = vshrl.u32 %v239, 7
    %v241 = vsub.s32 %v238, %v240
    %v242 = vrot.slane %v91, %v241
    %v244 = vunpack.c.l.s4 1983009808
    %v245 = vunpack.c.0.s8 %v244
    %v246 = vlaneseq
    %v247 = vshrl.u32 %v246, 7
    %v248 = vsub.s32 %v245, %v247
    %v249 = vrot.slane %v235, %v248
    %v250 = vcombine.high %v242, %v242
    %v251 = vcombine.high %v249, %v249
    %v252 = vcombine.high %v92, %v92
    %v254 = vunpack.c.l.s4 1983009808
    %v255 = vunpack.c.0.s8 %v254
    %v256 = vlaneseq
    %v257 = vshrl.u32 %v256, 7
    %v258 = vsub.s32 %v255, %v257
    %v259 = vrot.slane %v92, %v258
    %v261 = vunpack.c.l.s4 1983009808
    %v262 = vunpack.c.0.s8 %v261
    %v263 = vlaneseq
    %v264 = vshrl.u32 %v263, 7
    %v265 = vsub.s32 %v262, %v264
    %v266 = vrot.slane %v252, %v265
    %v267 = vcombine.high %v259, %v259
    %v268 = vcombine.high %v266, %v266
    %v269 = vcombine.high %v93, %v93
    %v271 = vunpack.c.l.s4 1983009808
    %v272 = vunpack.c.0.s8 %v271
    %v273 = vlaneseq
    %v274 = vshrl.u32 %v273, 7
    %v275 = vsub.s32 %v272, %v274
    %v276 = vrot.slane %v93, %v275
    %v278 = vunpack.c.l.s4 1983009808
    %v279 = vunpack.c.0.s8 %v278
    %v280 = vlaneseq
    %v281 = vshrl.u32 %v280, 7
    %v282 = vsub.s32 %v279, %v281
    %v283 = vrot.slane %v269, %v282
    %v284 = vcombine.high %v276, %v276
    %v285 = vcombine.high %v283, %v283
    %v286 = vcombine.high %v94, %v94
    %v288 = vunpack.c.l.s4 1983009808
    %v289 = vunpack.c.0.s8 %v288
    %v290 = vlaneseq
    %v291 = vshrl.u32 %v290, 7
    %v292 = vsub.s32 %v289, %v291
    %v293 = vrot.slane %v94, %v292
    %v295 = vunpack.c.l.s4 1983009808
    %v296 = vunpack.c.0.s8 %v295
    %v297 = vlaneseq
    %v298 = vshrl.u32 %v297, 7
    %v299 = vsub.s32 %v296, %v298
    %v300 = vrot.slane %v286, %v299
    %v301 = vcombine.high %v293, %v293
    %v302 = vcombine.high %v300, %v300
    %v303 = vcombine.high %v95, %v95
    %v305 = vunpack.c.l.s4 1983009808
    %v306 = vunpack.c.0.s8 %v305
    %v307 = vlaneseq
    %v308 = vshrl.u32 %v307, 7
    %v309 = vsub.s32 %v306, %v308
    %v310 = vrot.slane %v95, %v309
    %v312 = vunpack.c.l.s4 1983009808
    %v313 = vunpack.c.0.s8 %v312
    %v314 = vlaneseq
    %v315 = vshrl.u32 %v314, 7
    %v316 = vsub.s32 %v313, %v315
    %v317 = vrot.slane %v303, %v316
    %v318 = vcombine.high %v310, %v310
    %v319 = vcombine.high %v317, %v317
    %v320 = vcombine.high %v96, %v96
    %v322 = vunpack.c.l.s4 1983009808
    %v323 = vunpack.c.0.s8 %v322
    %v324 = vlaneseq
    %v325 = vshrl.u32 %v324, 7
    %v326 = vsub.s32 %v323, %v325
    %v327 = vrot.slane %v96, %v326
    %v329 = vunpack.c.l.s4 1983009808
    %v330 = vunpack.c.0.s8 %v329
    %v331 = vlaneseq
    %v332 = vshrl.u32 %v331, 7
    %v333 = vsub.s32 %v330, %v332
    %v334 = vrot.slane %v320, %v333
    %v335 = vcombine.high %v327, %v327
    %v336 = vcombine.high %v334, %v334
    %v337 = vcombine.high %v97, %v97
    %v339 = vunpack.c.l.s4 1983009808
    %v340 = vunpack.c.0.s8 %v339
    %v341 = vlaneseq
    %v342 = vshrl.u32 %v341, 7
    %v343 = vsub.s32 %v340, %v342
    %v344 = vrot.slane %v97, %v343
    %v346 = vunpack.c.l.s4 1983009808
    %v347 = vunpack.c.0.s8 %v346
    %v348 = vlaneseq
    %v349 = vshrl.u32 %v348, 7
    %v350 = vsub.s32 %v347, %v349
    %v351 = vrot.slane %v337, %v350
    %v352 = vcombine.high %v344, %v344
    %v353 = vcombine.high %v351, %v351
    %v354 = vcombine.high %v98, %v98
    %v356 = vunpack.c.l.s4 1983009808
    %v357 = vunpack.c.0.s8 %v356
    %v358 = vlaneseq
    %v359 = vshrl.u32 %v358, 7
    %v360 = vsub.s32 %v357, %v359
    %v361 = vrot.slane %v98, %v360
    %v363 = vunpack.c.l.s4 1983009808
    %v364 = vunpack.c.0.s8 %v363
    %v365 = vlaneseq
    %v366 = vshrl.u32 %v365, 7
    %v367 = vsub.s32 %v364, %v366
    %v368 = vrot.slane %v354, %v367
    %v369 = vcombine.high %v361, %v361
    %v370 = vcombine.high %v368, %v368
    %v371 = vcombine.high %v99, %v99
    %v373 = vunpack.c.l.s4 1983009808
    %v374 = vunpack.c.0.s8 %v373
    %v375 = vlaneseq
    %v376 = vshrl.u32 %v375, 7
    %v377 = vsub.s32 %v374, %v376
    %v378 = vrot.slane %v99, %v377
    %v380 = vunpack.c.l.s4 1983009808
    %v381 = vunpack.c.0.s8 %v380
    %v382 = vlaneseq
    %v383 = vshrl.u32 %v382, 7
    %v384 = vsub.s32 %v381, %v383
    %v385 = vrot.slane %v371, %v384
    %v386 = vcombine.high %v378, %v378
    %v387 = vcombine.high %v385, %v385
    %v452 = vpack.c.bf16 %v123, %v123
    %v453 = vpack.c.bf16 %v131, %v131
    %v454 = vpack.c.bf16 %v130, %v130
    %v455 = vpack.c.bf16 %v132, %v132
    %v456 = vpack.c.bf16 %v140, %v140
    %v457 = vpack.c.bf16 %v148, %v148
    %v458 = vpack.c.bf16 %v147, %v147
    %v459 = vpack.c.bf16 %v149, %v149
    %v460 = vpack.c.bf16 %v157, %v157
    %v461 = vpack.c.bf16 %v165, %v165
    %v462 = vpack.c.bf16 %v164, %v164
    %v463 = vpack.c.bf16 %v166, %v166
    %v464 = vpack.c.bf16 %v174, %v174
    %v465 = vpack.c.bf16 %v182, %v182
    %v466 = vpack.c.bf16 %v181, %v181
    %v467 = vpack.c.bf16 %v183, %v183
    %v468 = vpack.c.bf16 %v191, %v191
    %v469 = vpack.c.bf16 %v199, %v199
    %v470 = vpack.c.bf16 %v198, %v198
    %v471 = vpack.c.bf16 %v200, %v200
    %v472 = vpack.c.bf16 %v208, %v208
    %v473 = vpack.c.bf16 %v216, %v216
    %v474 = vpack.c.bf16 %v215, %v215
    %v475 = vpack.c.bf16 %v217, %v217
    %v476 = vpack.c.bf16 %v225, %v225
    %v477 = vpack.c.bf16 %v233, %v233
    %v478 = vpack.c.bf16 %v232, %v232
    %v479 = vpack.c.bf16 %v234, %v234
    %v480 = vpack.c.bf16 %v242, %v242
    %v481 = vpack.c.bf16 %v250, %v250
    %v482 = vpack.c.bf16 %v249, %v249
    %v483 = vpack.c.bf16 %v251, %v251
    %v484 = vpack.c.bf16 %v259, %v259
    %v485 = vpack.c.bf16 %v267, %v267
    %v486 = vpack.c.bf16 %v266, %v266
    %v487 = vpack.c.bf16 %v268, %v268
    %v488 = vpack.c.bf16 %v276, %v276
    %v489 = vpack.c.bf16 %v284, %v284
    %v490 = vpack.c.bf16 %v283, %v283
    %v491 = vpack.c.bf16 %v285, %v285
    %v492 = vpack.c.bf16 %v293, %v293
    %v493 = vpack.c.bf16 %v301, %v301
    %v494 = vpack.c.bf16 %v300, %v300
    %v495 = vpack.c.bf16 %v302, %v302
    %v496 = vpack.c.bf16 %v310, %v310
    %v497 = vpack.c.bf16 %v318, %v318
    %v498 = vpack.c.bf16 %v317, %v317
    %v499 = vpack.c.bf16 %v319, %v319
    %v500 = vpack.c.bf16 %v327, %v327
    %v501 = vpack.c.bf16 %v335, %v335
    %v502 = vpack.c.bf16 %v334, %v334
    %v503 = vpack.c.bf16 %v336, %v336
    %v504 = vpack.c.bf16 %v344, %v344
    %v505 = vpack.c.bf16 %v352, %v352
    %v506 = vpack.c.bf16 %v351, %v351
    %v507 = vpack.c.bf16 %v353, %v353
    %v508 = vpack.c.bf16 %v361, %v361
    %v509 = vpack.c.bf16 %v369, %v369
    %v510 = vpack.c.bf16 %v368, %v368
    %v511 = vpack.c.bf16 %v370, %v370
    %v512 = vpack.c.bf16 %v378, %v378
    %v513 = vpack.c.bf16 %v386, %v386
    %v514 = vpack.c.bf16 %v385, %v385
    %v515 = vpack.c.bf16 %v387, %v387
    %v516 = vld [vmem:[#allocation5] sm:$0xf]
    %v517 = vld [vmem:[#allocation5 + $0x4] sm:$0xf]
    %v518 = vld [vmem:[#allocation5 + $0x8] sm:$0xf]
    %v519 = vld [vmem:[#allocation5 + $0xc] sm:$0xf]
    %v520 = vld [vmem:[#allocation5 + $0x10] sm:$0xf]
    %v521 = vld [vmem:[#allocation5 + $0x14] sm:$0xf]
    %v522 = vld [vmem:[#allocation5 + $0x18] sm:$0xf]
    %v523 = vld [vmem:[#allocation5 + $0x1c] sm:$0xf]
    %v524 = vld [vmem:[#allocation5 + $0x20] sm:$0xf]
    %v525 = vld [vmem:[#allocation5 + $0x24] sm:$0xf]
    %v526 = vld [vmem:[#allocation5 + $0x28] sm:$0xf]
    %v527 = vld [vmem:[#allocation5 + $0x2c] sm:$0xf]
    %v528 = vld [vmem:[#allocation5 + $0x30] sm:$0xf]
    %v529 = vld [vmem:[#allocation5 + $0x34] sm:$0xf]
    %v530 = vld [vmem:[#allocation5 + $0x38] sm:$0xf]
    %v531 = vld [vmem:[#allocation5 + $0x3c] sm:$0xf]
    %v532 = vld [vmem:[#allocation5 + $0x40] sm:$0xf]
    %v533 = vld [vmem:[#allocation5 + $0x44] sm:$0xf]
    %v534 = vld [vmem:[#allocation5 + $0x48] sm:$0xf]
    %v535 = vld [vmem:[#allocation5 + $0x4c] sm:$0xf]
    %v536 = vld [vmem:[#allocation5 + $0x50] sm:$0xf]
    %v537 = vld [vmem:[#allocation5 + $0x54] sm:$0xf]
    %v538 = vld [vmem:[#allocation5 + $0x58] sm:$0xf]
    %v539 = vld [vmem:[#allocation5 + $0x5c] sm:$0xf]
    %v540 = vld [vmem:[#allocation5 + $0x60] sm:$0xf]
    %v541 = vld [vmem:[#allocation5 + $0x64] sm:$0xf]
    %v542 = vld [vmem:[#allocation5 + $0x68] sm:$0xf]
    %v543 = vld [vmem:[#allocation5 + $0x6c] sm:$0xf]
    %v544 = vld [vmem:[#allocation5 + $0x70] sm:$0xf]
    %v545 = vld [vmem:[#allocation5 + $0x74] sm:$0xf]
    %v546 = vld [vmem:[#allocation5 + $0x78] sm:$0xf]
    %v547 = vld [vmem:[#allocation5 + $0x7c] sm:$0xf]
    %v548 = vld [vmem:[#allocation5 + $0x80] sm:$0xf]
    %v549 = vld [vmem:[#allocation5 + $0x84] sm:$0xf]
    %v550 = vld [vmem:[#allocation5 + $0x88] sm:$0xf]
    %v551 = vld [vmem:[#allocation5 + $0x8c] sm:$0xf]
    %v552 = vld [vmem:[#allocation5 + $0x90] sm:$0xf]
    %v553 = vld [vmem:[#allocation5 + $0x94] sm:$0xf]
    %v554 = vld [vmem:[#allocation5 + $0x98] sm:$0xf]
    %v555 = vld [vmem:[#allocation5 + $0x9c] sm:$0xf]
    %v556 = vld [vmem:[#allocation5 + $0xa0] sm:$0xf]
    %v557 = vld [vmem:[#allocation5 + $0xa4] sm:$0xf]
    %v558 = vld [vmem:[#allocation5 + $0xa8] sm:$0xf]
    %v559 = vld [vmem:[#allocation5 + $0xac] sm:$0xf]
    %v560 = vld [vmem:[#allocation5 + $0xb0] sm:$0xf]
    %v561 = vld [vmem:[#allocation5 + $0xb4] sm:$0xf]
    %v562 = vld [vmem:[#allocation5 + $0xb8] sm:$0xf]
    %v563 = vld [vmem:[#allocation5 + $0xbc] sm:$0xf]
    %v564 = vld [vmem:[#allocation5 + $0xc0] sm:$0xf]
    %v565 = vld [vmem:[#allocation5 + $0xc4] sm:$0xf]
    %v566 = vld [vmem:[#allocation5 + $0xc8] sm:$0xf]
    %v567 = vld [vmem:[#allocation5 + $0xcc] sm:$0xf]
    %v568 = vld [vmem:[#allocation5 + $0xd0] sm:$0xf]
    %v569 = vld [vmem:[#allocation5 + $0xd4] sm:$0xf]
    %v570 = vld [vmem:[#allocation5 + $0xd8] sm:$0xf]
    %v571 = vld [vmem:[#allocation5 + $0xdc] sm:$0xf]
    %v572 = vld [vmem:[#allocation5 + $0xe0] sm:$0xf]
    %v573 = vld [vmem:[#allocation5 + $0xe4] sm:$0xf]
    %v574 = vld [vmem:[#allocation5 + $0xe8] sm:$0xf]
    %v575 = vld [vmem:[#allocation5 + $0xec] sm:$0xf]
    %v576 = vld [vmem:[#allocation5 + $0xf0] sm:$0xf]
    %v577 = vld [vmem:[#allocation5 + $0xf4] sm:$0xf]
    %v578 = vld [vmem:[#allocation5 + $0xf8] sm:$0xf]
    %v579 = vld [vmem:[#allocation5 + $0xfc] sm:$0xf]
    %v580 = vld [vmem:[#allocation5 + $0x100] sm:$0xf]
    %v581 = vld [vmem:[#allocation5 + $0x104] sm:$0xf]
    %v582 = vld [vmem:[#allocation5 + $0x108] sm:$0xf]
    %v583 = vld [vmem:[#allocation5 + $0x10c] sm:$0xf]
    %v584 = vld [vmem:[#allocation5 + $0x110] sm:$0xf]
    %v585 = vld [vmem:[#allocation5 + $0x114] sm:$0xf]
    %v586 = vld [vmem:[#allocation5 + $0x118] sm:$0xf]
    %v587 = vld [vmem:[#allocation5 + $0x11c] sm:$0xf]
    %v588 = vld [vmem:[#allocation5 + $0x120] sm:$0xf]
    %v589 = vld [vmem:[#allocation5 + $0x124] sm:$0xf]
    %v590 = vld [vmem:[#allocation5 + $0x128] sm:$0xf]
    %v591 = vld [vmem:[#allocation5 + $0x12c] sm:$0xf]
    %v592 = vld [vmem:[#allocation5 + $0x130] sm:$0xf]
    %v593 = vld [vmem:[#allocation5 + $0x134] sm:$0xf]
    %v594 = vld [vmem:[#allocation5 + $0x138] sm:$0xf]
    %v595 = vld [vmem:[#allocation5 + $0x13c] sm:$0xf]
    %v596 = vld [vmem:[#allocation5 + $0x140] sm:$0xf]
    %v597 = vld [vmem:[#allocation5 + $0x144] sm:$0xf]
    %v598 = vld [vmem:[#allocation5 + $0x148] sm:$0xf]
    %v599 = vld [vmem:[#allocation5 + $0x14c] sm:$0xf]
    %v600 = vld [vmem:[#allocation5 + $0x150] sm:$0xf]
    %v601 = vld [vmem:[#allocation5 + $0x154] sm:$0xf]
    %v602 = vld [vmem:[#allocation5 + $0x158] sm:$0xf]
    %v603 = vld [vmem:[#allocation5 + $0x15c] sm:$0xf]
    %v604 = vld [vmem:[#allocation5 + $0x160] sm:$0xf]
    %v605 = vld [vmem:[#allocation5 + $0x164] sm:$0xf]
    %v606 = vld [vmem:[#allocation5 + $0x168] sm:$0xf]
    %v607 = vld [vmem:[#allocation5 + $0x16c] sm:$0xf]
    %v608 = vld [vmem:[#allocation5 + $0x170] sm:$0xf]
    %v609 = vld [vmem:[#allocation5 + $0x174] sm:$0xf]
    %v610 = vld [vmem:[#allocation5 + $0x178] sm:$0xf]
    %v611 = vld [vmem:[#allocation5 + $0x17c] sm:$0xf]
    %v612 = vld [vmem:[#allocation5 + $0x180] sm:$0xf]
    %v613 = vld [vmem:[#allocation5 + $0x184] sm:$0xf]
    %v614 = vld [vmem:[#allocation5 + $0x188] sm:$0xf]
    %v615 = vld [vmem:[#allocation5 + $0x18c] sm:$0xf]
    %v616 = vld [vmem:[#allocation5 + $0x190] sm:$0xf]
    %v617 = vld [vmem:[#allocation5 + $0x194] sm:$0xf]
    %v618 = vld [vmem:[#allocation5 + $0x198] sm:$0xf]
    %v619 = vld [vmem:[#allocation5 + $0x19c] sm:$0xf]
    %v620 = vld [vmem:[#allocation5 + $0x1a0] sm:$0xf]
    %v621 = vld [vmem:[#allocation5 + $0x1a4] sm:$0xf]
    %v622 = vld [vmem:[#allocation5 + $0x1a8] sm:$0xf]
    %v623 = vld [vmem:[#allocation5 + $0x1ac] sm:$0xf]
    %v624 = vld [vmem:[#allocation5 + $0x1b0] sm:$0xf]
    %v625 = vld [vmem:[#allocation5 + $0x1b4] sm:$0xf]
    %v626 = vld [vmem:[#allocation5 + $0x1b8] sm:$0xf]
    %v627 = vld [vmem:[#allocation5 + $0x1bc] sm:$0xf]
    %v628 = vld [vmem:[#allocation5 + $0x1c0] sm:$0xf]
    %v629 = vld [vmem:[#allocation5 + $0x1c4] sm:$0xf]
    %v630 = vld [vmem:[#allocation5 + $0x1c8] sm:$0xf]
    %v631 = vld [vmem:[#allocation5 + $0x1cc] sm:$0xf]
    %v632 = vld [vmem:[#allocation5 + $0x1d0] sm:$0xf]
    %v633 = vld [vmem:[#allocation5 + $0x1d4] sm:$0xf]
    %v634 = vld [vmem:[#allocation5 + $0x1d8] sm:$0xf]
    %v635 = vld [vmem:[#allocation5 + $0x1dc] sm:$0xf]
    %v636 = vld [vmem:[#allocation5 + $0x1e0] sm:$0xf]
    %v637 = vld [vmem:[#allocation5 + $0x1e4] sm:$0xf]
    %v638 = vld [vmem:[#allocation5 + $0x1e8] sm:$0xf]
    %v639 = vld [vmem:[#allocation5 + $0x1ec] sm:$0xf]
    %v640 = vld [vmem:[#allocation5 + $0x1f0] sm:$0xf]
    %v641 = vld [vmem:[#allocation5 + $0x1f4] sm:$0xf]
    %v642 = vld [vmem:[#allocation5 + $0x1f8] sm:$0xf]
    %v643 = vld [vmem:[#allocation5 + $0x1fc] sm:$0xf]
    %v644 = vld [vmem:[#allocation5 + $0x200] sm:$0xf]
    %v645 = vld [vmem:[#allocation5 + $0x204] sm:$0xf]
    %v646 = vld [vmem:[#allocation5 + $0x208] sm:$0xf]
    %v647 = vld [vmem:[#allocation5 + $0x20c] sm:$0xf]
    %v648 = vld [vmem:[#allocation5 + $0x210] sm:$0xf]
    %v649 = vld [vmem:[#allocation5 + $0x214] sm:$0xf]
    %v650 = vld [vmem:[#allocation5 + $0x218] sm:$0xf]
    %v651 = vld [vmem:[#allocation5 + $0x21c] sm:$0xf]
    %v652 = vld [vmem:[#allocation5 + $0x220] sm:$0xf]
    %v653 = vld [vmem:[#allocation5 + $0x224] sm:$0xf]
    %v654 = vld [vmem:[#allocation5 + $0x228] sm:$0xf]
    %v655 = vld [vmem:[#allocation5 + $0x22c] sm:$0xf]
    %v656 = vld [vmem:[#allocation5 + $0x230] sm:$0xf]
    %v657 = vld [vmem:[#allocation5 + $0x234] sm:$0xf]
    %v658 = vld [vmem:[#allocation5 + $0x238] sm:$0xf]
    %v659 = vld [vmem:[#allocation5 + $0x23c] sm:$0xf]
    %v660 = vld [vmem:[#allocation5 + $0x240] sm:$0xf]
    %v661 = vld [vmem:[#allocation5 + $0x244] sm:$0xf]
    %v662 = vld [vmem:[#allocation5 + $0x248] sm:$0xf]
    %v663 = vld [vmem:[#allocation5 + $0x24c] sm:$0xf]
    %v664 = vld [vmem:[#allocation5 + $0x250] sm:$0xf]
    %v665 = vld [vmem:[#allocation5 + $0x254] sm:$0xf]
    %v666 = vld [vmem:[#allocation5 + $0x258] sm:$0xf]
    %v667 = vld [vmem:[#allocation5 + $0x25c] sm:$0xf]
    %v668 = vld [vmem:[#allocation5 + $0x260] sm:$0xf]
    %v669 = vld [vmem:[#allocation5 + $0x264] sm:$0xf]
    %v670 = vld [vmem:[#allocation5 + $0x268] sm:$0xf]
    %v671 = vld [vmem:[#allocation5 + $0x26c] sm:$0xf]
    %v672 = vld [vmem:[#allocation5 + $0x270] sm:$0xf]
    %v673 = vld [vmem:[#allocation5 + $0x274] sm:$0xf]
    %v674 = vld [vmem:[#allocation5 + $0x278] sm:$0xf]
    %v675 = vld [vmem:[#allocation5 + $0x27c] sm:$0xf]
    %v676 = vld [vmem:[#allocation5 + $0x280] sm:$0xf]
    %v677 = vld [vmem:[#allocation5 + $0x284] sm:$0xf]
    %v678 = vld [vmem:[#allocation5 + $0x288] sm:$0xf]
    %v679 = vld [vmem:[#allocation5 + $0x28c] sm:$0xf]
    %v680 = vld [vmem:[#allocation5 + $0x290] sm:$0xf]
    %v681 = vld [vmem:[#allocation5 + $0x294] sm:$0xf]
    %v682 = vld [vmem:[#allocation5 + $0x298] sm:$0xf]
    %v683 = vld [vmem:[#allocation5 + $0x29c] sm:$0xf]
    %v684 = vld [vmem:[#allocation5 + $0x2a0] sm:$0xf]
    %v685 = vld [vmem:[#allocation5 + $0x2a4] sm:$0xf]
    %v686 = vld [vmem:[#allocation5 + $0x2a8] sm:$0xf]
    %v687 = vld [vmem:[#allocation5 + $0x2ac] sm:$0xf]
    %v688 = vld [vmem:[#allocation5 + $0x2b0] sm:$0xf]
    %v689 = vld [vmem:[#allocation5 + $0x2b4] sm:$0xf]
    %v690 = vld [vmem:[#allocation5 + $0x2b8] sm:$0xf]
    %v691 = vld [vmem:[#allocation5 + $0x2bc] sm:$0xf]
    %v692 = vld [vmem:[#allocation5 + $0x2c0] sm:$0xf]
    %v693 = vld [vmem:[#allocation5 + $0x2c4] sm:$0xf]
    %v694 = vld [vmem:[#allocation5 + $0x2c8] sm:$0xf]
    %v695 = vld [vmem:[#allocation5 + $0x2cc] sm:$0xf]
    %v696 = vld [vmem:[#allocation5 + $0x2d0] sm:$0xf]
    %v697 = vld [vmem:[#allocation5 + $0x2d4] sm:$0xf]
    %v698 = vld [vmem:[#allocation5 + $0x2d8] sm:$0xf]
    %v699 = vld [vmem:[#allocation5 + $0x2dc] sm:$0xf]
    %v700 = vld [vmem:[#allocation5 + $0x2e0] sm:$0xf]
    %v701 = vld [vmem:[#allocation5 + $0x2e4] sm:$0xf]
    %v702 = vld [vmem:[#allocation5 + $0x2e8] sm:$0xf]
    %v703 = vld [vmem:[#allocation5 + $0x2ec] sm:$0xf]
    %v704 = vld [vmem:[#allocation5 + $0x2f0] sm:$0xf]
    %v705 = vld [vmem:[#allocation5 + $0x2f4] sm:$0xf]
    %v706 = vld [vmem:[#allocation5 + $0x2f8] sm:$0xf]
    %v707 = vld [vmem:[#allocation5 + $0x2fc] sm:$0xf]
    %v708 = vld [vmem:[#allocation5 + $0x300] sm:$0xf]
    %v709 = vld [vmem:[#allocation5 + $0x304] sm:$0xf]
    %v710 = vld [vmem:[#allocation5 + $0x308] sm:$0xf]
    %v711 = vld [vmem:[#allocation5 + $0x30c] sm:$0xf]
    %v712 = vld [vmem:[#allocation5 + $0x310] sm:$0xf]
    %v713 = vld [vmem:[#allocation5 + $0x314] sm:$0xf]
    %v714 = vld [vmem:[#allocation5 + $0x318] sm:$0xf]
    %v715 = vld [vmem:[#allocation5 + $0x31c] sm:$0xf]
    %v716 = vld [vmem:[#allocation5 + $0x320] sm:$0xf]
    %v717 = vld [vmem:[#allocation5 + $0x324] sm:$0xf]
    %v718 = vld [vmem:[#allocation5 + $0x328] sm:$0xf]
    %v719 = vld [vmem:[#allocation5 + $0x32c] sm:$0xf]
    %v720 = vld [vmem:[#allocation5 + $0x330] sm:$0xf]
    %v721 = vld [vmem:[#allocation5 + $0x334] sm:$0xf]
    %v722 = vld [vmem:[#allocation5 + $0x338] sm:$0xf]
    %v723 = vld [vmem:[#allocation5 + $0x33c] sm:$0xf]
    %v724 = vld [vmem:[#allocation5 + $0x340] sm:$0xf]
    %v725 = vld [vmem:[#allocation5 + $0x344] sm:$0xf]
    %v726 = vld [vmem:[#allocation5 + $0x348] sm:$0xf]
    %v727 = vld [vmem:[#allocation5 + $0x34c] sm:$0xf]
    %v728 = vld [vmem:[#allocation5 + $0x350] sm:$0xf]
    %v729 = vld [vmem:[#allocation5 + $0x354] sm:$0xf]
    %v730 = vld [vmem:[#allocation5 + $0x358] sm:$0xf]
    %v731 = vld [vmem:[#allocation5 + $0x35c] sm:$0xf]
    %v732 = vld [vmem:[#allocation5 + $0x360] sm:$0xf]
    %v733 = vld [vmem:[#allocation5 + $0x364] sm:$0xf]
    %v734 = vld [vmem:[#allocation5 + $0x368] sm:$0xf]
    %v735 = vld [vmem:[#allocation5 + $0x36c] sm:$0xf]
    %v736 = vld [vmem:[#allocation5 + $0x370] sm:$0xf]
    %v737 = vld [vmem:[#allocation5 + $0x374] sm:$0xf]
    %v738 = vld [vmem:[#allocation5 + $0x378] sm:$0xf]
    %v739 = vld [vmem:[#allocation5 + $0x37c] sm:$0xf]
    %v740 = vld [vmem:[#allocation5 + $0x380] sm:$0xf]
    %v741 = vld [vmem:[#allocation5 + $0x384] sm:$0xf]
    %v742 = vld [vmem:[#allocation5 + $0x388] sm:$0xf]
    %v743 = vld [vmem:[#allocation5 + $0x38c] sm:$0xf]
    %v744 = vld [vmem:[#allocation5 + $0x390] sm:$0xf]
    %v745 = vld [vmem:[#allocation5 + $0x394] sm:$0xf]
    %v746 = vld [vmem:[#allocation5 + $0x398] sm:$0xf]
    %v747 = vld [vmem:[#allocation5 + $0x39c] sm:$0xf]
    %v748 = vld [vmem:[#allocation5 + $0x3a0] sm:$0xf]
    %v749 = vld [vmem:[#allocation5 + $0x3a4] sm:$0xf]
    %v750 = vld [vmem:[#allocation5 + $0x3a8] sm:$0xf]
    %v751 = vld [vmem:[#allocation5 + $0x3ac] sm:$0xf]
    %v752 = vld [vmem:[#allocation5 + $0x3b0] sm:$0xf]
    %v753 = vld [vmem:[#allocation5 + $0x3b4] sm:$0xf]
    %v754 = vld [vmem:[#allocation5 + $0x3b8] sm:$0xf]
    %v755 = vld [vmem:[#allocation5 + $0x3bc] sm:$0xf]
    %v756 = vld [vmem:[#allocation5 + $0x3c0] sm:$0xf]
    %v757 = vld [vmem:[#allocation5 + $0x3c4] sm:$0xf]
    %v758 = vld [vmem:[#allocation5 + $0x3c8] sm:$0xf]
    %v759 = vld [vmem:[#allocation5 + $0x3cc] sm:$0xf]
    %v760 = vld [vmem:[#allocation5 + $0x3d0] sm:$0xf]
    %v761 = vld [vmem:[#allocation5 + $0x3d4] sm:$0xf]
    %v762 = vld [vmem:[#allocation5 + $0x3d8] sm:$0xf]
    %v763 = vld [vmem:[#allocation5 + $0x3dc] sm:$0xf]
    %v764 = vld [vmem:[#allocation5 + $0x3e0] sm:$0xf]
    %v765 = vld [vmem:[#allocation5 + $0x3e4] sm:$0xf]
    %v766 = vld [vmem:[#allocation5 + $0x3e8] sm:$0xf]
    %v767 = vld [vmem:[#allocation5 + $0x3ec] sm:$0xf]
    %v768 = vld [vmem:[#allocation5 + $0x3f0] sm:$0xf]
    %v769 = vld [vmem:[#allocation5 + $0x3f4] sm:$0xf]
    %v770 = vld [vmem:[#allocation5 + $0x3f8] sm:$0xf]
    %v771 = vld [vmem:[#allocation5 + $0x3fc] sm:$0xf]
    %v772 = vld [vmem:[#allocation5 + $0x400] sm:$0xf]
    %v773 = vld [vmem:[#allocation5 + $0x404] sm:$0xf]
    %v774 = vld [vmem:[#allocation5 + $0x408] sm:$0xf]
    %v775 = vld [vmem:[#allocation5 + $0x40c] sm:$0xf]
    %v776 = vld [vmem:[#allocation5 + $0x410] sm:$0xf]
    %v777 = vld [vmem:[#allocation5 + $0x414] sm:$0xf]
    %v778 = vld [vmem:[#allocation5 + $0x418] sm:$0xf]
    %v779 = vld [vmem:[#allocation5 + $0x41c] sm:$0xf]
    %v780 = vld [vmem:[#allocation5 + $0x420] sm:$0xf]
    %v781 = vld [vmem:[#allocation5 + $0x424] sm:$0xf]
    %v782 = vld [vmem:[#allocation5 + $0x428] sm:$0xf]
    %v783 = vld [vmem:[#allocation5 + $0x42c] sm:$0xf]
    %v784 = vld [vmem:[#allocation5 + $0x430] sm:$0xf]
    %v785 = vld [vmem:[#allocation5 + $0x434] sm:$0xf]
    %v786 = vld [vmem:[#allocation5 + $0x438] sm:$0xf]
    %v787 = vld [vmem:[#allocation5 + $0x43c] sm:$0xf]
    %v788 = vld [vmem:[#allocation5 + $0x440] sm:$0xf]
    %v789 = vld [vmem:[#allocation5 + $0x444] sm:$0xf]
    %v790 = vld [vmem:[#allocation5 + $0x448] sm:$0xf]
    %v791 = vld [vmem:[#allocation5 + $0x44c] sm:$0xf]
    %v792 = vld [vmem:[#allocation5 + $0x450] sm:$0xf]
    %v793 = vld [vmem:[#allocation5 + $0x454] sm:$0xf]
    %v794 = vld [vmem:[#allocation5 + $0x458] sm:$0xf]
    %v795 = vld [vmem:[#allocation5 + $0x45c] sm:$0xf]
    %v796 = vld [vmem:[#allocation5 + $0x460] sm:$0xf]
    %v797 = vld [vmem:[#allocation5 + $0x464] sm:$0xf]
    %v798 = vld [vmem:[#allocation5 + $0x468] sm:$0xf]
    %v799 = vld [vmem:[#allocation5 + $0x46c] sm:$0xf]
    %v800 = vld [vmem:[#allocation5 + $0x470] sm:$0xf]
    %v801 = vld [vmem:[#allocation5 + $0x474] sm:$0xf]
    %v802 = vld [vmem:[#allocation5 + $0x478] sm:$0xf]
    %v803 = vld [vmem:[#allocation5 + $0x47c] sm:$0xf]
    %v804 = vld [vmem:[#allocation5 + $0x480] sm:$0xf]
    %v805 = vld [vmem:[#allocation5 + $0x484] sm:$0xf]
    %v806 = vld [vmem:[#allocation5 + $0x488] sm:$0xf]
    %v807 = vld [vmem:[#allocation5 + $0x48c] sm:$0xf]
    %v808 = vld [vmem:[#allocation5 + $0x490] sm:$0xf]
    %v809 = vld [vmem:[#allocation5 + $0x494] sm:$0xf]
    %v810 = vld [vmem:[#allocation5 + $0x498] sm:$0xf]
    %v811 = vld [vmem:[#allocation5 + $0x49c] sm:$0xf]
    %v812 = vld [vmem:[#allocation5 + $0x4a0] sm:$0xf]
    %v813 = vld [vmem:[#allocation5 + $0x4a4] sm:$0xf]
    %v814 = vld [vmem:[#allocation5 + $0x4a8] sm:$0xf]
    %v815 = vld [vmem:[#allocation5 + $0x4ac] sm:$0xf]
    %v816 = vld [vmem:[#allocation5 + $0x4b0] sm:$0xf]
    %v817 = vld [vmem:[#allocation5 + $0x4b4] sm:$0xf]
    %v818 = vld [vmem:[#allocation5 + $0x4b8] sm:$0xf]
    %v819 = vld [vmem:[#allocation5 + $0x4bc] sm:$0xf]
    %v820 = vld [vmem:[#allocation5 + $0x4c0] sm:$0xf]
    %v821 = vld [vmem:[#allocation5 + $0x4c4] sm:$0xf]
    %v822 = vld [vmem:[#allocation5 + $0x4c8] sm:$0xf]
    %v823 = vld [vmem:[#allocation5 + $0x4cc] sm:$0xf]
    %v824 = vld [vmem:[#allocation5 + $0x4d0] sm:$0xf]
    %v825 = vld [vmem:[#allocation5 + $0x4d4] sm:$0xf]
    %v826 = vld [vmem:[#allocation5 + $0x4d8] sm:$0xf]
    %v827 = vld [vmem:[#allocation5 + $0x4dc] sm:$0xf]
    %v828 = vld [vmem:[#allocation5 + $0x4e0] sm:$0xf]
    %v829 = vld [vmem:[#allocation5 + $0x4e4] sm:$0xf]
    %v830 = vld [vmem:[#allocation5 + $0x4e8] sm:$0xf]
    %v831 = vld [vmem:[#allocation5 + $0x4ec] sm:$0xf]
    %v832 = vld [vmem:[#allocation5 + $0x4f0] sm:$0xf]
    %v833 = vld [vmem:[#allocation5 + $0x4f4] sm:$0xf]
    %v834 = vld [vmem:[#allocation5 + $0x4f8] sm:$0xf]
    %v835 = vld [vmem:[#allocation5 + $0x4fc] sm:$0xf]
    %v836 = vld [vmem:[#allocation5 + $0x500] sm:$0xf]
    %v837 = vld [vmem:[#allocation5 + $0x504] sm:$0xf]
    %v838 = vld [vmem:[#allocation5 + $0x508] sm:$0xf]
    %v839 = vld [vmem:[#allocation5 + $0x50c] sm:$0xf]
    %v840 = vld [vmem:[#allocation5 + $0x510] sm:$0xf]
    %v841 = vld [vmem:[#allocation5 + $0x514] sm:$0xf]
    %v842 = vld [vmem:[#allocation5 + $0x518] sm:$0xf]
    %v843 = vld [vmem:[#allocation5 + $0x51c] sm:$0xf]
    %v844 = vld [vmem:[#allocation5 + $0x520] sm:$0xf]
    %v845 = vld [vmem:[#allocation5 + $0x524] sm:$0xf]
    %v846 = vld [vmem:[#allocation5 + $0x528] sm:$0xf]
    %v847 = vld [vmem:[#allocation5 + $0x52c] sm:$0xf]
    %v848 = vld [vmem:[#allocation5 + $0x530] sm:$0xf]
    %v849 = vld [vmem:[#allocation5 + $0x534] sm:$0xf]
    %v850 = vld [vmem:[#allocation5 + $0x538] sm:$0xf]
    %v851 = vld [vmem:[#allocation5 + $0x53c] sm:$0xf]
    %v852 = vld [vmem:[#allocation5 + $0x540] sm:$0xf]
    %v853 = vld [vmem:[#allocation5 + $0x544] sm:$0xf]
    %v854 = vld [vmem:[#allocation5 + $0x548] sm:$0xf]
    %v855 = vld [vmem:[#allocation5 + $0x54c] sm:$0xf]
    %v856 = vld [vmem:[#allocation5 + $0x550] sm:$0xf]
    %v857 = vld [vmem:[#allocation5 + $0x554] sm:$0xf]
    %v858 = vld [vmem:[#allocation5 + $0x558] sm:$0xf]
    %v859 = vld [vmem:[#allocation5 + $0x55c] sm:$0xf]
    %v860 = vld [vmem:[#allocation5 + $0x560] sm:$0xf]
    %v861 = vld [vmem:[#allocation5 + $0x564] sm:$0xf]
    %v862 = vld [vmem:[#allocation5 + $0x568] sm:$0xf]
    %v863 = vld [vmem:[#allocation5 + $0x56c] sm:$0xf]
    %v864 = vld [vmem:[#allocation5 + $0x570] sm:$0xf]
    %v865 = vld [vmem:[#allocation5 + $0x574] sm:$0xf]
    %v866 = vld [vmem:[#allocation5 + $0x578] sm:$0xf]
    %v867 = vld [vmem:[#allocation5 + $0x57c] sm:$0xf]
    %v868 = vld [vmem:[#allocation5 + $0x580] sm:$0xf]
    %v869 = vld [vmem:[#allocation5 + $0x584] sm:$0xf]
    %v870 = vld [vmem:[#allocation5 + $0x588] sm:$0xf]
    %v871 = vld [vmem:[#allocation5 + $0x58c] sm:$0xf]
    %v872 = vld [vmem:[#allocation5 + $0x590] sm:$0xf]
    %v873 = vld [vmem:[#allocation5 + $0x594] sm:$0xf]
    %v874 = vld [vmem:[#allocation5 + $0x598] sm:$0xf]
    %v875 = vld [vmem:[#allocation5 + $0x59c] sm:$0xf]
    %v876 = vld [vmem:[#allocation5 + $0x5a0] sm:$0xf]
    %v877 = vld [vmem:[#allocation5 + $0x5a4] sm:$0xf]
    %v878 = vld [vmem:[#allocation5 + $0x5a8] sm:$0xf]
    %v879 = vld [vmem:[#allocation5 + $0x5ac] sm:$0xf]
    %v880 = vld [vmem:[#allocation5 + $0x5b0] sm:$0xf]
    %v881 = vld [vmem:[#allocation5 + $0x5b4] sm:$0xf]
    %v882 = vld [vmem:[#allocation5 + $0x5b8] sm:$0xf]
    %v883 = vld [vmem:[#allocation5 + $0x5bc] sm:$0xf]
    %v884 = vld [vmem:[#allocation5 + $0x5c0] sm:$0xf]
    %v885 = vld [vmem:[#allocation5 + $0x5c4] sm:$0xf]
    %v886 = vld [vmem:[#allocation5 + $0x5c8] sm:$0xf]
    %v887 = vld [vmem:[#allocation5 + $0x5cc] sm:$0xf]
    %v888 = vld [vmem:[#allocation5 + $0x5d0] sm:$0xf]
    %v889 = vld [vmem:[#allocation5 + $0x5d4] sm:$0xf]
    %v890 = vld [vmem:[#allocation5 + $0x5d8] sm:$0xf]
    %v891 = vld [vmem:[#allocation5 + $0x5dc] sm:$0xf]
    %v892 = vld [vmem:[#allocation5 + $0x5e0] sm:$0xf]
    %v893 = vld [vmem:[#allocation5 + $0x5e4] sm:$0xf]
    %v894 = vld [vmem:[#allocation5 + $0x5e8] sm:$0xf]
    %v895 = vld [vmem:[#allocation5 + $0x5ec] sm:$0xf]
    %v896 = vld [vmem:[#allocation5 + $0x5f0] sm:$0xf]
    %v897 = vld [vmem:[#allocation5 + $0x5f4] sm:$0xf]
    %v898 = vld [vmem:[#allocation5 + $0x5f8] sm:$0xf]
    %v899 = vld [vmem:[#allocation5 + $0x5fc] sm:$0xf]
    %v900 = vld [vmem:[#allocation5 + $0x600] sm:$0xf]
    %v901 = vld [vmem:[#allocation5 + $0x604] sm:$0xf]
    %v902 = vld [vmem:[#allocation5 + $0x608] sm:$0xf]
    %v903 = vld [vmem:[#allocation5 + $0x60c] sm:$0xf]
    %v904 = vld [vmem:[#allocation5 + $0x610] sm:$0xf]
    %v905 = vld [vmem:[#allocation5 + $0x614] sm:$0xf]
    %v906 = vld [vmem:[#allocation5 + $0x618] sm:$0xf]
    %v907 = vld [vmem:[#allocation5 + $0x61c] sm:$0xf]
    %v908 = vld [vmem:[#allocation5 + $0x620] sm:$0xf]
    %v909 = vld [vmem:[#allocation5 + $0x624] sm:$0xf]
    %v910 = vld [vmem:[#allocation5 + $0x628] sm:$0xf]
    %v911 = vld [vmem:[#allocation5 + $0x62c] sm:$0xf]
    %v912 = vld [vmem:[#allocation5 + $0x630] sm:$0xf]
    %v913 = vld [vmem:[#allocation5 + $0x634] sm:$0xf]
    %v914 = vld [vmem:[#allocation5 + $0x638] sm:$0xf]
    %v915 = vld [vmem:[#allocation5 + $0x63c] sm:$0xf]
    %v916 = vld [vmem:[#allocation5 + $0x640] sm:$0xf]
    %v917 = vld [vmem:[#allocation5 + $0x644] sm:$0xf]
    %v918 = vld [vmem:[#allocation5 + $0x648] sm:$0xf]
    %v919 = vld [vmem:[#allocation5 + $0x64c] sm:$0xf]
    %v920 = vld [vmem:[#allocation5 + $0x650] sm:$0xf]
    %v921 = vld [vmem:[#allocation5 + $0x654] sm:$0xf]
    %v922 = vld [vmem:[#allocation5 + $0x658] sm:$0xf]
    %v923 = vld [vmem:[#allocation5 + $0x65c] sm:$0xf]
    %v924 = vld [vmem:[#allocation5 + $0x660] sm:$0xf]
    %v925 = vld [vmem:[#allocation5 + $0x664] sm:$0xf]
    %v926 = vld [vmem:[#allocation5 + $0x668] sm:$0xf]
    %v927 = vld [vmem:[#allocation5 + $0x66c] sm:$0xf]
    %v928 = vld [vmem:[#allocation5 + $0x670] sm:$0xf]
    %v929 = vld [vmem:[#allocation5 + $0x674] sm:$0xf]
    %v930 = vld [vmem:[#allocation5 + $0x678] sm:$0xf]
    %v931 = vld [vmem:[#allocation5 + $0x67c] sm:$0xf]
    %v932 = vld [vmem:[#allocation5 + $0x680] sm:$0xf]
    %v933 = vld [vmem:[#allocation5 + $0x684] sm:$0xf]
    %v934 = vld [vmem:[#allocation5 + $0x688] sm:$0xf]
    %v935 = vld [vmem:[#allocation5 + $0x68c] sm:$0xf]
    %v936 = vld [vmem:[#allocation5 + $0x690] sm:$0xf]
    %v937 = vld [vmem:[#allocation5 + $0x694] sm:$0xf]
    %v938 = vld [vmem:[#allocation5 + $0x698] sm:$0xf]
    %v939 = vld [vmem:[#allocation5 + $0x69c] sm:$0xf]
    %v940 = vld [vmem:[#allocation5 + $0x6a0] sm:$0xf]
    %v941 = vld [vmem:[#allocation5 + $0x6a4] sm:$0xf]
    %v942 = vld [vmem:[#allocation5 + $0x6a8] sm:$0xf]
    %v943 = vld [vmem:[#allocation5 + $0x6ac] sm:$0xf]
    %v944 = vld [vmem:[#allocation5 + $0x6b0] sm:$0xf]
    %v945 = vld [vmem:[#allocation5 + $0x6b4] sm:$0xf]
    %v946 = vld [vmem:[#allocation5 + $0x6b8] sm:$0xf]
    %v947 = vld [vmem:[#allocation5 + $0x6bc] sm:$0xf]
    %v948 = vld [vmem:[#allocation5 + $0x6c0] sm:$0xf]
    %v949 = vld [vmem:[#allocation5 + $0x6c4] sm:$0xf]
    %v950 = vld [vmem:[#allocation5 + $0x6c8] sm:$0xf]
    %v951 = vld [vmem:[#allocation5 + $0x6cc] sm:$0xf]
    %v952 = vld [vmem:[#allocation5 + $0x6d0] sm:$0xf]
    %v953 = vld [vmem:[#allocation5 + $0x6d4] sm:$0xf]
    %v954 = vld [vmem:[#allocation5 + $0x6d8] sm:$0xf]
    %v955 = vld [vmem:[#allocation5 + $0x6dc] sm:$0xf]
    %v956 = vld [vmem:[#allocation5 + $0x6e0] sm:$0xf]
    %v957 = vld [vmem:[#allocation5 + $0x6e4] sm:$0xf]
    %v958 = vld [vmem:[#allocation5 + $0x6e8] sm:$0xf]
    %v959 = vld [vmem:[#allocation5 + $0x6ec] sm:$0xf]
    %v960 = vld [vmem:[#allocation5 + $0x6f0] sm:$0xf]
    %v961 = vld [vmem:[#allocation5 + $0x6f4] sm:$0xf]
    %v962 = vld [vmem:[#allocation5 + $0x6f8] sm:$0xf]
    %v963 = vld [vmem:[#allocation5 + $0x6fc] sm:$0xf]
    %v964 = vld [vmem:[#allocation5 + $0x700] sm:$0xf]
    %v965 = vld [vmem:[#allocation5 + $0x704] sm:$0xf]
    %v966 = vld [vmem:[#allocation5 + $0x708] sm:$0xf]
    %v967 = vld [vmem:[#allocation5 + $0x70c] sm:$0xf]
    %v968 = vld [vmem:[#allocation5 + $0x710] sm:$0xf]
    %v969 = vld [vmem:[#allocation5 + $0x714] sm:$0xf]
    %v970 = vld [vmem:[#allocation5 + $0x718] sm:$0xf]
    %v971 = vld [vmem:[#allocation5 + $0x71c] sm:$0xf]
    %v972 = vld [vmem:[#allocation5 + $0x720] sm:$0xf]
    %v973 = vld [vmem:[#allocation5 + $0x724] sm:$0xf]
    %v974 = vld [vmem:[#allocation5 + $0x728] sm:$0xf]
    %v975 = vld [vmem:[#allocation5 + $0x72c] sm:$0xf]
    %v976 = vld [vmem:[#allocation5 + $0x730] sm:$0xf]
    %v977 = vld [vmem:[#allocation5 + $0x734] sm:$0xf]
    %v978 = vld [vmem:[#allocation5 + $0x738] sm:$0xf]
    %v979 = vld [vmem:[#allocation5 + $0x73c] sm:$0xf]
    %v980 = vld [vmem:[#allocation5 + $0x740] sm:$0xf]
    %v981 = vld [vmem:[#allocation5 + $0x744] sm:$0xf]
    %v982 = vld [vmem:[#allocation5 + $0x748] sm:$0xf]
    %v983 = vld [vmem:[#allocation5 + $0x74c] sm:$0xf]
    %v984 = vld [vmem:[#allocation5 + $0x750] sm:$0xf]
    %v985 = vld [vmem:[#allocation5 + $0x754] sm:$0xf]
    %v986 = vld [vmem:[#allocation5 + $0x758] sm:$0xf]
    %v987 = vld [vmem:[#allocation5 + $0x75c] sm:$0xf]
    %v988 = vld [vmem:[#allocation5 + $0x760] sm:$0xf]
    %v989 = vld [vmem:[#allocation5 + $0x764] sm:$0xf]
    %v990 = vld [vmem:[#allocation5 + $0x768] sm:$0xf]
    %v991 = vld [vmem:[#allocation5 + $0x76c] sm:$0xf]
    %v992 = vld [vmem:[#allocation5 + $0x770] sm:$0xf]
    %v993 = vld [vmem:[#allocation5 + $0x774] sm:$0xf]
    %v994 = vld [vmem:[#allocation5 + $0x778] sm:$0xf]
    %v995 = vld [vmem:[#allocation5 + $0x77c] sm:$0xf]
    %v996 = vld [vmem:[#allocation5 + $0x780] sm:$0xf]
    %v997 = vld [vmem:[#allocation5 + $0x784] sm:$0xf]
    %v998 = vld [vmem:[#allocation5 + $0x788] sm:$0xf]
    %v999 = vld [vmem:[#allocation5 + $0x78c] sm:$0xf]
    %v1000 = vld [vmem:[#allocation5 + $0x790] sm:$0xf]
    %v1001 = vld [vmem:[#allocation5 + $0x794] sm:$0xf]
    %v1002 = vld [vmem:[#allocation5 + $0x798] sm:$0xf]
    %v1003 = vld [vmem:[#allocation5 + $0x79c] sm:$0xf]
    %v1004 = vld [vmem:[#allocation5 + $0x7a0] sm:$0xf]
    %v1005 = vld [vmem:[#allocation5 + $0x7a4] sm:$0xf]
    %v1006 = vld [vmem:[#allocation5 + $0x7a8] sm:$0xf]
    %v1007 = vld [vmem:[#allocation5 + $0x7ac] sm:$0xf]
    %v1008 = vld [vmem:[#allocation5 + $0x7b0] sm:$0xf]
    %v1009 = vld [vmem:[#allocation5 + $0x7b4] sm:$0xf]
    %v1010 = vld [vmem:[#allocation5 + $0x7b8] sm:$0xf]
    %v1011 = vld [vmem:[#allocation5 + $0x7bc] sm:$0xf]
    %v1012 = vld [vmem:[#allocation5 + $0x7c0] sm:$0xf]
    %v1013 = vld [vmem:[#allocation5 + $0x7c4] sm:$0xf]
    %v1014 = vld [vmem:[#allocation5 + $0x7c8] sm:$0xf]
    %v1015 = vld [vmem:[#allocation5 + $0x7cc] sm:$0xf]
    %v1016 = vld [vmem:[#allocation5 + $0x7d0] sm:$0xf]
    %v1017 = vld [vmem:[#allocation5 + $0x7d4] sm:$0xf]
    %v1018 = vld [vmem:[#allocation5 + $0x7d8] sm:$0xf]
    %v1019 = vld [vmem:[#allocation5 + $0x7dc] sm:$0xf]
    %v1020 = vld [vmem:[#allocation5 + $0x7e0] sm:$0xf]
    %v1021 = vld [vmem:[#allocation5 + $0x7e4] sm:$0xf]
    %v1022 = vld [vmem:[#allocation5 + $0x7e8] sm:$0xf]
    %v1023 = vld [vmem:[#allocation5 + $0x7ec] sm:$0xf]
    %v1024 = vld [vmem:[#allocation5 + $0x7f0] sm:$0xf]
    %v1025 = vld [vmem:[#allocation5 + $0x7f4] sm:$0xf]
    %v1026 = vld [vmem:[#allocation5 + $0x7f8] sm:$0xf]
    %v1027 = vld [vmem:[#allocation5 + $0x7fc] sm:$0xf]
    %v1028 = vld [vmem:[#allocation5 + $0x800] sm:$0xf]
    %v1029 = vld [vmem:[#allocation5 + $0x804] sm:$0xf]
    %v1030 = vld [vmem:[#allocation5 + $0x808] sm:$0xf]
    %v1031 = vld [vmem:[#allocation5 + $0x80c] sm:$0xf]
    %v1032 = vld [vmem:[#allocation5 + $0x810] sm:$0xf]
    %v1033 = vld [vmem:[#allocation5 + $0x814] sm:$0xf]
    %v1034 = vld [vmem:[#allocation5 + $0x818] sm:$0xf]
    %v1035 = vld [vmem:[#allocation5 + $0x81c] sm:$0xf]
    %v1036 = vld [vmem:[#allocation5 + $0x820] sm:$0xf]
    %v1037 = vld [vmem:[#allocation5 + $0x824] sm:$0xf]
    %v1038 = vld [vmem:[#allocation5 + $0x828] sm:$0xf]
    %v1039 = vld [vmem:[#allocation5 + $0x82c] sm:$0xf]
    %v1040 = vld [vmem:[#allocation5 + $0x830] sm:$0xf]
    %v1041 = vld [vmem:[#allocation5 + $0x834] sm:$0xf]
    %v1042 = vld [vmem:[#allocation5 + $0x838] sm:$0xf]
    %v1043 = vld [vmem:[#allocation5 + $0x83c] sm:$0xf]
    %v1044 = vld [vmem:[#allocation5 + $0x840] sm:$0xf]
    %v1045 = vld [vmem:[#allocation5 + $0x844] sm:$0xf]
    %v1046 = vld [vmem:[#allocation5 + $0x848] sm:$0xf]
    %v1047 = vld [vmem:[#allocation5 + $0x84c] sm:$0xf]
    %v1048 = vld [vmem:[#allocation5 + $0x850] sm:$0xf]
    %v1049 = vld [vmem:[#allocation5 + $0x854] sm:$0xf]
    %v1050 = vld [vmem:[#allocation5 + $0x858] sm:$0xf]
    %v1051 = vld [vmem:[#allocation5 + $0x85c] sm:$0xf]
    %v1052 = vld [vmem:[#allocation5 + $0x860] sm:$0xf]
    %v1053 = vld [vmem:[#allocation5 + $0x864] sm:$0xf]
    %v1054 = vld [vmem:[#allocation5 + $0x868] sm:$0xf]
    %v1055 = vld [vmem:[#allocation5 + $0x86c] sm:$0xf]
    %v1056 = vld [vmem:[#allocation5 + $0x870] sm:$0xf]
    %v1057 = vld [vmem:[#allocation5 + $0x874] sm:$0xf]
    %v1058 = vld [vmem:[#allocation5 + $0x878] sm:$0xf]
    %v1059 = vld [vmem:[#allocation5 + $0x87c] sm:$0xf]
    %v1060 = vld [vmem:[#allocation5 + $0x880] sm:$0xf]
    %v1061 = vld [vmem:[#allocation5 + $0x884] sm:$0xf]
    %v1062 = vld [vmem:[#allocation5 + $0x888] sm:$0xf]
    %v1063 = vld [vmem:[#allocation5 + $0x88c] sm:$0xf]
    %v1064 = vld [vmem:[#allocation5 + $0x890] sm:$0xf]
    %v1065 = vld [vmem:[#allocation5 + $0x894] sm:$0xf]
    %v1066 = vld [vmem:[#allocation5 + $0x898] sm:$0xf]
    %v1067 = vld [vmem:[#allocation5 + $0x89c] sm:$0xf]
    %v1068 = vld [vmem:[#allocation5 + $0x8a0] sm:$0xf]
    %v1069 = vld [vmem:[#allocation5 + $0x8a4] sm:$0xf]
    %v1070 = vld [vmem:[#allocation5 + $0x8a8] sm:$0xf]
    %v1071 = vld [vmem:[#allocation5 + $0x8ac] sm:$0xf]
    %v1072 = vld [vmem:[#allocation5 + $0x8b0] sm:$0xf]
    %v1073 = vld [vmem:[#allocation5 + $0x8b4] sm:$0xf]
    %v1074 = vld [vmem:[#allocation5 + $0x8b8] sm:$0xf]
    %v1075 = vld [vmem:[#allocation5 + $0x8bc] sm:$0xf]
    %v1076 = vld [vmem:[#allocation5 + $0x8c0] sm:$0xf]
    %v1077 = vld [vmem:[#allocation5 + $0x8c4] sm:$0xf]
    %v1078 = vld [vmem:[#allocation5 + $0x8c8] sm:$0xf]
    %v1079 = vld [vmem:[#allocation5 + $0x8cc] sm:$0xf]
    %v1080 = vld [vmem:[#allocation5 + $0x8d0] sm:$0xf]
    %v1081 = vld [vmem:[#allocation5 + $0x8d4] sm:$0xf]
    %v1082 = vld [vmem:[#allocation5 + $0x8d8] sm:$0xf]
    %v1083 = vld [vmem:[#allocation5 + $0x8dc] sm:$0xf]
    %v1084 = vld [vmem:[#allocation5 + $0x8e0] sm:$0xf]
    %v1085 = vld [vmem:[#allocation5 + $0x8e4] sm:$0xf]
    %v1086 = vld [vmem:[#allocation5 + $0x8e8] sm:$0xf]
    %v1087 = vld [vmem:[#allocation5 + $0x8ec] sm:$0xf]
    %v1088 = vld [vmem:[#allocation5 + $0x8f0] sm:$0xf]
    %v1089 = vld [vmem:[#allocation5 + $0x8f4] sm:$0xf]
    %v1090 = vld [vmem:[#allocation5 + $0x8f8] sm:$0xf]
    %v1091 = vld [vmem:[#allocation5 + $0x8fc] sm:$0xf]
    %v1092 = vld [vmem:[#allocation5 + $0x900] sm:$0xf]
    %v1093 = vld [vmem:[#allocation5 + $0x904] sm:$0xf]
    %v1094 = vld [vmem:[#allocation5 + $0x908] sm:$0xf]
    %v1095 = vld [vmem:[#allocation5 + $0x90c] sm:$0xf]
    %v1096 = vld [vmem:[#allocation5 + $0x910] sm:$0xf]
    %v1097 = vld [vmem:[#allocation5 + $0x914] sm:$0xf]
    %v1098 = vld [vmem:[#allocation5 + $0x918] sm:$0xf]
    %v1099 = vld [vmem:[#allocation5 + $0x91c] sm:$0xf]
    %v1100 = vld [vmem:[#allocation5 + $0x920] sm:$0xf]
    %v1101 = vld [vmem:[#allocation5 + $0x924] sm:$0xf]
    %v1102 = vld [vmem:[#allocation5 + $0x928] sm:$0xf]
    %v1103 = vld [vmem:[#allocation5 + $0x92c] sm:$0xf]
    %v1104 = vld [vmem:[#allocation5 + $0x930] sm:$0xf]
    %v1105 = vld [vmem:[#allocation5 + $0x934] sm:$0xf]
    %v1106 = vld [vmem:[#allocation5 + $0x938] sm:$0xf]
    %v1107 = vld [vmem:[#allocation5 + $0x93c] sm:$0xf]
    %v1108 = vld [vmem:[#allocation5 + $0x940] sm:$0xf]
    %v1109 = vld [vmem:[#allocation5 + $0x944] sm:$0xf]
    %v1110 = vld [vmem:[#allocation5 + $0x948] sm:$0xf]
    %v1111 = vld [vmem:[#allocation5 + $0x94c] sm:$0xf]
    %v1112 = vld [vmem:[#allocation5 + $0x950] sm:$0xf]
    %v1113 = vld [vmem:[#allocation5 + $0x954] sm:$0xf]
    %v1114 = vld [vmem:[#allocation5 + $0x958] sm:$0xf]
    %v1115 = vld [vmem:[#allocation5 + $0x95c] sm:$0xf]
    %v1116 = vld [vmem:[#allocation5 + $0x960] sm:$0xf]
    %v1117 = vld [vmem:[#allocation5 + $0x964] sm:$0xf]
    %v1118 = vld [vmem:[#allocation5 + $0x968] sm:$0xf]
    %v1119 = vld [vmem:[#allocation5 + $0x96c] sm:$0xf]
    %v1120 = vld [vmem:[#allocation5 + $0x970] sm:$0xf]
    %v1121 = vld [vmem:[#allocation5 + $0x974] sm:$0xf]
    %v1122 = vld [vmem:[#allocation5 + $0x978] sm:$0xf]
    %v1123 = vld [vmem:[#allocation5 + $0x97c] sm:$0xf]
    %v1124 = vld [vmem:[#allocation5 + $0x980] sm:$0xf]
    %v1125 = vld [vmem:[#allocation5 + $0x984] sm:$0xf]
    %v1126 = vld [vmem:[#allocation5 + $0x988] sm:$0xf]
    %v1127 = vld [vmem:[#allocation5 + $0x98c] sm:$0xf]
    %v1128 = vld [vmem:[#allocation5 + $0x990] sm:$0xf]
    %v1129 = vld [vmem:[#allocation5 + $0x994] sm:$0xf]
    %v1130 = vld [vmem:[#allocation5 + $0x998] sm:$0xf]
    %v1131 = vld [vmem:[#allocation5 + $0x99c] sm:$0xf]
    %v1132 = vld [vmem:[#allocation5 + $0x9a0] sm:$0xf]
    %v1133 = vld [vmem:[#allocation5 + $0x9a4] sm:$0xf]
    %v1134 = vld [vmem:[#allocation5 + $0x9a8] sm:$0xf]
    %v1135 = vld [vmem:[#allocation5 + $0x9ac] sm:$0xf]
    %v1136 = vld [vmem:[#allocation5 + $0x9b0] sm:$0xf]
    %v1137 = vld [vmem:[#allocation5 + $0x9b4] sm:$0xf]
    %v1138 = vld [vmem:[#allocation5 + $0x9b8] sm:$0xf]
    %v1139 = vld [vmem:[#allocation5 + $0x9bc] sm:$0xf]
    %v1140 = vld [vmem:[#allocation5 + $0x9c0] sm:$0xf]
    %v1141 = vld [vmem:[#allocation5 + $0x9c4] sm:$0xf]
    %v1142 = vld [vmem:[#allocation5 + $0x9c8] sm:$0xf]
    %v1143 = vld [vmem:[#allocation5 + $0x9cc] sm:$0xf]
    %v1144 = vld [vmem:[#allocation5 + $0x9d0] sm:$0xf]
    %v1145 = vld [vmem:[#allocation5 + $0x9d4] sm:$0xf]
    %v1146 = vld [vmem:[#allocation5 + $0x9d8] sm:$0xf]
    %v1147 = vld [vmem:[#allocation5 + $0x9dc] sm:$0xf]
    %v1148 = vld [vmem:[#allocation5 + $0x9e0] sm:$0xf]
    %v1149 = vld [vmem:[#allocation5 + $0x9e4] sm:$0xf]
    %v1150 = vld [vmem:[#allocation5 + $0x9e8] sm:$0xf]
    %v1151 = vld [vmem:[#allocation5 + $0x9ec] sm:$0xf]
    %v1152 = vld [vmem:[#allocation5 + $0x9f0] sm:$0xf]
    %v1153 = vld [vmem:[#allocation5 + $0x9f4] sm:$0xf]
    %v1154 = vld [vmem:[#allocation5 + $0x9f8] sm:$0xf]
    %v1155 = vld [vmem:[#allocation5 + $0x9fc] sm:$0xf]
    %v1156 = vld [vmem:[#allocation5 + $0xa00] sm:$0xf]
    %v1157 = vld [vmem:[#allocation5 + $0xa04] sm:$0xf]
    %v1158 = vld [vmem:[#allocation5 + $0xa08] sm:$0xf]
    %v1159 = vld [vmem:[#allocation5 + $0xa0c] sm:$0xf]
    %v1160 = vld [vmem:[#allocation5 + $0xa10] sm:$0xf]
    %v1161 = vld [vmem:[#allocation5 + $0xa14] sm:$0xf]
    %v1162 = vld [vmem:[#allocation5 + $0xa18] sm:$0xf]
    %v1163 = vld [vmem:[#allocation5 + $0xa1c] sm:$0xf]
    %v1164 = vld [vmem:[#allocation5 + $0xa20] sm:$0xf]
    %v1165 = vld [vmem:[#allocation5 + $0xa24] sm:$0xf]
    %v1166 = vld [vmem:[#allocation5 + $0xa28] sm:$0xf]
    %v1167 = vld [vmem:[#allocation5 + $0xa2c] sm:$0xf]
    %v1168 = vld [vmem:[#allocation5 + $0xa30] sm:$0xf]
    %v1169 = vld [vmem:[#allocation5 + $0xa34] sm:$0xf]
    %v1170 = vld [vmem:[#allocation5 + $0xa38] sm:$0xf]
    %v1171 = vld [vmem:[#allocation5 + $0xa3c] sm:$0xf]
    %v1172 = vld [vmem:[#allocation5 + $0xa40] sm:$0xf]
    %v1173 = vld [vmem:[#allocation5 + $0xa44] sm:$0xf]
    %v1174 = vld [vmem:[#allocation5 + $0xa48] sm:$0xf]
    %v1175 = vld [vmem:[#allocation5 + $0xa4c] sm:$0xf]
    %v1176 = vld [vmem:[#allocation5 + $0xa50] sm:$0xf]
    %v1177 = vld [vmem:[#allocation5 + $0xa54] sm:$0xf]
    %v1178 = vld [vmem:[#allocation5 + $0xa58] sm:$0xf]
    %v1179 = vld [vmem:[#allocation5 + $0xa5c] sm:$0xf]
    %v1180 = vld [vmem:[#allocation5 + $0xa60] sm:$0xf]
    %v1181 = vld [vmem:[#allocation5 + $0xa64] sm:$0xf]
    %v1182 = vld [vmem:[#allocation5 + $0xa68] sm:$0xf]
    %v1183 = vld [vmem:[#allocation5 + $0xa6c] sm:$0xf]
    %v1184 = vld [vmem:[#allocation5 + $0xa70] sm:$0xf]
    %v1185 = vld [vmem:[#allocation5 + $0xa74] sm:$0xf]
    %v1186 = vld [vmem:[#allocation5 + $0xa78] sm:$0xf]
    %v1187 = vld [vmem:[#allocation5 + $0xa7c] sm:$0xf]
    %v1188 = vld [vmem:[#allocation5 + $0xa80] sm:$0xf]
    %v1189 = vld [vmem:[#allocation5 + $0xa84] sm:$0xf]
    %v1190 = vld [vmem:[#allocation5 + $0xa88] sm:$0xf]
    %v1191 = vld [vmem:[#allocation5 + $0xa8c] sm:$0xf]
    %v1192 = vld [vmem:[#allocation5 + $0xa90] sm:$0xf]
    %v1193 = vld [vmem:[#allocation5 + $0xa94] sm:$0xf]
    %v1194 = vld [vmem:[#allocation5 + $0xa98] sm:$0xf]
    %v1195 = vld [vmem:[#allocation5 + $0xa9c] sm:$0xf]
    %v1196 = vld [vmem:[#allocation5 + $0xaa0] sm:$0xf]
    %v1197 = vld [vmem:[#allocation5 + $0xaa4] sm:$0xf]
    %v1198 = vld [vmem:[#allocation5 + $0xaa8] sm:$0xf]
    %v1199 = vld [vmem:[#allocation5 + $0xaac] sm:$0xf]
    %v1200 = vld [vmem:[#allocation5 + $0xab0] sm:$0xf]
    %v1201 = vld [vmem:[#allocation5 + $0xab4] sm:$0xf]
    %v1202 = vld [vmem:[#allocation5 + $0xab8] sm:$0xf]
    %v1203 = vld [vmem:[#allocation5 + $0xabc] sm:$0xf]
    %v1204 = vld [vmem:[#allocation5 + $0xac0] sm:$0xf]
    %v1205 = vld [vmem:[#allocation5 + $0xac4] sm:$0xf]
    %v1206 = vld [vmem:[#allocation5 + $0xac8] sm:$0xf]
    %v1207 = vld [vmem:[#allocation5 + $0xacc] sm:$0xf]
    %v1208 = vld [vmem:[#allocation5 + $0xad0] sm:$0xf]
    %v1209 = vld [vmem:[#allocation5 + $0xad4] sm:$0xf]
    %v1210 = vld [vmem:[#allocation5 + $0xad8] sm:$0xf]
    %v1211 = vld [vmem:[#allocation5 + $0xadc] sm:$0xf]
    %v1212 = vld [vmem:[#allocation5 + $0xae0] sm:$0xf]
    %v1213 = vld [vmem:[#allocation5 + $0xae4] sm:$0xf]
    %v1214 = vld [vmem:[#allocation5 + $0xae8] sm:$0xf]
    %v1215 = vld [vmem:[#allocation5 + $0xaec] sm:$0xf]
    %v1216 = vld [vmem:[#allocation5 + $0xaf0] sm:$0xf]
    %v1217 = vld [vmem:[#allocation5 + $0xaf4] sm:$0xf]
    %v1218 = vld [vmem:[#allocation5 + $0xaf8] sm:$0xf]
    %v1219 = vld [vmem:[#allocation5 + $0xafc] sm:$0xf]
    %v1220 = vld [vmem:[#allocation5 + $0xb00] sm:$0xf]
    %v1221 = vld [vmem:[#allocation5 + $0xb04] sm:$0xf]
    %v1222 = vld [vmem:[#allocation5 + $0xb08] sm:$0xf]
    %v1223 = vld [vmem:[#allocation5 + $0xb0c] sm:$0xf]
    %v1224 = vld [vmem:[#allocation5 + $0xb10] sm:$0xf]
    %v1225 = vld [vmem:[#allocation5 + $0xb14] sm:$0xf]
    %v1226 = vld [vmem:[#allocation5 + $0xb18] sm:$0xf]
    %v1227 = vld [vmem:[#allocation5 + $0xb1c] sm:$0xf]
    %v1228 = vld [vmem:[#allocation5 + $0xb20] sm:$0xf]
    %v1229 = vld [vmem:[#allocation5 + $0xb24] sm:$0xf]
    %v1230 = vld [vmem:[#allocation5 + $0xb28] sm:$0xf]
    %v1231 = vld [vmem:[#allocation5 + $0xb2c] sm:$0xf]
    %v1232 = vld [vmem:[#allocation5 + $0xb30] sm:$0xf]
    %v1233 = vld [vmem:[#allocation5 + $0xb34] sm:$0xf]
    %v1234 = vld [vmem:[#allocation5 + $0xb38] sm:$0xf]
    %v1235 = vld [vmem:[#allocation5 + $0xb3c] sm:$0xf]
    %v1236 = vld [vmem:[#allocation5 + $0xb40] sm:$0xf]
    %v1237 = vld [vmem:[#allocation5 + $0xb44] sm:$0xf]
    %v1238 = vld [vmem:[#allocation5 + $0xb48] sm:$0xf]
    %v1239 = vld [vmem:[#allocation5 + $0xb4c] sm:$0xf]
    %v1240 = vld [vmem:[#allocation5 + $0xb50] sm:$0xf]
    %v1241 = vld [vmem:[#allocation5 + $0xb54] sm:$0xf]
    %v1242 = vld [vmem:[#allocation5 + $0xb58] sm:$0xf]
    %v1243 = vld [vmem:[#allocation5 + $0xb5c] sm:$0xf]
    %v1244 = vld [vmem:[#allocation5 + $0xb60] sm:$0xf]
    %v1245 = vld [vmem:[#allocation5 + $0xb64] sm:$0xf]
    %v1246 = vld [vmem:[#allocation5 + $0xb68] sm:$0xf]
    %v1247 = vld [vmem:[#allocation5 + $0xb6c] sm:$0xf]
    %v1248 = vld [vmem:[#allocation5 + $0xb70] sm:$0xf]
    %v1249 = vld [vmem:[#allocation5 + $0xb74] sm:$0xf]
    %v1250 = vld [vmem:[#allocation5 + $0xb78] sm:$0xf]
    %v1251 = vld [vmem:[#allocation5 + $0xb7c] sm:$0xf]
    %v1252 = vld [vmem:[#allocation5 + $0xb80] sm:$0xf]
    %v1253 = vld [vmem:[#allocation5 + $0xb84] sm:$0xf]
    %v1254 = vld [vmem:[#allocation5 + $0xb88] sm:$0xf]
    %v1255 = vld [vmem:[#allocation5 + $0xb8c] sm:$0xf]
    %v1256 = vld [vmem:[#allocation5 + $0xb90] sm:$0xf]
    %v1257 = vld [vmem:[#allocation5 + $0xb94] sm:$0xf]
    %v1258 = vld [vmem:[#allocation5 + $0xb98] sm:$0xf]
    %v1259 = vld [vmem:[#allocation5 + $0xb9c] sm:$0xf]
    %v1260 = vld [vmem:[#allocation5 + $0xba0] sm:$0xf]
    %v1261 = vld [vmem:[#allocation5 + $0xba4] sm:$0xf]
    %v1262 = vld [vmem:[#allocation5 + $0xba8] sm:$0xf]
    %v1263 = vld [vmem:[#allocation5 + $0xbac] sm:$0xf]
    %v1264 = vld [vmem:[#allocation5 + $0xbb0] sm:$0xf]
    %v1265 = vld [vmem:[#allocation5 + $0xbb4] sm:$0xf]
    %v1266 = vld [vmem:[#allocation5 + $0xbb8] sm:$0xf]
    %v1267 = vld [vmem:[#allocation5 + $0xbbc] sm:$0xf]
    %v1268 = vld [vmem:[#allocation5 + $0xbc0] sm:$0xf]
    %v1269 = vld [vmem:[#allocation5 + $0xbc4] sm:$0xf]
    %v1270 = vld [vmem:[#allocation5 + $0xbc8] sm:$0xf]
    %v1271 = vld [vmem:[#allocation5 + $0xbcc] sm:$0xf]
    %v1272 = vld [vmem:[#allocation5 + $0xbd0] sm:$0xf]
    %v1273 = vld [vmem:[#allocation5 + $0xbd4] sm:$0xf]
    %v1274 = vld [vmem:[#allocation5 + $0xbd8] sm:$0xf]
    %v1275 = vld [vmem:[#allocation5 + $0xbdc] sm:$0xf]
    %v1276 = vld [vmem:[#allocation5 + $0xbe0] sm:$0xf]
    %v1277 = vld [vmem:[#allocation5 + $0xbe4] sm:$0xf]
    %v1278 = vld [vmem:[#allocation5 + $0xbe8] sm:$0xf]
    %v1279 = vld [vmem:[#allocation5 + $0xbec] sm:$0xf]
    %v1280 = vld [vmem:[#allocation5 + $0xbf0] sm:$0xf]
    %v1281 = vld [vmem:[#allocation5 + $0xbf4] sm:$0xf]
    %v1282 = vld [vmem:[#allocation5 + $0xbf8] sm:$0xf]
    %v1283 = vld [vmem:[#allocation5 + $0xbfc] sm:$0xf]
    %v1284 = vld [vmem:[#allocation5 + $0xc00] sm:$0xf]
    %v1285 = vld [vmem:[#allocation5 + $0xc04] sm:$0xf]
    %v1286 = vld [vmem:[#allocation5 + $0xc08] sm:$0xf]
    %v1287 = vld [vmem:[#allocation5 + $0xc0c] sm:$0xf]
    %v1288 = vld [vmem:[#allocation5 + $0xc10] sm:$0xf]
    %v1289 = vld [vmem:[#allocation5 + $0xc14] sm:$0xf]
    %v1290 = vld [vmem:[#allocation5 + $0xc18] sm:$0xf]
    %v1291 = vld [vmem:[#allocation5 + $0xc1c] sm:$0xf]
    %v1292 = vld [vmem:[#allocation5 + $0xc20] sm:$0xf]
    %v1293 = vld [vmem:[#allocation5 + $0xc24] sm:$0xf]
    %v1294 = vld [vmem:[#allocation5 + $0xc28] sm:$0xf]
    %v1295 = vld [vmem:[#allocation5 + $0xc2c] sm:$0xf]
    %v1296 = vld [vmem:[#allocation5 + $0xc30] sm:$0xf]
    %v1297 = vld [vmem:[#allocation5 + $0xc34] sm:$0xf]
    %v1298 = vld [vmem:[#allocation5 + $0xc38] sm:$0xf]
    %v1299 = vld [vmem:[#allocation5 + $0xc3c] sm:$0xf]
    %v1300 = vld [vmem:[#allocation5 + $0xc40] sm:$0xf]
    %v1301 = vld [vmem:[#allocation5 + $0xc44] sm:$0xf]
    %v1302 = vld [vmem:[#allocation5 + $0xc48] sm:$0xf]
    %v1303 = vld [vmem:[#allocation5 + $0xc4c] sm:$0xf]
    %v1304 = vld [vmem:[#allocation5 + $0xc50] sm:$0xf]
    %v1305 = vld [vmem:[#allocation5 + $0xc54] sm:$0xf]
    %v1306 = vld [vmem:[#allocation5 + $0xc58] sm:$0xf]
    %v1307 = vld [vmem:[#allocation5 + $0xc5c] sm:$0xf]
    %v1308 = vld [vmem:[#allocation5 + $0xc60] sm:$0xf]
    %v1309 = vld [vmem:[#allocation5 + $0xc64] sm:$0xf]
    %v1310 = vld [vmem:[#allocation5 + $0xc68] sm:$0xf]
    %v1311 = vld [vmem:[#allocation5 + $0xc6c] sm:$0xf]
    %v1312 = vld [vmem:[#allocation5 + $0xc70] sm:$0xf]
    %v1313 = vld [vmem:[#allocation5 + $0xc74] sm:$0xf]
    %v1314 = vld [vmem:[#allocation5 + $0xc78] sm:$0xf]
    %v1315 = vld [vmem:[#allocation5 + $0xc7c] sm:$0xf]
    %v1316 = vld [vmem:[#allocation5 + $0xc80] sm:$0xf]
    %v1317 = vld [vmem:[#allocation5 + $0xc84] sm:$0xf]
    %v1318 = vld [vmem:[#allocation5 + $0xc88] sm:$0xf]
    %v1319 = vld [vmem:[#allocation5 + $0xc8c] sm:$0xf]
    %v1320 = vld [vmem:[#allocation5 + $0xc90] sm:$0xf]
    %v1321 = vld [vmem:[#allocation5 + $0xc94] sm:$0xf]
    %v1322 = vld [vmem:[#allocation5 + $0xc98] sm:$0xf]
    %v1323 = vld [vmem:[#allocation5 + $0xc9c] sm:$0xf]
    %v1324 = vld [vmem:[#allocation5 + $0xca0] sm:$0xf]
    %v1325 = vld [vmem:[#allocation5 + $0xca4] sm:$0xf]
    %v1326 = vld [vmem:[#allocation5 + $0xca8] sm:$0xf]
    %v1327 = vld [vmem:[#allocation5 + $0xcac] sm:$0xf]
    %v1328 = vld [vmem:[#allocation5 + $0xcb0] sm:$0xf]
    %v1329 = vld [vmem:[#allocation5 + $0xcb4] sm:$0xf]
    %v1330 = vld [vmem:[#allocation5 + $0xcb8] sm:$0xf]
    %v1331 = vld [vmem:[#allocation5 + $0xcbc] sm:$0xf]
    %v1332 = vld [vmem:[#allocation5 + $0xcc0] sm:$0xf]
    %v1333 = vld [vmem:[#allocation5 + $0xcc4] sm:$0xf]
    %v1334 = vld [vmem:[#allocation5 + $0xcc8] sm:$0xf]
    %v1335 = vld [vmem:[#allocation5 + $0xccc] sm:$0xf]
    %v1336 = vld [vmem:[#allocation5 + $0xcd0] sm:$0xf]
    %v1337 = vld [vmem:[#allocation5 + $0xcd4] sm:$0xf]
    %v1338 = vld [vmem:[#allocation5 + $0xcd8] sm:$0xf]
    %v1339 = vld [vmem:[#allocation5 + $0xcdc] sm:$0xf]
    %v1340 = vld [vmem:[#allocation5 + $0xce0] sm:$0xf]
    %v1341 = vld [vmem:[#allocation5 + $0xce4] sm:$0xf]
    %v1342 = vld [vmem:[#allocation5 + $0xce8] sm:$0xf]
    %v1343 = vld [vmem:[#allocation5 + $0xcec] sm:$0xf]
    %v1344 = vld [vmem:[#allocation5 + $0xcf0] sm:$0xf]
    %v1345 = vld [vmem:[#allocation5 + $0xcf4] sm:$0xf]
    %v1346 = vld [vmem:[#allocation5 + $0xcf8] sm:$0xf]
    %v1347 = vld [vmem:[#allocation5 + $0xcfc] sm:$0xf]
    %v1348 = vld [vmem:[#allocation5 + $0xd00] sm:$0xf]
    %v1349 = vld [vmem:[#allocation5 + $0xd04] sm:$0xf]
    %v1350 = vld [vmem:[#allocation5 + $0xd08] sm:$0xf]
    %v1351 = vld [vmem:[#allocation5 + $0xd0c] sm:$0xf]
    %v1352 = vld [vmem:[#allocation5 + $0xd10] sm:$0xf]
    %v1353 = vld [vmem:[#allocation5 + $0xd14] sm:$0xf]
    %v1354 = vld [vmem:[#allocation5 + $0xd18] sm:$0xf]
    %v1355 = vld [vmem:[#allocation5 + $0xd1c] sm:$0xf]
    %v1356 = vld [vmem:[#allocation5 + $0xd20] sm:$0xf]
    %v1357 = vld [vmem:[#allocation5 + $0xd24] sm:$0xf]
    %v1358 = vld [vmem:[#allocation5 + $0xd28] sm:$0xf]
    %v1359 = vld [vmem:[#allocation5 + $0xd2c] sm:$0xf]
    %v1360 = vld [vmem:[#allocation5 + $0xd30] sm:$0xf]
    %v1361 = vld [vmem:[#allocation5 + $0xd34] sm:$0xf]
    %v1362 = vld [vmem:[#allocation5 + $0xd38] sm:$0xf]
    %v1363 = vld [vmem:[#allocation5 + $0xd3c] sm:$0xf]
    %v1364 = vld [vmem:[#allocation5 + $0xd40] sm:$0xf]
    %v1365 = vld [vmem:[#allocation5 + $0xd44] sm:$0xf]
    %v1366 = vld [vmem:[#allocation5 + $0xd48] sm:$0xf]
    %v1367 = vld [vmem:[#allocation5 + $0xd4c] sm:$0xf]
    %v1368 = vld [vmem:[#allocation5 + $0xd50] sm:$0xf]
    %v1369 = vld [vmem:[#allocation5 + $0xd54] sm:$0xf]
    %v1370 = vld [vmem:[#allocation5 + $0xd58] sm:$0xf]
    %v1371 = vld [vmem:[#allocation5 + $0xd5c] sm:$0xf]
    %v1372 = vld [vmem:[#allocation5 + $0xd60] sm:$0xf]
    %v1373 = vld [vmem:[#allocation5 + $0xd64] sm:$0xf]
    %v1374 = vld [vmem:[#allocation5 + $0xd68] sm:$0xf]
    %v1375 = vld [vmem:[#allocation5 + $0xd6c] sm:$0xf]
    %v1376 = vld [vmem:[#allocation5 + $0xd70] sm:$0xf]
    %v1377 = vld [vmem:[#allocation5 + $0xd74] sm:$0xf]
    %v1378 = vld [vmem:[#allocation5 + $0xd78] sm:$0xf]
    %v1379 = vld [vmem:[#allocation5 + $0xd7c] sm:$0xf]
    %v1380 = vld [vmem:[#allocation5 + $0xd80] sm:$0xf]
    %v1381 = vld [vmem:[#allocation5 + $0xd84] sm:$0xf]
    %v1382 = vld [vmem:[#allocation5 + $0xd88] sm:$0xf]
    %v1383 = vld [vmem:[#allocation5 + $0xd8c] sm:$0xf]
    %v1384 = vld [vmem:[#allocation5 + $0xd90] sm:$0xf]
    %v1385 = vld [vmem:[#allocation5 + $0xd94] sm:$0xf]
    %v1386 = vld [vmem:[#allocation5 + $0xd98] sm:$0xf]
    %v1387 = vld [vmem:[#allocation5 + $0xd9c] sm:$0xf]
    %v1388 = vld [vmem:[#allocation5 + $0xda0] sm:$0xf]
    %v1389 = vld [vmem:[#allocation5 + $0xda4] sm:$0xf]
    %v1390 = vld [vmem:[#allocation5 + $0xda8] sm:$0xf]
    %v1391 = vld [vmem:[#allocation5 + $0xdac] sm:$0xf]
    %v1392 = vld [vmem:[#allocation5 + $0xdb0] sm:$0xf]
    %v1393 = vld [vmem:[#allocation5 + $0xdb4] sm:$0xf]
    %v1394 = vld [vmem:[#allocation5 + $0xdb8] sm:$0xf]
    %v1395 = vld [vmem:[#allocation5 + $0xdbc] sm:$0xf]
    %v1396 = vld [vmem:[#allocation5 + $0xdc0] sm:$0xf]
    %v1397 = vld [vmem:[#allocation5 + $0xdc4] sm:$0xf]
    %v1398 = vld [vmem:[#allocation5 + $0xdc8] sm:$0xf]
    %v1399 = vld [vmem:[#allocation5 + $0xdcc] sm:$0xf]
    %v1400 = vld [vmem:[#allocation5 + $0xdd0] sm:$0xf]
    %v1401 = vld [vmem:[#allocation5 + $0xdd4] sm:$0xf]
    %v1402 = vld [vmem:[#allocation5 + $0xdd8] sm:$0xf]
    %v1403 = vld [vmem:[#allocation5 + $0xddc] sm:$0xf]
    %v1404 = vld [vmem:[#allocation5 + $0xde0] sm:$0xf]
    %v1405 = vld [vmem:[#allocation5 + $0xde4] sm:$0xf]
    %v1406 = vld [vmem:[#allocation5 + $0xde8] sm:$0xf]
    %v1407 = vld [vmem:[#allocation5 + $0xdec] sm:$0xf]
    %v1408 = vld [vmem:[#allocation5 + $0xdf0] sm:$0xf]
    %v1409 = vld [vmem:[#allocation5 + $0xdf4] sm:$0xf]
    %v1410 = vld [vmem:[#allocation5 + $0xdf8] sm:$0xf]
    %v1411 = vld [vmem:[#allocation5 + $0xdfc] sm:$0xf]
    %v1412 = vld [vmem:[#allocation5 + $0xe00] sm:$0xf]
    %v1413 = vld [vmem:[#allocation5 + $0xe04] sm:$0xf]
    %v1414 = vld [vmem:[#allocation5 + $0xe08] sm:$0xf]
    %v1415 = vld [vmem:[#allocation5 + $0xe0c] sm:$0xf]
    %v1416 = vld [vmem:[#allocation5 + $0xe10] sm:$0xf]
    %v1417 = vld [vmem:[#allocation5 + $0xe14] sm:$0xf]
    %v1418 = vld [vmem:[#allocation5 + $0xe18] sm:$0xf]
    %v1419 = vld [vmem:[#allocation5 + $0xe1c] sm:$0xf]
    %v1420 = vld [vmem:[#allocation5 + $0xe20] sm:$0xf]
    %v1421 = vld [vmem:[#allocation5 + $0xe24] sm:$0xf]
    %v1422 = vld [vmem:[#allocation5 + $0xe28] sm:$0xf]
    %v1423 = vld [vmem:[#allocation5 + $0xe2c] sm:$0xf]
    %v1424 = vld [vmem:[#allocation5 + $0xe30] sm:$0xf]
    %v1425 = vld [vmem:[#allocation5 + $0xe34] sm:$0xf]
    %v1426 = vld [vmem:[#allocation5 + $0xe38] sm:$0xf]
    %v1427 = vld [vmem:[#allocation5 + $0xe3c] sm:$0xf]
    %v1428 = vld [vmem:[#allocation5 + $0xe40] sm:$0xf]
    %v1429 = vld [vmem:[#allocation5 + $0xe44] sm:$0xf]
    %v1430 = vld [vmem:[#allocation5 + $0xe48] sm:$0xf]
    %v1431 = vld [vmem:[#allocation5 + $0xe4c] sm:$0xf]
    %v1432 = vld [vmem:[#allocation5 + $0xe50] sm:$0xf]
    %v1433 = vld [vmem:[#allocation5 + $0xe54] sm:$0xf]
    %v1434 = vld [vmem:[#allocation5 + $0xe58] sm:$0xf]
    %v1435 = vld [vmem:[#allocation5 + $0xe5c] sm:$0xf]
    %v1436 = vld [vmem:[#allocation5 + $0xe60] sm:$0xf]
    %v1437 = vld [vmem:[#allocation5 + $0xe64] sm:$0xf]
    %v1438 = vld [vmem:[#allocation5 + $0xe68] sm:$0xf]
    %v1439 = vld [vmem:[#allocation5 + $0xe6c] sm:$0xf]
    %v1440 = vld [vmem:[#allocation5 + $0xe70] sm:$0xf]
    %v1441 = vld [vmem:[#allocation5 + $0xe74] sm:$0xf]
    %v1442 = vld [vmem:[#allocation5 + $0xe78] sm:$0xf]
    %v1443 = vld [vmem:[#allocation5 + $0xe7c] sm:$0xf]
    %v1444 = vld [vmem:[#allocation5 + $0xe80] sm:$0xf]
    %v1445 = vld [vmem:[#allocation5 + $0xe84] sm:$0xf]
    %v1446 = vld [vmem:[#allocation5 + $0xe88] sm:$0xf]
    %v1447 = vld [vmem:[#allocation5 + $0xe8c] sm:$0xf]
    %v1448 = vld [vmem:[#allocation5 + $0xe90] sm:$0xf]
    %v1449 = vld [vmem:[#allocation5 + $0xe94] sm:$0xf]
    %v1450 = vld [vmem:[#allocation5 + $0xe98] sm:$0xf]
    %v1451 = vld [vmem:[#allocation5 + $0xe9c] sm:$0xf]
    %v1452 = vld [vmem:[#allocation5 + $0xea0] sm:$0xf]
    %v1453 = vld [vmem:[#allocation5 + $0xea4] sm:$0xf]
    %v1454 = vld [vmem:[#allocation5 + $0xea8] sm:$0xf]
    %v1455 = vld [vmem:[#allocation5 + $0xeac] sm:$0xf]
    %v1456 = vld [vmem:[#allocation5 + $0xeb0] sm:$0xf]
    %v1457 = vld [vmem:[#allocation5 + $0xeb4] sm:$0xf]
    %v1458 = vld [vmem:[#allocation5 + $0xeb8] sm:$0xf]
    %v1459 = vld [vmem:[#allocation5 + $0xebc] sm:$0xf]
    %v1460 = vld [vmem:[#allocation5 + $0xec0] sm:$0xf]
    %v1461 = vld [vmem:[#allocation5 + $0xec4] sm:$0xf]
    %v1462 = vld [vmem:[#allocation5 + $0xec8] sm:$0xf]
    %v1463 = vld [vmem:[#allocation5 + $0xecc] sm:$0xf]
    %v1464 = vld [vmem:[#allocation5 + $0xed0] sm:$0xf]
    %v1465 = vld [vmem:[#allocation5 + $0xed4] sm:$0xf]
    %v1466 = vld [vmem:[#allocation5 + $0xed8] sm:$0xf]
    %v1467 = vld [vmem:[#allocation5 + $0xedc] sm:$0xf]
    %v1468 = vld [vmem:[#allocation5 + $0xee0] sm:$0xf]
    %v1469 = vld [vmem:[#allocation5 + $0xee4] sm:$0xf]
    %v1470 = vld [vmem:[#allocation5 + $0xee8] sm:$0xf]
    %v1471 = vld [vmem:[#allocation5 + $0xeec] sm:$0xf]
    %v1472 = vld [vmem:[#allocation5 + $0xef0] sm:$0xf]
    %v1473 = vld [vmem:[#allocation5 + $0xef4] sm:$0xf]
    %v1474 = vld [vmem:[#allocation5 + $0xef8] sm:$0xf]
    %v1475 = vld [vmem:[#allocation5 + $0xefc] sm:$0xf]
    %v1476 = vld [vmem:[#allocation5 + $0xf00] sm:$0xf]
    %v1477 = vld [vmem:[#allocation5 + $0xf04] sm:$0xf]
    %v1478 = vld [vmem:[#allocation5 + $0xf08] sm:$0xf]
    %v1479 = vld [vmem:[#allocation5 + $0xf0c] sm:$0xf]
    %v1480 = vld [vmem:[#allocation5 + $0xf10] sm:$0xf]
    %v1481 = vld [vmem:[#allocation5 + $0xf14] sm:$0xf]
    %v1482 = vld [vmem:[#allocation5 + $0xf18] sm:$0xf]
    %v1483 = vld [vmem:[#allocation5 + $0xf1c] sm:$0xf]
    %v1484 = vld [vmem:[#allocation5 + $0xf20] sm:$0xf]
    %v1485 = vld [vmem:[#allocation5 + $0xf24] sm:$0xf]
    %v1486 = vld [vmem:[#allocation5 + $0xf28] sm:$0xf]
    %v1487 = vld [vmem:[#allocation5 + $0xf2c] sm:$0xf]
    %v1488 = vld [vmem:[#allocation5 + $0xf30] sm:$0xf]
    %v1489 = vld [vmem:[#allocation5 + $0xf34] sm:$0xf]
    %v1490 = vld [vmem:[#allocation5 + $0xf38] sm:$0xf]
    %v1491 = vld [vmem:[#allocation5 + $0xf3c] sm:$0xf]
    %v1492 = vld [vmem:[#allocation5 + $0xf40] sm:$0xf]
    %v1493 = vld [vmem:[#allocation5 + $0xf44] sm:$0xf]
    %v1494 = vld [vmem:[#allocation5 + $0xf48] sm:$0xf]
    %v1495 = vld [vmem:[#allocation5 + $0xf4c] sm:$0xf]
    %v1496 = vld [vmem:[#allocation5 + $0xf50] sm:$0xf]
    %v1497 = vld [vmem:[#allocation5 + $0xf54] sm:$0xf]
    %v1498 = vld [vmem:[#allocation5 + $0xf58] sm:$0xf]
    %v1499 = vld [vmem:[#allocation5 + $0xf5c] sm:$0xf]
    %v1500 = vld [vmem:[#allocation5 + $0xf60] sm:$0xf]
    %v1501 = vld [vmem:[#allocation5 + $0xf64] sm:$0xf]
    %v1502 = vld [vmem:[#allocation5 + $0xf68] sm:$0xf]
    %v1503 = vld [vmem:[#allocation5 + $0xf6c] sm:$0xf]
    %v1504 = vld [vmem:[#allocation5 + $0xf70] sm:$0xf]
    %v1505 = vld [vmem:[#allocation5 + $0xf74] sm:$0xf]
    %v1506 = vld [vmem:[#allocation5 + $0xf78] sm:$0xf]
    %v1507 = vld [vmem:[#allocation5 + $0xf7c] sm:$0xf]
    %v1508 = vld [vmem:[#allocation5 + $0xf80] sm:$0xf]
    %v1509 = vld [vmem:[#allocation5 + $0xf84] sm:$0xf]
    %v1510 = vld [vmem:[#allocation5 + $0xf88] sm:$0xf]
    %v1511 = vld [vmem:[#allocation5 + $0xf8c] sm:$0xf]
    %v1512 = vld [vmem:[#allocation5 + $0xf90] sm:$0xf]
    %v1513 = vld [vmem:[#allocation5 + $0xf94] sm:$0xf]
    %v1514 = vld [vmem:[#allocation5 + $0xf98] sm:$0xf]
    %v1515 = vld [vmem:[#allocation5 + $0xf9c] sm:$0xf]
    %v1516 = vld [vmem:[#allocation5 + $0xfa0] sm:$0xf]
    %v1517 = vld [vmem:[#allocation5 + $0xfa4] sm:$0xf]
    %v1518 = vld [vmem:[#allocation5 + $0xfa8] sm:$0xf]
    %v1519 = vld [vmem:[#allocation5 + $0xfac] sm:$0xf]
    %v1520 = vld [vmem:[#allocation5 + $0xfb0] sm:$0xf]
    %v1521 = vld [vmem:[#allocation5 + $0xfb4] sm:$0xf]
    %v1522 = vld [vmem:[#allocation5 + $0xfb8] sm:$0xf]
    %v1523 = vld [vmem:[#allocation5 + $0xfbc] sm:$0xf]
    %v1524 = vld [vmem:[#allocation5 + $0xfc0] sm:$0xf]
    %v1525 = vld [vmem:[#allocation5 + $0xfc4] sm:$0xf]
    %v1526 = vld [vmem:[#allocation5 + $0xfc8] sm:$0xf]
    %v1527 = vld [vmem:[#allocation5 + $0xfcc] sm:$0xf]
    %v1528 = vld [vmem:[#allocation5 + $0xfd0] sm:$0xf]
    %v1529 = vld [vmem:[#allocation5 + $0xfd4] sm:$0xf]
    %v1530 = vld [vmem:[#allocation5 + $0xfd8] sm:$0xf]
    %v1531 = vld [vmem:[#allocation5 + $0xfdc] sm:$0xf]
    %v1532 = vld [vmem:[#allocation5 + $0xfe0] sm:$0xf]
    %v1533 = vld [vmem:[#allocation5 + $0xfe4] sm:$0xf]
    %v1534 = vld [vmem:[#allocation5 + $0xfe8] sm:$0xf]
    %v1535 = vld [vmem:[#allocation5 + $0xfec] sm:$0xf]
    %v1536 = vld [vmem:[#allocation5 + $0xff0] sm:$0xf]
    %v1537 = vld [vmem:[#allocation5 + $0xff4] sm:$0xf]
    %v1538 = vld [vmem:[#allocation5 + $0xff8] sm:$0xf]
    %v1539 = vld [vmem:[#allocation5 + $0xffc] sm:$0xf]
    %v1540 = vld [vmem:[#allocation7] sm:$0x1]
    %v1542 = vlaneseq
    %v1543 = vshrl.u32 %v1542, 7
    %v1544 = vsub.s32 0, %v1543
    %v1545 = vrot.slane %v1540, %v1544
    %v2571 = vunpack.c.l.b16 %v516
    %v2572 = vunpack.c.l.b16 %v517
    %v2573 = vunpack.c.l.b16 %v518
    %v2574 = vunpack.c.l.b16 %v519
    %v2575 = vunpack.c.l.b16 %v520
    %v2576 = vunpack.c.l.b16 %v521
    %v2577 = vunpack.c.l.b16 %v522
    %v2578 = vunpack.c.l.b16 %v523
    %v2579 = vunpack.c.l.b16 %v524
    %v2580 = vunpack.c.l.b16 %v525
    %v2581 = vunpack.c.l.b16 %v526
    %v2582 = vunpack.c.l.b16 %v527
    %v2583 = vunpack.c.l.b16 %v528
    %v2584 = vunpack.c.l.b16 %v529
    %v2585 = vunpack.c.l.b16 %v530
    %v2586 = vunpack.c.l.b16 %v531
    %v2587 = vunpack.c.l.b16 %v532
    %v2588 = vunpack.c.l.b16 %v533
    %v2589 = vunpack.c.l.b16 %v534
    %v2590 = vunpack.c.l.b16 %v535
    %v2591 = vunpack.c.l.b16 %v536
    %v2592 = vunpack.c.l.b16 %v537
    %v2593 = vunpack.c.l.b16 %v538
    %v2594 = vunpack.c.l.b16 %v539
    %v2595 = vunpack.c.l.b16 %v540
    %v2596 = vunpack.c.l.b16 %v541
    %v2597 = vunpack.c.l.b16 %v542
    %v2598 = vunpack.c.l.b16 %v543
    %v2599 = vunpack.c.l.b16 %v544
    %v2600 = vunpack.c.l.b16 %v545
    %v2601 = vunpack.c.l.b16 %v546
    %v2602 = vunpack.c.l.b16 %v547
    %v2603 = vunpack.c.l.b16 %v548
    %v2604 = vunpack.c.l.b16 %v549
    %v2605 = vunpack.c.l.b16 %v550
    %v2606 = vunpack.c.l.b16 %v551
    %v2607 = vunpack.c.l.b16 %v552
    %v2608 = vunpack.c.l.b16 %v553
    %v2609 = vunpack.c.l.b16 %v554
    %v2610 = vunpack.c.l.b16 %v555
    %v2611 = vunpack.c.l.b16 %v556
    %v2612 = vunpack.c.l.b16 %v557
    %v2613 = vunpack.c.l.b16 %v558
    %v2614 = vunpack.c.l.b16 %v559
    %v2615 = vunpack.c.l.b16 %v560
    %v2616 = vunpack.c.l.b16 %v561
    %v2617 = vunpack.c.l.b16 %v562
    %v2618 = vunpack.c.l.b16 %v563
    %v2619 = vunpack.c.l.b16 %v564
    %v2620 = vunpack.c.l.b16 %v565
    %v2621 = vunpack.c.l.b16 %v566
    %v2622 = vunpack.c.l.b16 %v567
    %v2623 = vunpack.c.l.b16 %v568
    %v2624 = vunpack.c.l.b16 %v569
    %v2625 = vunpack.c.l.b16 %v570
    %v2626 = vunpack.c.l.b16 %v571
    %v2627 = vunpack.c.l.b16 %v572
    %v2628 = vunpack.c.l.b16 %v573
    %v2629 = vunpack.c.l.b16 %v574
    %v2630 = vunpack.c.l.b16 %v575
    %v2631 = vunpack.c.l.b16 %v576
    %v2632 = vunpack.c.l.b16 %v577
    %v2633 = vunpack.c.l.b16 %v578
    %v2634 = vunpack.c.l.b16 %v579
    %v2635 = vunpack.c.l.b16 %v580
    %v2636 = vunpack.c.l.b16 %v581
    %v2637 = vunpack.c.l.b16 %v582
    %v2638 = vunpack.c.l.b16 %v583
    %v2639 = vunpack.c.l.b16 %v584
    %v2640 = vunpack.c.l.b16 %v585
    %v2641 = vunpack.c.l.b16 %v586
    %v2642 = vunpack.c.l.b16 %v587
    %v2643 = vunpack.c.l.b16 %v588
    %v2644 = vunpack.c.l.b16 %v589
    %v2645 = vunpack.c.l.b16 %v590
    %v2646 = vunpack.c.l.b16 %v591
    %v2647 = vunpack.c.l.b16 %v592
    %v2648 = vunpack.c.l.b16 %v593
    %v2649 = vunpack.c.l.b16 %v594
    %v2650 = vunpack.c.l.b16 %v595
    %v2651 = vunpack.c.l.b16 %v596
    %v2652 = vunpack.c.l.b16 %v597
    %v2653 = vunpack.c.l.b16 %v598
    %v2654 = vunpack.c.l.b16 %v599
    %v2655 = vunpack.c.l.b16 %v600
    %v2656 = vunpack.c.l.b16 %v601
    %v2657 = vunpack.c.l.b16 %v602
    %v2658 = vunpack.c.l.b16 %v603
    %v2659 = vunpack.c.l.b16 %v604
    %v2660 = vunpack.c.l.b16 %v605
    %v2661 = vunpack.c.l.b16 %v606
    %v2662 = vunpack.c.l.b16 %v607
    %v2663 = vunpack.c.l.b16 %v608
    %v2664 = vunpack.c.l.b16 %v609
    %v2665 = vunpack.c.l.b16 %v610
    %v2666 = vunpack.c.l.b16 %v611
    %v2667 = vunpack.c.l.b16 %v612
    %v2668 = vunpack.c.l.b16 %v613
    %v2669 = vunpack.c.l.b16 %v614
    %v2670 = vunpack.c.l.b16 %v615
    %v2671 = vunpack.c.l.b16 %v616
    %v2672 = vunpack.c.l.b16 %v617
    %v2673 = vunpack.c.l.b16 %v618
    %v2674 = vunpack.c.l.b16 %v619
    %v2675 = vunpack.c.l.b16 %v620
    %v2676 = vunpack.c.l.b16 %v621
    %v2677 = vunpack.c.l.b16 %v622
    %v2678 = vunpack.c.l.b16 %v623
    %v2679 = vunpack.c.l.b16 %v624
    %v2680 = vunpack.c.l.b16 %v625
    %v2681 = vunpack.c.l.b16 %v626
    %v2682 = vunpack.c.l.b16 %v627
    %v2683 = vunpack.c.l.b16 %v628
    %v2684 = vunpack.c.l.b16 %v629
    %v2685 = vunpack.c.l.b16 %v630
    %v2686 = vunpack.c.l.b16 %v631
    %v2687 = vunpack.c.l.b16 %v632
    %v2688 = vunpack.c.l.b16 %v633
    %v2689 = vunpack.c.l.b16 %v634
    %v2690 = vunpack.c.l.b16 %v635
    %v2691 = vunpack.c.l.b16 %v636
    %v2692 = vunpack.c.l.b16 %v637
    %v2693 = vunpack.c.l.b16 %v638
    %v2694 = vunpack.c.l.b16 %v639
    %v2695 = vunpack.c.l.b16 %v640
    %v2696 = vunpack.c.l.b16 %v641
    %v2697 = vunpack.c.l.b16 %v642
    %v2698 = vunpack.c.l.b16 %v643
    %v2699 = vunpack.c.l.b16 %v644
    %v2700 = vunpack.c.l.b16 %v645
    %v2701 = vunpack.c.l.b16 %v646
    %v2702 = vunpack.c.l.b16 %v647
    %v2703 = vunpack.c.l.b16 %v648
    %v2704 = vunpack.c.l.b16 %v649
    %v2705 = vunpack.c.l.b16 %v650
    %v2706 = vunpack.c.l.b16 %v651
    %v2707 = vunpack.c.l.b16 %v652
    %v2708 = vunpack.c.l.b16 %v653
    %v2709 = vunpack.c.l.b16 %v654
    %v2710 = vunpack.c.l.b16 %v655
    %v2711 = vunpack.c.l.b16 %v656
    %v2712 = vunpack.c.l.b16 %v657
    %v2713 = vunpack.c.l.b16 %v658
    %v2714 = vunpack.c.l.b16 %v659
    %v2715 = vunpack.c.l.b16 %v660
    %v2716 = vunpack.c.l.b16 %v661
    %v2717 = vunpack.c.l.b16 %v662
    %v2718 = vunpack.c.l.b16 %v663
    %v2719 = vunpack.c.l.b16 %v664
    %v2720 = vunpack.c.l.b16 %v665
    %v2721 = vunpack.c.l.b16 %v666
    %v2722 = vunpack.c.l.b16 %v667
    %v2723 = vunpack.c.l.b16 %v668
    %v2724 = vunpack.c.l.b16 %v669
    %v2725 = vunpack.c.l.b16 %v670
    %v2726 = vunpack.c.l.b16 %v671
    %v2727 = vunpack.c.l.b16 %v672
    %v2728 = vunpack.c.l.b16 %v673
    %v2729 = vunpack.c.l.b16 %v674
    %v2730 = vunpack.c.l.b16 %v675
    %v2731 = vunpack.c.l.b16 %v676
    %v2732 = vunpack.c.l.b16 %v677
    %v2733 = vunpack.c.l.b16 %v678
    %v2734 = vunpack.c.l.b16 %v679
    %v2735 = vunpack.c.l.b16 %v680
    %v2736 = vunpack.c.l.b16 %v681
    %v2737 = vunpack.c.l.b16 %v682
    %v2738 = vunpack.c.l.b16 %v683
    %v2739 = vunpack.c.l.b16 %v684
    %v2740 = vunpack.c.l.b16 %v685
    %v2741 = vunpack.c.l.b16 %v686
    %v2742 = vunpack.c.l.b16 %v687
    %v2743 = vunpack.c.l.b16 %v688
    %v2744 = vunpack.c.l.b16 %v689
    %v2745 = vunpack.c.l.b16 %v690
    %v2746 = vunpack.c.l.b16 %v691
    %v2747 = vunpack.c.l.b16 %v692
    %v2748 = vunpack.c.l.b16 %v693
    %v2749 = vunpack.c.l.b16 %v694
    %v2750 = vunpack.c.l.b16 %v695
    %v2751 = vunpack.c.l.b16 %v696
    %v2752 = vunpack.c.l.b16 %v697
    %v2753 = vunpack.c.l.b16 %v698
    %v2754 = vunpack.c.l.b16 %v699
    %v2755 = vunpack.c.l.b16 %v700
    %v2756 = vunpack.c.l.b16 %v701
    %v2757 = vunpack.c.l.b16 %v702
    %v2758 = vunpack.c.l.b16 %v703
    %v2759 = vunpack.c.l.b16 %v704
    %v2760 = vunpack.c.l.b16 %v705
    %v2761 = vunpack.c.l.b16 %v706
    %v2762 = vunpack.c.l.b16 %v707
    %v2763 = vunpack.c.l.b16 %v708
    %v2764 = vunpack.c.l.b16 %v709
    %v2765 = vunpack.c.l.b16 %v710
    %v2766 = vunpack.c.l.b16 %v711
    %v2767 = vunpack.c.l.b16 %v712
    %v2768 = vunpack.c.l.b16 %v713
    %v2769 = vunpack.c.l.b16 %v714
    %v2770 = vunpack.c.l.b16 %v715
    %v2771 = vunpack.c.l.b16 %v716
    %v2772 = vunpack.c.l.b16 %v717
    %v2773 = vunpack.c.l.b16 %v718
    %v2774 = vunpack.c.l.b16 %v719
    %v2775 = vunpack.c.l.b16 %v720
    %v2776 = vunpack.c.l.b16 %v721
    %v2777 = vunpack.c.l.b16 %v722
    %v2778 = vunpack.c.l.b16 %v723
    %v2779 = vunpack.c.l.b16 %v724
    %v2780 = vunpack.c.l.b16 %v725
    %v2781 = vunpack.c.l.b16 %v726
    %v2782 = vunpack.c.l.b16 %v727
    %v2783 = vunpack.c.l.b16 %v728
    %v2784 = vunpack.c.l.b16 %v729
    %v2785 = vunpack.c.l.b16 %v730
    %v2786 = vunpack.c.l.b16 %v731
    %v2787 = vunpack.c.l.b16 %v732
    %v2788 = vunpack.c.l.b16 %v733
    %v2789 = vunpack.c.l.b16 %v734
    %v2790 = vunpack.c.l.b16 %v735
    %v2791 = vunpack.c.l.b16 %v736
    %v2792 = vunpack.c.l.b16 %v737
    %v2793 = vunpack.c.l.b16 %v738
    %v2794 = vunpack.c.l.b16 %v739
    %v2795 = vunpack.c.l.b16 %v740
    %v2796 = vunpack.c.l.b16 %v741
    %v2797 = vunpack.c.l.b16 %v742
    %v2798 = vunpack.c.l.b16 %v743
    %v2799 = vunpack.c.l.b16 %v744
    %v2800 = vunpack.c.l.b16 %v745
    %v2801 = vunpack.c.l.b16 %v746
    %v2802 = vunpack.c.l.b16 %v747
    %v2803 = vunpack.c.l.b16 %v748
    %v2804 = vunpack.c.l.b16 %v749
    %v2805 = vunpack.c.l.b16 %v750
    %v2806 = vunpack.c.l.b16 %v751
    %v2807 = vunpack.c.l.b16 %v752
    %v2808 = vunpack.c.l.b16 %v753
    %v2809 = vunpack.c.l.b16 %v754
    %v2810 = vunpack.c.l.b16 %v755
    %v2811 = vunpack.c.l.b16 %v756
    %v2812 = vunpack.c.l.b16 %v757
    %v2813 = vunpack.c.l.b16 %v758
    %v2814 = vunpack.c.l.b16 %v759
    %v2815 = vunpack.c.l.b16 %v760
    %v2816 = vunpack.c.l.b16 %v761
    %v2817 = vunpack.c.l.b16 %v762
    %v2818 = vunpack.c.l.b16 %v763
    %v2819 = vunpack.c.l.b16 %v764
    %v2820 = vunpack.c.l.b16 %v765
    %v2821 = vunpack.c.l.b16 %v766
    %v2822 = vunpack.c.l.b16 %v767
    %v2823 = vunpack.c.l.b16 %v768
    %v2824 = vunpack.c.l.b16 %v769
    %v2825 = vunpack.c.l.b16 %v770
    %v2826 = vunpack.c.l.b16 %v771
    %v2827 = vunpack.c.l.b16 %v772
    %v2828 = vunpack.c.l.b16 %v773
    %v2829 = vunpack.c.l.b16 %v774
    %v2830 = vunpack.c.l.b16 %v775
    %v2831 = vunpack.c.l.b16 %v776
    %v2832 = vunpack.c.l.b16 %v777
    %v2833 = vunpack.c.l.b16 %v778
    %v2834 = vunpack.c.l.b16 %v779
    %v2835 = vunpack.c.l.b16 %v780
    %v2836 = vunpack.c.l.b16 %v781
    %v2837 = vunpack.c.l.b16 %v782
    %v2838 = vunpack.c.l.b16 %v783
    %v2839 = vunpack.c.l.b16 %v784
    %v2840 = vunpack.c.l.b16 %v785
    %v2841 = vunpack.c.l.b16 %v786
    %v2842 = vunpack.c.l.b16 %v787
    %v2843 = vunpack.c.l.b16 %v788
    %v2844 = vunpack.c.l.b16 %v789
    %v2845 = vunpack.c.l.b16 %v790
    %v2846 = vunpack.c.l.b16 %v791
    %v2847 = vunpack.c.l.b16 %v792
    %v2848 = vunpack.c.l.b16 %v793
    %v2849 = vunpack.c.l.b16 %v794
    %v2850 = vunpack.c.l.b16 %v795
    %v2851 = vunpack.c.l.b16 %v796
    %v2852 = vunpack.c.l.b16 %v797
    %v2853 = vunpack.c.l.b16 %v798
    %v2854 = vunpack.c.l.b16 %v799
    %v2855 = vunpack.c.l.b16 %v800
    %v2856 = vunpack.c.l.b16 %v801
    %v2857 = vunpack.c.l.b16 %v802
    %v2858 = vunpack.c.l.b16 %v803
    %v2859 = vunpack.c.l.b16 %v804
    %v2860 = vunpack.c.l.b16 %v805
    %v2861 = vunpack.c.l.b16 %v806
    %v2862 = vunpack.c.l.b16 %v807
    %v2863 = vunpack.c.l.b16 %v808
    %v2864 = vunpack.c.l.b16 %v809
    %v2865 = vunpack.c.l.b16 %v810
    %v2866 = vunpack.c.l.b16 %v811
    %v2867 = vunpack.c.l.b16 %v812
    %v2868 = vunpack.c.l.b16 %v813
    %v2869 = vunpack.c.l.b16 %v814
    %v2870 = vunpack.c.l.b16 %v815
    %v2871 = vunpack.c.l.b16 %v816
    %v2872 = vunpack.c.l.b16 %v817
    %v2873 = vunpack.c.l.b16 %v818
    %v2874 = vunpack.c.l.b16 %v819
    %v2875 = vunpack.c.l.b16 %v820
    %v2876 = vunpack.c.l.b16 %v821
    %v2877 = vunpack.c.l.b16 %v822
    %v2878 = vunpack.c.l.b16 %v823
    %v2879 = vunpack.c.l.b16 %v824
    %v2880 = vunpack.c.l.b16 %v825
    %v2881 = vunpack.c.l.b16 %v826
    %v2882 = vunpack.c.l.b16 %v827
    %v2883 = vunpack.c.l.b16 %v828
    %v2884 = vunpack.c.l.b16 %v829
    %v2885 = vunpack.c.l.b16 %v830
    %v2886 = vunpack.c.l.b16 %v831
    %v2887 = vunpack.c.l.b16 %v832
    %v2888 = vunpack.c.l.b16 %v833
    %v2889 = vunpack.c.l.b16 %v834
    %v2890 = vunpack.c.l.b16 %v835
    %v2891 = vunpack.c.l.b16 %v836
    %v2892 = vunpack.c.l.b16 %v837
    %v2893 = vunpack.c.l.b16 %v838
    %v2894 = vunpack.c.l.b16 %v839
    %v2895 = vunpack.c.l.b16 %v840
    %v2896 = vunpack.c.l.b16 %v841
    %v2897 = vunpack.c.l.b16 %v842
    %v2898 = vunpack.c.l.b16 %v843
    %v2899 = vunpack.c.l.b16 %v844
    %v2900 = vunpack.c.l.b16 %v845
    %v2901 = vunpack.c.l.b16 %v846
    %v2902 = vunpack.c.l.b16 %v847
    %v2903 = vunpack.c.l.b16 %v848
    %v2904 = vunpack.c.l.b16 %v849
    %v2905 = vunpack.c.l.b16 %v850
    %v2906 = vunpack.c.l.b16 %v851
    %v2907 = vunpack.c.l.b16 %v852
    %v2908 = vunpack.c.l.b16 %v853
    %v2909 = vunpack.c.l.b16 %v854
    %v2910 = vunpack.c.l.b16 %v855
    %v2911 = vunpack.c.l.b16 %v856
    %v2912 = vunpack.c.l.b16 %v857
    %v2913 = vunpack.c.l.b16 %v858
    %v2914 = vunpack.c.l.b16 %v859
    %v2915 = vunpack.c.l.b16 %v860
    %v2916 = vunpack.c.l.b16 %v861
    %v2917 = vunpack.c.l.b16 %v862
    %v2918 = vunpack.c.l.b16 %v863
    %v2919 = vunpack.c.l.b16 %v864
    %v2920 = vunpack.c.l.b16 %v865
    %v2921 = vunpack.c.l.b16 %v866
    %v2922 = vunpack.c.l.b16 %v867
    %v2923 = vunpack.c.l.b16 %v868
    %v2924 = vunpack.c.l.b16 %v869
    %v2925 = vunpack.c.l.b16 %v870
    %v2926 = vunpack.c.l.b16 %v871
    %v2927 = vunpack.c.l.b16 %v872
    %v2928 = vunpack.c.l.b16 %v873
    %v2929 = vunpack.c.l.b16 %v874
    %v2930 = vunpack.c.l.b16 %v875
    %v2931 = vunpack.c.l.b16 %v876
    %v2932 = vunpack.c.l.b16 %v877
    %v2933 = vunpack.c.l.b16 %v878
    %v2934 = vunpack.c.l.b16 %v879
    %v2935 = vunpack.c.l.b16 %v880
    %v2936 = vunpack.c.l.b16 %v881
    %v2937 = vunpack.c.l.b16 %v882
    %v2938 = vunpack.c.l.b16 %v883
    %v2939 = vunpack.c.l.b16 %v884
    %v2940 = vunpack.c.l.b16 %v885
    %v2941 = vunpack.c.l.b16 %v886
    %v2942 = vunpack.c.l.b16 %v887
    %v2943 = vunpack.c.l.b16 %v888
    %v2944 = vunpack.c.l.b16 %v889
    %v2945 = vunpack.c.l.b16 %v890
    %v2946 = vunpack.c.l.b16 %v891
    %v2947 = vunpack.c.l.b16 %v892
    %v2948 = vunpack.c.l.b16 %v893
    %v2949 = vunpack.c.l.b16 %v894
    %v2950 = vunpack.c.l.b16 %v895
    %v2951 = vunpack.c.l.b16 %v896
    %v2952 = vunpack.c.l.b16 %v897
    %v2953 = vunpack.c.l.b16 %v898
    %v2954 = vunpack.c.l.b16 %v899
    %v2955 = vunpack.c.l.b16 %v900
    %v2956 = vunpack.c.l.b16 %v901
    %v2957 = vunpack.c.l.b16 %v902
    %v2958 = vunpack.c.l.b16 %v903
    %v2959 = vunpack.c.l.b16 %v904
    %v2960 = vunpack.c.l.b16 %v905
    %v2961 = vunpack.c.l.b16 %v906
    %v2962 = vunpack.c.l.b16 %v907
    %v2963 = vunpack.c.l.b16 %v908
    %v2964 = vunpack.c.l.b16 %v909
    %v2965 = vunpack.c.l.b16 %v910
    %v2966 = vunpack.c.l.b16 %v911
    %v2967 = vunpack.c.l.b16 %v912
    %v2968 = vunpack.c.l.b16 %v913
    %v2969 = vunpack.c.l.b16 %v914
    %v2970 = vunpack.c.l.b16 %v915
    %v2971 = vunpack.c.l.b16 %v916
    %v2972 = vunpack.c.l.b16 %v917
    %v2973 = vunpack.c.l.b16 %v918
    %v2974 = vunpack.c.l.b16 %v919
    %v2975 = vunpack.c.l.b16 %v920
    %v2976 = vunpack.c.l.b16 %v921
    %v2977 = vunpack.c.l.b16 %v922
    %v2978 = vunpack.c.l.b16 %v923
    %v2979 = vunpack.c.l.b16 %v924
    %v2980 = vunpack.c.l.b16 %v925
    %v2981 = vunpack.c.l.b16 %v926
    %v2982 = vunpack.c.l.b16 %v927
    %v2983 = vunpack.c.l.b16 %v928
    %v2984 = vunpack.c.l.b16 %v929
    %v2985 = vunpack.c.l.b16 %v930
    %v2986 = vunpack.c.l.b16 %v931
    %v2987 = vunpack.c.l.b16 %v932
    %v2988 = vunpack.c.l.b16 %v933
    %v2989 = vunpack.c.l.b16 %v934
    %v2990 = vunpack.c.l.b16 %v935
    %v2991 = vunpack.c.l.b16 %v936
    %v2992 = vunpack.c.l.b16 %v937
    %v2993 = vunpack.c.l.b16 %v938
    %v2994 = vunpack.c.l.b16 %v939
    %v2995 = vunpack.c.l.b16 %v940
    %v2996 = vunpack.c.l.b16 %v941
    %v2997 = vunpack.c.l.b16 %v942
    %v2998 = vunpack.c.l.b16 %v943
    %v2999 = vunpack.c.l.b16 %v944
    %v3000 = vunpack.c.l.b16 %v945
    %v3001 = vunpack.c.l.b16 %v946
    %v3002 = vunpack.c.l.b16 %v947
    %v3003 = vunpack.c.l.b16 %v948
    %v3004 = vunpack.c.l.b16 %v949
    %v3005 = vunpack.c.l.b16 %v950
    %v3006 = vunpack.c.l.b16 %v951
    %v3007 = vunpack.c.l.b16 %v952
    %v3008 = vunpack.c.l.b16 %v953
    %v3009 = vunpack.c.l.b16 %v954
    %v3010 = vunpack.c.l.b16 %v955
    %v3011 = vunpack.c.l.b16 %v956
    %v3012 = vunpack.c.l.b16 %v957
    %v3013 = vunpack.c.l.b16 %v958
    %v3014 = vunpack.c.l.b16 %v959
    %v3015 = vunpack.c.l.b16 %v960
    %v3016 = vunpack.c.l.b16 %v961
    %v3017 = vunpack.c.l.b16 %v962
    %v3018 = vunpack.c.l.b16 %v963
    %v3019 = vunpack.c.l.b16 %v964
    %v3020 = vunpack.c.l.b16 %v965
    %v3021 = vunpack.c.l.b16 %v966
    %v3022 = vunpack.c.l.b16 %v967
    %v3023 = vunpack.c.l.b16 %v968
    %v3024 = vunpack.c.l.b16 %v969
    %v3025 = vunpack.c.l.b16 %v970
    %v3026 = vunpack.c.l.b16 %v971
    %v3027 = vunpack.c.l.b16 %v972
    %v3028 = vunpack.c.l.b16 %v973
    %v3029 = vunpack.c.l.b16 %v974
    %v3030 = vunpack.c.l.b16 %v975
    %v3031 = vunpack.c.l.b16 %v976
    %v3032 = vunpack.c.l.b16 %v977
    %v3033 = vunpack.c.l.b16 %v978
    %v3034 = vunpack.c.l.b16 %v979
    %v3035 = vunpack.c.l.b16 %v980
    %v3036 = vunpack.c.l.b16 %v981
    %v3037 = vunpack.c.l.b16 %v982
    %v3038 = vunpack.c.l.b16 %v983
    %v3039 = vunpack.c.l.b16 %v984
    %v3040 = vunpack.c.l.b16 %v985
    %v3041 = vunpack.c.l.b16 %v986
    %v3042 = vunpack.c.l.b16 %v987
    %v3043 = vunpack.c.l.b16 %v988
    %v3044 = vunpack.c.l.b16 %v989
    %v3045 = vunpack.c.l.b16 %v990
    %v3046 = vunpack.c.l.b16 %v991
    %v3047 = vunpack.c.l.b16 %v992
    %v3048 = vunpack.c.l.b16 %v993
    %v3049 = vunpack.c.l.b16 %v994
    %v3050 = vunpack.c.l.b16 %v995
    %v3051 = vunpack.c.l.b16 %v996
    %v3052 = vunpack.c.l.b16 %v997
    %v3053 = vunpack.c.l.b16 %v998
    %v3054 = vunpack.c.l.b16 %v999
    %v3055 = vunpack.c.l.b16 %v1000
    %v3056 = vunpack.c.l.b16 %v1001
    %v3057 = vunpack.c.l.b16 %v1002
    %v3058 = vunpack.c.l.b16 %v1003
    %v3059 = vunpack.c.l.b16 %v1004
    %v3060 = vunpack.c.l.b16 %v1005
    %v3061 = vunpack.c.l.b16 %v1006
    %v3062 = vunpack.c.l.b16 %v1007
    %v3063 = vunpack.c.l.b16 %v1008
    %v3064 = vunpack.c.l.b16 %v1009
    %v3065 = vunpack.c.l.b16 %v1010
    %v3066 = vunpack.c.l.b16 %v1011
    %v3067 = vunpack.c.l.b16 %v1012
    %v3068 = vunpack.c.l.b16 %v1013
    %v3069 = vunpack.c.l.b16 %v1014
    %v3070 = vunpack.c.l.b16 %v1015
    %v3071 = vunpack.c.l.b16 %v1016
    %v3072 = vunpack.c.l.b16 %v1017
    %v3073 = vunpack.c.l.b16 %v1018
    %v3074 = vunpack.c.l.b16 %v1019
    %v3075 = vunpack.c.l.b16 %v1020
    %v3076 = vunpack.c.l.b16 %v1021
    %v3077 = vunpack.c.l.b16 %v1022
    %v3078 = vunpack.c.l.b16 %v1023
    %v3079 = vunpack.c.l.b16 %v1024
    %v3080 = vunpack.c.l.b16 %v1025
    %v3081 = vunpack.c.l.b16 %v1026
    %v3082 = vunpack.c.l.b16 %v1027
    %v3083 = vunpack.c.l.b16 %v1028
    %v3084 = vunpack.c.l.b16 %v1029
    %v3085 = vunpack.c.l.b16 %v1030
    %v3086 = vunpack.c.l.b16 %v1031
    %v3087 = vunpack.c.l.b16 %v1032
    %v3088 = vunpack.c.l.b16 %v1033
    %v3089 = vunpack.c.l.b16 %v1034
    %v3090 = vunpack.c.l.b16 %v1035
    %v3091 = vunpack.c.l.b16 %v1036
    %v3092 = vunpack.c.l.b16 %v1037
    %v3093 = vunpack.c.l.b16 %v1038
    %v3094 = vunpack.c.l.b16 %v1039
    %v3095 = vunpack.c.l.b16 %v1040
    %v3096 = vunpack.c.l.b16 %v1041
    %v3097 = vunpack.c.l.b16 %v1042
    %v3098 = vunpack.c.l.b16 %v1043
    %v3099 = vunpack.c.l.b16 %v1044
    %v3100 = vunpack.c.l.b16 %v1045
    %v3101 = vunpack.c.l.b16 %v1046
    %v3102 = vunpack.c.l.b16 %v1047
    %v3103 = vunpack.c.l.b16 %v1048
    %v3104 = vunpack.c.l.b16 %v1049
    %v3105 = vunpack.c.l.b16 %v1050
    %v3106 = vunpack.c.l.b16 %v1051
    %v3107 = vunpack.c.l.b16 %v1052
    %v3108 = vunpack.c.l.b16 %v1053
    %v3109 = vunpack.c.l.b16 %v1054
    %v3110 = vunpack.c.l.b16 %v1055
    %v3111 = vunpack.c.l.b16 %v1056
    %v3112 = vunpack.c.l.b16 %v1057
    %v3113 = vunpack.c.l.b16 %v1058
    %v3114 = vunpack.c.l.b16 %v1059
    %v3115 = vunpack.c.l.b16 %v1060
    %v3116 = vunpack.c.l.b16 %v1061
    %v3117 = vunpack.c.l.b16 %v1062
    %v3118 = vunpack.c.l.b16 %v1063
    %v3119 = vunpack.c.l.b16 %v1064
    %v3120 = vunpack.c.l.b16 %v1065
    %v3121 = vunpack.c.l.b16 %v1066
    %v3122 = vunpack.c.l.b16 %v1067
    %v3123 = vunpack.c.l.b16 %v1068
    %v3124 = vunpack.c.l.b16 %v1069
    %v3125 = vunpack.c.l.b16 %v1070
    %v3126 = vunpack.c.l.b16 %v1071
    %v3127 = vunpack.c.l.b16 %v1072
    %v3128 = vunpack.c.l.b16 %v1073
    %v3129 = vunpack.c.l.b16 %v1074
    %v3130 = vunpack.c.l.b16 %v1075
    %v3131 = vunpack.c.l.b16 %v1076
    %v3132 = vunpack.c.l.b16 %v1077
    %v3133 = vunpack.c.l.b16 %v1078
    %v3134 = vunpack.c.l.b16 %v1079
    %v3135 = vunpack.c.l.b16 %v1080
    %v3136 = vunpack.c.l.b16 %v1081
    %v3137 = vunpack.c.l.b16 %v1082
    %v3138 = vunpack.c.l.b16 %v1083
    %v3139 = vunpack.c.l.b16 %v1084
    %v3140 = vunpack.c.l.b16 %v1085
    %v3141 = vunpack.c.l.b16 %v1086
    %v3142 = vunpack.c.l.b16 %v1087
    %v3143 = vunpack.c.l.b16 %v1088
    %v3144 = vunpack.c.l.b16 %v1089
    %v3145 = vunpack.c.l.b16 %v1090
    %v3146 = vunpack.c.l.b16 %v1091
    %v3147 = vunpack.c.l.b16 %v1092
    %v3148 = vunpack.c.l.b16 %v1093
    %v3149 = vunpack.c.l.b16 %v1094
    %v3150 = vunpack.c.l.b16 %v1095
    %v3151 = vunpack.c.l.b16 %v1096
    %v3152 = vunpack.c.l.b16 %v1097
    %v3153 = vunpack.c.l.b16 %v1098
    %v3154 = vunpack.c.l.b16 %v1099
    %v3155 = vunpack.c.l.b16 %v1100
    %v3156 = vunpack.c.l.b16 %v1101
    %v3157 = vunpack.c.l.b16 %v1102
    %v3158 = vunpack.c.l.b16 %v1103
    %v3159 = vunpack.c.l.b16 %v1104
    %v3160 = vunpack.c.l.b16 %v1105
    %v3161 = vunpack.c.l.b16 %v1106
    %v3162 = vunpack.c.l.b16 %v1107
    %v3163 = vunpack.c.l.b16 %v1108
    %v3164 = vunpack.c.l.b16 %v1109
    %v3165 = vunpack.c.l.b16 %v1110
    %v3166 = vunpack.c.l.b16 %v1111
    %v3167 = vunpack.c.l.b16 %v1112
    %v3168 = vunpack.c.l.b16 %v1113
    %v3169 = vunpack.c.l.b16 %v1114
    %v3170 = vunpack.c.l.b16 %v1115
    %v3171 = vunpack.c.l.b16 %v1116
    %v3172 = vunpack.c.l.b16 %v1117
    %v3173 = vunpack.c.l.b16 %v1118
    %v3174 = vunpack.c.l.b16 %v1119
    %v3175 = vunpack.c.l.b16 %v1120
    %v3176 = vunpack.c.l.b16 %v1121
    %v3177 = vunpack.c.l.b16 %v1122
    %v3178 = vunpack.c.l.b16 %v1123
    %v3179 = vunpack.c.l.b16 %v1124
    %v3180 = vunpack.c.l.b16 %v1125
    %v3181 = vunpack.c.l.b16 %v1126
    %v3182 = vunpack.c.l.b16 %v1127
    %v3183 = vunpack.c.l.b16 %v1128
    %v3184 = vunpack.c.l.b16 %v1129
    %v3185 = vunpack.c.l.b16 %v1130
    %v3186 = vunpack.c.l.b16 %v1131
    %v3187 = vunpack.c.l.b16 %v1132
    %v3188 = vunpack.c.l.b16 %v1133
    %v3189 = vunpack.c.l.b16 %v1134
    %v3190 = vunpack.c.l.b16 %v1135
    %v3191 = vunpack.c.l.b16 %v1136
    %v3192 = vunpack.c.l.b16 %v1137
    %v3193 = vunpack.c.l.b16 %v1138
    %v3194 = vunpack.c.l.b16 %v1139
    %v3195 = vunpack.c.l.b16 %v1140
    %v3196 = vunpack.c.l.b16 %v1141
    %v3197 = vunpack.c.l.b16 %v1142
    %v3198 = vunpack.c.l.b16 %v1143
    %v3199 = vunpack.c.l.b16 %v1144
    %v3200 = vunpack.c.l.b16 %v1145
    %v3201 = vunpack.c.l.b16 %v1146
    %v3202 = vunpack.c.l.b16 %v1147
    %v3203 = vunpack.c.l.b16 %v1148
    %v3204 = vunpack.c.l.b16 %v1149
    %v3205 = vunpack.c.l.b16 %v1150
    %v3206 = vunpack.c.l.b16 %v1151
    %v3207 = vunpack.c.l.b16 %v1152
    %v3208 = vunpack.c.l.b16 %v1153
    %v3209 = vunpack.c.l.b16 %v1154
    %v3210 = vunpack.c.l.b16 %v1155
    %v3211 = vunpack.c.l.b16 %v1156
    %v3212 = vunpack.c.l.b16 %v1157
    %v3213 = vunpack.c.l.b16 %v1158
    %v3214 = vunpack.c.l.b16 %v1159
    %v3215 = vunpack.c.l.b16 %v1160
    %v3216 = vunpack.c.l.b16 %v1161
    %v3217 = vunpack.c.l.b16 %v1162
    %v3218 = vunpack.c.l.b16 %v1163
    %v3219 = vunpack.c.l.b16 %v1164
    %v3220 = vunpack.c.l.b16 %v1165
    %v3221 = vunpack.c.l.b16 %v1166
    %v3222 = vunpack.c.l.b16 %v1167
    %v3223 = vunpack.c.l.b16 %v1168
    %v3224 = vunpack.c.l.b16 %v1169
    %v3225 = vunpack.c.l.b16 %v1170
    %v3226 = vunpack.c.l.b16 %v1171
    %v3227 = vunpack.c.l.b16 %v1172
    %v3228 = vunpack.c.l.b16 %v1173
    %v3229 = vunpack.c.l.b16 %v1174
    %v3230 = vunpack.c.l.b16 %v1175
    %v3231 = vunpack.c.l.b16 %v1176
    %v3232 = vunpack.c.l.b16 %v1177
    %v3233 = vunpack.c.l.b16 %v1178
    %v3234 = vunpack.c.l.b16 %v1179
    %v3235 = vunpack.c.l.b16 %v1180
    %v3236 = vunpack.c.l.b16 %v1181
    %v3237 = vunpack.c.l.b16 %v1182
    %v3238 = vunpack.c.l.b16 %v1183
    %v3239 = vunpack.c.l.b16 %v1184
    %v3240 = vunpack.c.l.b16 %v1185
    %v3241 = vunpack.c.l.b16 %v1186
    %v3242 = vunpack.c.l.b16 %v1187
    %v3243 = vunpack.c.l.b16 %v1188
    %v3244 = vunpack.c.l.b16 %v1189
    %v3245 = vunpack.c.l.b16 %v1190
    %v3246 = vunpack.c.l.b16 %v1191
    %v3247 = vunpack.c.l.b16 %v1192
    %v3248 = vunpack.c.l.b16 %v1193
    %v3249 = vunpack.c.l.b16 %v1194
    %v3250 = vunpack.c.l.b16 %v1195
    %v3251 = vunpack.c.l.b16 %v1196
    %v3252 = vunpack.c.l.b16 %v1197
    %v3253 = vunpack.c.l.b16 %v1198
    %v3254 = vunpack.c.l.b16 %v1199
    %v3255 = vunpack.c.l.b16 %v1200
    %v3256 = vunpack.c.l.b16 %v1201
    %v3257 = vunpack.c.l.b16 %v1202
    %v3258 = vunpack.c.l.b16 %v1203
    %v3259 = vunpack.c.l.b16 %v1204
    %v3260 = vunpack.c.l.b16 %v1205
    %v3261 = vunpack.c.l.b16 %v1206
    %v3262 = vunpack.c.l.b16 %v1207
    %v3263 = vunpack.c.l.b16 %v1208
    %v3264 = vunpack.c.l.b16 %v1209
    %v3265 = vunpack.c.l.b16 %v1210
    %v3266 = vunpack.c.l.b16 %v1211
    %v3267 = vunpack.c.l.b16 %v1212
    %v3268 = vunpack.c.l.b16 %v1213
    %v3269 = vunpack.c.l.b16 %v1214
    %v3270 = vunpack.c.l.b16 %v1215
    %v3271 = vunpack.c.l.b16 %v1216
    %v3272 = vunpack.c.l.b16 %v1217
    %v3273 = vunpack.c.l.b16 %v1218
    %v3274 = vunpack.c.l.b16 %v1219
    %v3275 = vunpack.c.l.b16 %v1220
    %v3276 = vunpack.c.l.b16 %v1221
    %v3277 = vunpack.c.l.b16 %v1222
    %v3278 = vunpack.c.l.b16 %v1223
    %v3279 = vunpack.c.l.b16 %v1224
    %v3280 = vunpack.c.l.b16 %v1225
    %v3281 = vunpack.c.l.b16 %v1226
    %v3282 = vunpack.c.l.b16 %v1227
    %v3283 = vunpack.c.l.b16 %v1228
    %v3284 = vunpack.c.l.b16 %v1229
    %v3285 = vunpack.c.l.b16 %v1230
    %v3286 = vunpack.c.l.b16 %v1231
    %v3287 = vunpack.c.l.b16 %v1232
    %v3288 = vunpack.c.l.b16 %v1233
    %v3289 = vunpack.c.l.b16 %v1234
    %v3290 = vunpack.c.l.b16 %v1235
    %v3291 = vunpack.c.l.b16 %v1236
    %v3292 = vunpack.c.l.b16 %v1237
    %v3293 = vunpack.c.l.b16 %v1238
    %v3294 = vunpack.c.l.b16 %v1239
    %v3295 = vunpack.c.l.b16 %v1240
    %v3296 = vunpack.c.l.b16 %v1241
    %v3297 = vunpack.c.l.b16 %v1242
    %v3298 = vunpack.c.l.b16 %v1243
    %v3299 = vunpack.c.l.b16 %v1244
    %v3300 = vunpack.c.l.b16 %v1245
    %v3301 = vunpack.c.l.b16 %v1246
    %v3302 = vunpack.c.l.b16 %v1247
    %v3303 = vunpack.c.l.b16 %v1248
    %v3304 = vunpack.c.l.b16 %v1249
    %v3305 = vunpack.c.l.b16 %v1250
    %v3306 = vunpack.c.l.b16 %v1251
    %v3307 = vunpack.c.l.b16 %v1252
    %v3308 = vunpack.c.l.b16 %v1253
    %v3309 = vunpack.c.l.b16 %v1254
    %v3310 = vunpack.c.l.b16 %v1255
    %v3311 = vunpack.c.l.b16 %v1256
    %v3312 = vunpack.c.l.b16 %v1257
    %v3313 = vunpack.c.l.b16 %v1258
    %v3314 = vunpack.c.l.b16 %v1259
    %v3315 = vunpack.c.l.b16 %v1260
    %v3316 = vunpack.c.l.b16 %v1261
    %v3317 = vunpack.c.l.b16 %v1262
    %v3318 = vunpack.c.l.b16 %v1263
    %v3319 = vunpack.c.l.b16 %v1264
    %v3320 = vunpack.c.l.b16 %v1265
    %v3321 = vunpack.c.l.b16 %v1266
    %v3322 = vunpack.c.l.b16 %v1267
    %v3323 = vunpack.c.l.b16 %v1268
    %v3324 = vunpack.c.l.b16 %v1269
    %v3325 = vunpack.c.l.b16 %v1270
    %v3326 = vunpack.c.l.b16 %v1271
    %v3327 = vunpack.c.l.b16 %v1272
    %v3328 = vunpack.c.l.b16 %v1273
    %v3329 = vunpack.c.l.b16 %v1274
    %v3330 = vunpack.c.l.b16 %v1275
    %v3331 = vunpack.c.l.b16 %v1276
    %v3332 = vunpack.c.l.b16 %v1277
    %v3333 = vunpack.c.l.b16 %v1278
    %v3334 = vunpack.c.l.b16 %v1279
    %v3335 = vunpack.c.l.b16 %v1280
    %v3336 = vunpack.c.l.b16 %v1281
    %v3337 = vunpack.c.l.b16 %v1282
    %v3338 = vunpack.c.l.b16 %v1283
    %v3339 = vunpack.c.l.b16 %v1284
    %v3340 = vunpack.c.l.b16 %v1285
    %v3341 = vunpack.c.l.b16 %v1286
    %v3342 = vunpack.c.l.b16 %v1287
    %v3343 = vunpack.c.l.b16 %v1288
    %v3344 = vunpack.c.l.b16 %v1289
    %v3345 = vunpack.c.l.b16 %v1290
    %v3346 = vunpack.c.l.b16 %v1291
    %v3347 = vunpack.c.l.b16 %v1292
    %v3348 = vunpack.c.l.b16 %v1293
    %v3349 = vunpack.c.l.b16 %v1294
    %v3350 = vunpack.c.l.b16 %v1295
    %v3351 = vunpack.c.l.b16 %v1296
    %v3352 = vunpack.c.l.b16 %v1297
    %v3353 = vunpack.c.l.b16 %v1298
    %v3354 = vunpack.c.l.b16 %v1299
    %v3355 = vunpack.c.l.b16 %v1300
    %v3356 = vunpack.c.l.b16 %v1301
    %v3357 = vunpack.c.l.b16 %v1302
    %v3358 = vunpack.c.l.b16 %v1303
    %v3359 = vunpack.c.l.b16 %v1304
    %v3360 = vunpack.c.l.b16 %v1305
    %v3361 = vunpack.c.l.b16 %v1306
    %v3362 = vunpack.c.l.b16 %v1307
    %v3363 = vunpack.c.l.b16 %v1308
    %v3364 = vunpack.c.l.b16 %v1309
    %v3365 = vunpack.c.l.b16 %v1310
    %v3366 = vunpack.c.l.b16 %v1311
    %v3367 = vunpack.c.l.b16 %v1312
    %v3368 = vunpack.c.l.b16 %v1313
    %v3369 = vunpack.c.l.b16 %v1314
    %v3370 = vunpack.c.l.b16 %v1315
    %v3371 = vunpack.c.l.b16 %v1316
    %v3372 = vunpack.c.l.b16 %v1317
    %v3373 = vunpack.c.l.b16 %v1318
    %v3374 = vunpack.c.l.b16 %v1319
    %v3375 = vunpack.c.l.b16 %v1320
    %v3376 = vunpack.c.l.b16 %v1321
    %v3377 = vunpack.c.l.b16 %v1322
    %v3378 = vunpack.c.l.b16 %v1323
    %v3379 = vunpack.c.l.b16 %v1324
    %v3380 = vunpack.c.l.b16 %v1325
    %v3381 = vunpack.c.l.b16 %v1326
    %v3382 = vunpack.c.l.b16 %v1327
    %v3383 = vunpack.c.l.b16 %v1328
    %v3384 = vunpack.c.l.b16 %v1329
    %v3385 = vunpack.c.l.b16 %v1330
    %v3386 = vunpack.c.l.b16 %v1331
    %v3387 = vunpack.c.l.b16 %v1332
    %v3388 = vunpack.c.l.b16 %v1333
    %v3389 = vunpack.c.l.b16 %v1334
    %v3390 = vunpack.c.l.b16 %v1335
    %v3391 = vunpack.c.l.b16 %v1336
    %v3392 = vunpack.c.l.b16 %v1337
    %v3393 = vunpack.c.l.b16 %v1338
    %v3394 = vunpack.c.l.b16 %v1339
    %v3395 = vunpack.c.l.b16 %v1340
    %v3396 = vunpack.c.l.b16 %v1341
    %v3397 = vunpack.c.l.b16 %v1342
    %v3398 = vunpack.c.l.b16 %v1343
    %v3399 = vunpack.c.l.b16 %v1344
    %v3400 = vunpack.c.l.b16 %v1345
    %v3401 = vunpack.c.l.b16 %v1346
    %v3402 = vunpack.c.l.b16 %v1347
    %v3403 = vunpack.c.l.b16 %v1348
    %v3404 = vunpack.c.l.b16 %v1349
    %v3405 = vunpack.c.l.b16 %v1350
    %v3406 = vunpack.c.l.b16 %v1351
    %v3407 = vunpack.c.l.b16 %v1352
    %v3408 = vunpack.c.l.b16 %v1353
    %v3409 = vunpack.c.l.b16 %v1354
    %v3410 = vunpack.c.l.b16 %v1355
    %v3411 = vunpack.c.l.b16 %v1356
    %v3412 = vunpack.c.l.b16 %v1357
    %v3413 = vunpack.c.l.b16 %v1358
    %v3414 = vunpack.c.l.b16 %v1359
    %v3415 = vunpack.c.l.b16 %v1360
    %v3416 = vunpack.c.l.b16 %v1361
    %v3417 = vunpack.c.l.b16 %v1362
    %v3418 = vunpack.c.l.b16 %v1363
    %v3419 = vunpack.c.l.b16 %v1364
    %v3420 = vunpack.c.l.b16 %v1365
    %v3421 = vunpack.c.l.b16 %v1366
    %v3422 = vunpack.c.l.b16 %v1367
    %v3423 = vunpack.c.l.b16 %v1368
    %v3424 = vunpack.c.l.b16 %v1369
    %v3425 = vunpack.c.l.b16 %v1370
    %v3426 = vunpack.c.l.b16 %v1371
    %v3427 = vunpack.c.l.b16 %v1372
    %v3428 = vunpack.c.l.b16 %v1373
    %v3429 = vunpack.c.l.b16 %v1374
    %v3430 = vunpack.c.l.b16 %v1375
    %v3431 = vunpack.c.l.b16 %v1376
    %v3432 = vunpack.c.l.b16 %v1377
    %v3433 = vunpack.c.l.b16 %v1378
    %v3434 = vunpack.c.l.b16 %v1379
    %v3435 = vunpack.c.l.b16 %v1380
    %v3436 = vunpack.c.l.b16 %v1381
    %v3437 = vunpack.c.l.b16 %v1382
    %v3438 = vunpack.c.l.b16 %v1383
    %v3439 = vunpack.c.l.b16 %v1384
    %v3440 = vunpack.c.l.b16 %v1385
    %v3441 = vunpack.c.l.b16 %v1386
    %v3442 = vunpack.c.l.b16 %v1387
    %v3443 = vunpack.c.l.b16 %v1388
    %v3444 = vunpack.c.l.b16 %v1389
    %v3445 = vunpack.c.l.b16 %v1390
    %v3446 = vunpack.c.l.b16 %v1391
    %v3447 = vunpack.c.l.b16 %v1392
    %v3448 = vunpack.c.l.b16 %v1393
    %v3449 = vunpack.c.l.b16 %v1394
    %v3450 = vunpack.c.l.b16 %v1395
    %v3451 = vunpack.c.l.b16 %v1396
    %v3452 = vunpack.c.l.b16 %v1397
    %v3453 = vunpack.c.l.b16 %v1398
    %v3454 = vunpack.c.l.b16 %v1399
    %v3455 = vunpack.c.l.b16 %v1400
    %v3456 = vunpack.c.l.b16 %v1401
    %v3457 = vunpack.c.l.b16 %v1402
    %v3458 = vunpack.c.l.b16 %v1403
    %v3459 = vunpack.c.l.b16 %v1404
    %v3460 = vunpack.c.l.b16 %v1405
    %v3461 = vunpack.c.l.b16 %v1406
    %v3462 = vunpack.c.l.b16 %v1407
    %v3463 = vunpack.c.l.b16 %v1408
    %v3464 = vunpack.c.l.b16 %v1409
    %v3465 = vunpack.c.l.b16 %v1410
    %v3466 = vunpack.c.l.b16 %v1411
    %v3467 = vunpack.c.l.b16 %v1412
    %v3468 = vunpack.c.l.b16 %v1413
    %v3469 = vunpack.c.l.b16 %v1414
    %v3470 = vunpack.c.l.b16 %v1415
    %v3471 = vunpack.c.l.b16 %v1416
    %v3472 = vunpack.c.l.b16 %v1417
    %v3473 = vunpack.c.l.b16 %v1418
    %v3474 = vunpack.c.l.b16 %v1419
    %v3475 = vunpack.c.l.b16 %v1420
    %v3476 = vunpack.c.l.b16 %v1421
    %v3477 = vunpack.c.l.b16 %v1422
    %v3478 = vunpack.c.l.b16 %v1423
    %v3479 = vunpack.c.l.b16 %v1424
    %v3480 = vunpack.c.l.b16 %v1425
    %v3481 = vunpack.c.l.b16 %v1426
    %v3482 = vunpack.c.l.b16 %v1427
    %v3483 = vunpack.c.l.b16 %v1428
    %v3484 = vunpack.c.l.b16 %v1429
    %v3485 = vunpack.c.l.b16 %v1430
    %v3486 = vunpack.c.l.b16 %v1431
    %v3487 = vunpack.c.l.b16 %v1432
    %v3488 = vunpack.c.l.b16 %v1433
    %v3489 = vunpack.c.l.b16 %v1434
    %v3490 = vunpack.c.l.b16 %v1435
    %v3491 = vunpack.c.l.b16 %v1436
    %v3492 = vunpack.c.l.b16 %v1437
    %v3493 = vunpack.c.l.b16 %v1438
    %v3494 = vunpack.c.l.b16 %v1439
    %v3495 = vunpack.c.l.b16 %v1440
    %v3496 = vunpack.c.l.b16 %v1441
    %v3497 = vunpack.c.l.b16 %v1442
    %v3498 = vunpack.c.l.b16 %v1443
    %v3499 = vunpack.c.l.b16 %v1444
    %v3500 = vunpack.c.l.b16 %v1445
    %v3501 = vunpack.c.l.b16 %v1446
    %v3502 = vunpack.c.l.b16 %v1447
    %v3503 = vunpack.c.l.b16 %v1448
    %v3504 = vunpack.c.l.b16 %v1449
    %v3505 = vunpack.c.l.b16 %v1450
    %v3506 = vunpack.c.l.b16 %v1451
    %v3507 = vunpack.c.l.b16 %v1452
    %v3508 = vunpack.c.l.b16 %v1453
    %v3509 = vunpack.c.l.b16 %v1454
    %v3510 = vunpack.c.l.b16 %v1455
    %v3511 = vunpack.c.l.b16 %v1456
    %v3512 = vunpack.c.l.b16 %v1457
    %v3513 = vunpack.c.l.b16 %v1458
    %v3514 = vunpack.c.l.b16 %v1459
    %v3515 = vunpack.c.l.b16 %v1460
    %v3516 = vunpack.c.l.b16 %v1461
    %v3517 = vunpack.c.l.b16 %v1462
    %v3518 = vunpack.c.l.b16 %v1463
    %v3519 = vunpack.c.l.b16 %v1464
    %v3520 = vunpack.c.l.b16 %v1465
    %v3521 = vunpack.c.l.b16 %v1466
    %v3522 = vunpack.c.l.b16 %v1467
    %v3523 = vunpack.c.l.b16 %v1468
    %v3524 = vunpack.c.l.b16 %v1469
    %v3525 = vunpack.c.l.b16 %v1470
    %v3526 = vunpack.c.l.b16 %v1471
    %v3527 = vunpack.c.l.b16 %v1472
    %v3528 = vunpack.c.l.b16 %v1473
    %v3529 = vunpack.c.l.b16 %v1474
    %v3530 = vunpack.c.l.b16 %v1475
    %v3531 = vunpack.c.l.b16 %v1476
    %v3532 = vunpack.c.l.b16 %v1477
    %v3533 = vunpack.c.l.b16 %v1478
    %v3534 = vunpack.c.l.b16 %v1479
    %v3535 = vunpack.c.l.b16 %v1480
    %v3536 = vunpack.c.l.b16 %v1481
    %v3537 = vunpack.c.l.b16 %v1482
    %v3538 = vunpack.c.l.b16 %v1483
    %v3539 = vunpack.c.l.b16 %v1484
    %v3540 = vunpack.c.l.b16 %v1485
    %v3541 = vunpack.c.l.b16 %v1486
    %v3542 = vunpack.c.l.b16 %v1487
    %v3543 = vunpack.c.l.b16 %v1488
    %v3544 = vunpack.c.l.b16 %v1489
    %v3545 = vunpack.c.l.b16 %v1490
    %v3546 = vunpack.c.l.b16 %v1491
    %v3547 = vunpack.c.l.b16 %v1492
    %v3548 = vunpack.c.l.b16 %v1493
    %v3549 = vunpack.c.l.b16 %v1494
    %v3550 = vunpack.c.l.b16 %v1495
    %v3551 = vunpack.c.l.b16 %v1496
    %v3552 = vunpack.c.l.b16 %v1497
    %v3553 = vunpack.c.l.b16 %v1498
    %v3554 = vunpack.c.l.b16 %v1499
    %v3555 = vunpack.c.l.b16 %v1500
    %v3556 = vunpack.c.l.b16 %v1501
    %v3557 = vunpack.c.l.b16 %v1502
    %v3558 = vunpack.c.l.b16 %v1503
    %v3559 = vunpack.c.l.b16 %v1504
    %v3560 = vunpack.c.l.b16 %v1505
    %v3561 = vunpack.c.l.b16 %v1506
    %v3562 = vunpack.c.l.b16 %v1507
    %v3563 = vunpack.c.l.b16 %v1508
    %v3564 = vunpack.c.l.b16 %v1509
    %v3565 = vunpack.c.l.b16 %v1510
    %v3566 = vunpack.c.l.b16 %v1511
    %v3567 = vunpack.c.l.b16 %v1512
    %v3568 = vunpack.c.l.b16 %v1513
    %v3569 = vunpack.c.l.b16 %v1514
    %v3570 = vunpack.c.l.b16 %v1515
    %v3571 = vunpack.c.l.b16 %v1516
    %v3572 = vunpack.c.l.b16 %v1517
    %v3573 = vunpack.c.l.b16 %v1518
    %v3574 = vunpack.c.l.b16 %v1519
    %v3575 = vunpack.c.l.b16 %v1520
    %v3576 = vunpack.c.l.b16 %v1521
    %v3577 = vunpack.c.l.b16 %v1522
    %v3578 = vunpack.c.l.b16 %v1523
    %v3579 = vunpack.c.l.b16 %v1524
    %v3580 = vunpack.c.l.b16 %v1525
    %v3581 = vunpack.c.l.b16 %v1526
    %v3582 = vunpack.c.l.b16 %v1527
    %v3583 = vunpack.c.l.b16 %v1528
    %v3584 = vunpack.c.l.b16 %v1529
    %v3585 = vunpack.c.l.b16 %v1530
    %v3586 = vunpack.c.l.b16 %v1531
    %v3587 = vunpack.c.l.b16 %v1532
    %v3588 = vunpack.c.l.b16 %v1533
    %v3589 = vunpack.c.l.b16 %v1534
    %v3590 = vunpack.c.l.b16 %v1535
    %v3591 = vunpack.c.l.b16 %v1536
    %v3592 = vunpack.c.l.b16 %v1537
    %v3593 = vunpack.c.l.b16 %v1538
    %v3594 = vunpack.c.l.b16 %v1539
    %v3595 = vpack.c.b16 %v2572, %v2571
    %v3596 = vpack.c.b16 %v2574, %v2573
    %v3597 = vpack.c.b16 %v2576, %v2575
    %v3598 = vpack.c.b16 %v2578, %v2577
    %v3599 = vpack.c.b16 %v2580, %v2579
    %v3600 = vpack.c.b16 %v2582, %v2581
    %v3601 = vpack.c.b16 %v2584, %v2583
    %v3602 = vpack.c.b16 %v2586, %v2585
    %v3603 = vpack.c.b16 %v2588, %v2587
    %v3604 = vpack.c.b16 %v2590, %v2589
    %v3605 = vpack.c.b16 %v2592, %v2591
    %v3606 = vpack.c.b16 %v2594, %v2593
    %v3607 = vpack.c.b16 %v2596, %v2595
    %v3608 = vpack.c.b16 %v2598, %v2597
    %v3609 = vpack.c.b16 %v2600, %v2599
    %v3610 = vpack.c.b16 %v2602, %v2601
    %v3611 = vpack.c.b16 %v2604, %v2603
    %v3612 = vpack.c.b16 %v2606, %v2605
    %v3613 = vpack.c.b16 %v2608, %v2607
    %v3614 = vpack.c.b16 %v2610, %v2609
    %v3615 = vpack.c.b16 %v2612, %v2611
    %v3616 = vpack.c.b16 %v2614, %v2613
    %v3617 = vpack.c.b16 %v2616, %v2615
    %v3618 = vpack.c.b16 %v2618, %v2617
    %v3619 = vpack.c.b16 %v2620, %v2619
    %v3620 = vpack.c.b16 %v2622, %v2621
    %v3621 = vpack.c.b16 %v2624, %v2623
    %v3622 = vpack.c.b16 %v2626, %v2625
    %v3623 = vpack.c.b16 %v2628, %v2627
    %v3624 = vpack.c.b16 %v2630, %v2629
    %v3625 = vpack.c.b16 %v2632, %v2631
    %v3626 = vpack.c.b16 %v2634, %v2633
    %v3627 = vpack.c.b16 %v2636, %v2635
    %v3628 = vpack.c.b16 %v2638, %v2637
    %v3629 = vpack.c.b16 %v2640, %v2639
    %v3630 = vpack.c.b16 %v2642, %v2641
    %v3631 = vpack.c.b16 %v2644, %v2643
    %v3632 = vpack.c.b16 %v2646, %v2645
    %v3633 = vpack.c.b16 %v2648, %v2647
    %v3634 = vpack.c.b16 %v2650, %v2649
    %v3635 = vpack.c.b16 %v2652, %v2651
    %v3636 = vpack.c.b16 %v2654, %v2653
    %v3637 = vpack.c.b16 %v2656, %v2655
    %v3638 = vpack.c.b16 %v2658, %v2657
    %v3639 = vpack.c.b16 %v2660, %v2659
    %v3640 = vpack.c.b16 %v2662, %v2661
    %v3641 = vpack.c.b16 %v2664, %v2663
    %v3642 = vpack.c.b16 %v2666, %v2665
    %v3643 = vpack.c.b16 %v2668, %v2667
    %v3644 = vpack.c.b16 %v2670, %v2669
    %v3645 = vpack.c.b16 %v2672, %v2671
    %v3646 = vpack.c.b16 %v2674, %v2673
    %v3647 = vpack.c.b16 %v2676, %v2675
    %v3648 = vpack.c.b16 %v2678, %v2677
    %v3649 = vpack.c.b16 %v2680, %v2679
    %v3650 = vpack.c.b16 %v2682, %v2681
    %v3651 = vpack.c.b16 %v2684, %v2683
    %v3652 = vpack.c.b16 %v2686, %v2685
    %v3653 = vpack.c.b16 %v2688, %v2687
    %v3654 = vpack.c.b16 %v2690, %v2689
    %v3655 = vpack.c.b16 %v2692, %v2691
    %v3656 = vpack.c.b16 %v2694, %v2693
    %v3657 = vpack.c.b16 %v2696, %v2695
    %v3658 = vpack.c.b16 %v2698, %v2697
    %v3659 = vpack.c.b16 %v2700, %v2699
    %v3660 = vpack.c.b16 %v2702, %v2701
    %v3661 = vpack.c.b16 %v2704, %v2703
    %v3662 = vpack.c.b16 %v2706, %v2705
    %v3663 = vpack.c.b16 %v2708, %v2707
    %v3664 = vpack.c.b16 %v2710, %v2709
    %v3665 = vpack.c.b16 %v2712, %v2711
    %v3666 = vpack.c.b16 %v2714, %v2713
    %v3667 = vpack.c.b16 %v2716, %v2715
    %v3668 = vpack.c.b16 %v2718, %v2717
    %v3669 = vpack.c.b16 %v2720, %v2719
    %v3670 = vpack.c.b16 %v2722, %v2721
    %v3671 = vpack.c.b16 %v2724, %v2723
    %v3672 = vpack.c.b16 %v2726, %v2725
    %v3673 = vpack.c.b16 %v2728, %v2727
    %v3674 = vpack.c.b16 %v2730, %v2729
    %v3675 = vpack.c.b16 %v2732, %v2731
    %v3676 = vpack.c.b16 %v2734, %v2733
    %v3677 = vpack.c.b16 %v2736, %v2735
    %v3678 = vpack.c.b16 %v2738, %v2737
    %v3679 = vpack.c.b16 %v2740, %v2739
    %v3680 = vpack.c.b16 %v2742, %v2741
    %v3681 = vpack.c.b16 %v2744, %v2743
    %v3682 = vpack.c.b16 %v2746, %v2745
    %v3683 = vpack.c.b16 %v2748, %v2747
    %v3684 = vpack.c.b16 %v2750, %v2749
    %v3685 = vpack.c.b16 %v2752, %v2751
    %v3686 = vpack.c.b16 %v2754, %v2753
    %v3687 = vpack.c.b16 %v2756, %v2755
    %v3688 = vpack.c.b16 %v2758, %v2757
    %v3689 = vpack.c.b16 %v2760, %v2759
    %v3690 = vpack.c.b16 %v2762, %v2761
    %v3691 = vpack.c.b16 %v2764, %v2763
    %v3692 = vpack.c.b16 %v2766, %v2765
    %v3693 = vpack.c.b16 %v2768, %v2767
    %v3694 = vpack.c.b16 %v2770, %v2769
    %v3695 = vpack.c.b16 %v2772, %v2771
    %v3696 = vpack.c.b16 %v2774, %v2773
    %v3697 = vpack.c.b16 %v2776, %v2775
    %v3698 = vpack.c.b16 %v2778, %v2777
    %v3699 = vpack.c.b16 %v2780, %v2779
    %v3700 = vpack.c.b16 %v2782, %v2781
    %v3701 = vpack.c.b16 %v2784, %v2783
    %v3702 = vpack.c.b16 %v2786, %v2785
    %v3703 = vpack.c.b16 %v2788, %v2787
    %v3704 = vpack.c.b16 %v2790, %v2789
    %v3705 = vpack.c.b16 %v2792, %v2791
    %v3706 = vpack.c.b16 %v2794, %v2793
    %v3707 = vpack.c.b16 %v2796, %v2795
    %v3708 = vpack.c.b16 %v2798, %v2797
    %v3709 = vpack.c.b16 %v2800, %v2799
    %v3710 = vpack.c.b16 %v2802, %v2801
    %v3711 = vpack.c.b16 %v2804, %v2803
    %v3712 = vpack.c.b16 %v2806, %v2805
    %v3713 = vpack.c.b16 %v2808, %v2807
    %v3714 = vpack.c.b16 %v2810, %v2809
    %v3715 = vpack.c.b16 %v2812, %v2811
    %v3716 = vpack.c.b16 %v2814, %v2813
    %v3717 = vpack.c.b16 %v2816, %v2815
    %v3718 = vpack.c.b16 %v2818, %v2817
    %v3719 = vpack.c.b16 %v2820, %v2819
    %v3720 = vpack.c.b16 %v2822, %v2821
    %v3721 = vpack.c.b16 %v2824, %v2823
    %v3722 = vpack.c.b16 %v2826, %v2825
    %v3723 = vpack.c.b16 %v2828, %v2827
    %v3724 = vpack.c.b16 %v2830, %v2829
    %v3725 = vpack.c.b16 %v2832, %v2831
    %v3726 = vpack.c.b16 %v2834, %v2833
    %v3727 = vpack.c.b16 %v2836, %v2835
    %v3728 = vpack.c.b16 %v2838, %v2837
    %v3729 = vpack.c.b16 %v2840, %v2839
    %v3730 = vpack.c.b16 %v2842, %v2841
    %v3731 = vpack.c.b16 %v2844, %v2843
    %v3732 = vpack.c.b16 %v2846, %v2845
    %v3733 = vpack.c.b16 %v2848, %v2847
    %v3734 = vpack.c.b16 %v2850, %v2849
    %v3735 = vpack.c.b16 %v2852, %v2851
    %v3736 = vpack.c.b16 %v2854, %v2853
    %v3737 = vpack.c.b16 %v2856, %v2855
    %v3738 = vpack.c.b16 %v2858, %v2857
    %v3739 = vpack.c.b16 %v2860, %v2859
    %v3740 = vpack.c.b16 %v2862, %v2861
    %v3741 = vpack.c.b16 %v2864, %v2863
    %v3742 = vpack.c.b16 %v2866, %v2865
    %v3743 = vpack.c.b16 %v2868, %v2867
    %v3744 = vpack.c.b16 %v2870, %v2869
    %v3745 = vpack.c.b16 %v2872, %v2871
    %v3746 = vpack.c.b16 %v2874, %v2873
    %v3747 = vpack.c.b16 %v2876, %v2875
    %v3748 = vpack.c.b16 %v2878, %v2877
    %v3749 = vpack.c.b16 %v2880, %v2879
    %v3750 = vpack.c.b16 %v2882, %v2881
    %v3751 = vpack.c.b16 %v2884, %v2883
    %v3752 = vpack.c.b16 %v2886, %v2885
    %v3753 = vpack.c.b16 %v2888, %v2887
    %v3754 = vpack.c.b16 %v2890, %v2889
    %v3755 = vpack.c.b16 %v2892, %v2891
    %v3756 = vpack.c.b16 %v2894, %v2893
    %v3757 = vpack.c.b16 %v2896, %v2895
    %v3758 = vpack.c.b16 %v2898, %v2897
    %v3759 = vpack.c.b16 %v2900, %v2899
    %v3760 = vpack.c.b16 %v2902, %v2901
    %v3761 = vpack.c.b16 %v2904, %v2903
    %v3762 = vpack.c.b16 %v2906, %v2905
    %v3763 = vpack.c.b16 %v2908, %v2907
    %v3764 = vpack.c.b16 %v2910, %v2909
    %v3765 = vpack.c.b16 %v2912, %v2911
    %v3766 = vpack.c.b16 %v2914, %v2913
    %v3767 = vpack.c.b16 %v2916, %v2915
    %v3768 = vpack.c.b16 %v2918, %v2917
    %v3769 = vpack.c.b16 %v2920, %v2919
    %v3770 = vpack.c.b16 %v2922, %v2921
    %v3771 = vpack.c.b16 %v2924, %v2923
    %v3772 = vpack.c.b16 %v2926, %v2925
    %v3773 = vpack.c.b16 %v2928, %v2927
    %v3774 = vpack.c.b16 %v2930, %v2929
    %v3775 = vpack.c.b16 %v2932, %v2931
    %v3776 = vpack.c.b16 %v2934, %v2933
    %v3777 = vpack.c.b16 %v2936, %v2935
    %v3778 = vpack.c.b16 %v2938, %v2937
    %v3779 = vpack.c.b16 %v2940, %v2939
    %v3780 = vpack.c.b16 %v2942, %v2941
    %v3781 = vpack.c.b16 %v2944, %v2943
    %v3782 = vpack.c.b16 %v2946, %v2945
    %v3783 = vpack.c.b16 %v2948, %v2947
    %v3784 = vpack.c.b16 %v2950, %v2949
    %v3785 = vpack.c.b16 %v2952, %v2951
    %v3786 = vpack.c.b16 %v2954, %v2953
    %v3787 = vpack.c.b16 %v2956, %v2955
    %v3788 = vpack.c.b16 %v2958, %v2957
    %v3789 = vpack.c.b16 %v2960, %v2959
    %v3790 = vpack.c.b16 %v2962, %v2961
    %v3791 = vpack.c.b16 %v2964, %v2963
    %v3792 = vpack.c.b16 %v2966, %v2965
    %v3793 = vpack.c.b16 %v2968, %v2967
    %v3794 = vpack.c.b16 %v2970, %v2969
    %v3795 = vpack.c.b16 %v2972, %v2971
    %v3796 = vpack.c.b16 %v2974, %v2973
    %v3797 = vpack.c.b16 %v2976, %v2975
    %v3798 = vpack.c.b16 %v2978, %v2977
    %v3799 = vpack.c.b16 %v2980, %v2979
    %v3800 = vpack.c.b16 %v2982, %v2981
    %v3801 = vpack.c.b16 %v2984, %v2983
    %v3802 = vpack.c.b16 %v2986, %v2985
    %v3803 = vpack.c.b16 %v2988, %v2987
    %v3804 = vpack.c.b16 %v2990, %v2989
    %v3805 = vpack.c.b16 %v2992, %v2991
    %v3806 = vpack.c.b16 %v2994, %v2993
    %v3807 = vpack.c.b16 %v2996, %v2995
    %v3808 = vpack.c.b16 %v2998, %v2997
    %v3809 = vpack.c.b16 %v3000, %v2999
    %v3810 = vpack.c.b16 %v3002, %v3001
    %v3811 = vpack.c.b16 %v3004, %v3003
    %v3812 = vpack.c.b16 %v3006, %v3005
    %v3813 = vpack.c.b16 %v3008, %v3007
    %v3814 = vpack.c.b16 %v3010, %v3009
    %v3815 = vpack.c.b16 %v3012, %v3011
    %v3816 = vpack.c.b16 %v3014, %v3013
    %v3817 = vpack.c.b16 %v3016, %v3015
    %v3818 = vpack.c.b16 %v3018, %v3017
    %v3819 = vpack.c.b16 %v3020, %v3019
    %v3820 = vpack.c.b16 %v3022, %v3021
    %v3821 = vpack.c.b16 %v3024, %v3023
    %v3822 = vpack.c.b16 %v3026, %v3025
    %v3823 = vpack.c.b16 %v3028, %v3027
    %v3824 = vpack.c.b16 %v3030, %v3029
    %v3825 = vpack.c.b16 %v3032, %v3031
    %v3826 = vpack.c.b16 %v3034, %v3033
    %v3827 = vpack.c.b16 %v3036, %v3035
    %v3828 = vpack.c.b16 %v3038, %v3037
    %v3829 = vpack.c.b16 %v3040, %v3039
    %v3830 = vpack.c.b16 %v3042, %v3041
    %v3831 = vpack.c.b16 %v3044, %v3043
    %v3832 = vpack.c.b16 %v3046, %v3045
    %v3833 = vpack.c.b16 %v3048, %v3047
    %v3834 = vpack.c.b16 %v3050, %v3049
    %v3835 = vpack.c.b16 %v3052, %v3051
    %v3836 = vpack.c.b16 %v3054, %v3053
    %v3837 = vpack.c.b16 %v3056, %v3055
    %v3838 = vpack.c.b16 %v3058, %v3057
    %v3839 = vpack.c.b16 %v3060, %v3059
    %v3840 = vpack.c.b16 %v3062, %v3061
    %v3841 = vpack.c.b16 %v3064, %v3063
    %v3842 = vpack.c.b16 %v3066, %v3065
    %v3843 = vpack.c.b16 %v3068, %v3067
    %v3844 = vpack.c.b16 %v3070, %v3069
    %v3845 = vpack.c.b16 %v3072, %v3071
    %v3846 = vpack.c.b16 %v3074, %v3073
    %v3847 = vpack.c.b16 %v3076, %v3075
    %v3848 = vpack.c.b16 %v3078, %v3077
    %v3849 = vpack.c.b16 %v3080, %v3079
    %v3850 = vpack.c.b16 %v3082, %v3081
    %v3851 = vpack.c.b16 %v3084, %v3083
    %v3852 = vpack.c.b16 %v3086, %v3085
    %v3853 = vpack.c.b16 %v3088, %v3087
    %v3854 = vpack.c.b16 %v3090, %v3089
    %v3855 = vpack.c.b16 %v3092, %v3091
    %v3856 = vpack.c.b16 %v3094, %v3093
    %v3857 = vpack.c.b16 %v3096, %v3095
    %v3858 = vpack.c.b16 %v3098, %v3097
    %v3859 = vpack.c.b16 %v3100, %v3099
    %v3860 = vpack.c.b16 %v3102, %v3101
    %v3861 = vpack.c.b16 %v3104, %v3103
    %v3862 = vpack.c.b16 %v3106, %v3105
    %v3863 = vpack.c.b16 %v3108, %v3107
    %v3864 = vpack.c.b16 %v3110, %v3109
    %v3865 = vpack.c.b16 %v3112, %v3111
    %v3866 = vpack.c.b16 %v3114, %v3113
    %v3867 = vpack.c.b16 %v3116, %v3115
    %v3868 = vpack.c.b16 %v3118, %v3117
    %v3869 = vpack.c.b16 %v3120, %v3119
    %v3870 = vpack.c.b16 %v3122, %v3121
    %v3871 = vpack.c.b16 %v3124, %v3123
    %v3872 = vpack.c.b16 %v3126, %v3125
    %v3873 = vpack.c.b16 %v3128, %v3127
    %v3874 = vpack.c.b16 %v3130, %v3129
    %v3875 = vpack.c.b16 %v3132, %v3131
    %v3876 = vpack.c.b16 %v3134, %v3133
    %v3877 = vpack.c.b16 %v3136, %v3135
    %v3878 = vpack.c.b16 %v3138, %v3137
    %v3879 = vpack.c.b16 %v3140, %v3139
    %v3880 = vpack.c.b16 %v3142, %v3141
    %v3881 = vpack.c.b16 %v3144, %v3143
    %v3882 = vpack.c.b16 %v3146, %v3145
    %v3883 = vpack.c.b16 %v3148, %v3147
    %v3884 = vpack.c.b16 %v3150, %v3149
    %v3885 = vpack.c.b16 %v3152, %v3151
    %v3886 = vpack.c.b16 %v3154, %v3153
    %v3887 = vpack.c.b16 %v3156, %v3155
    %v3888 = vpack.c.b16 %v3158, %v3157
    %v3889 = vpack.c.b16 %v3160, %v3159
    %v3890 = vpack.c.b16 %v3162, %v3161
    %v3891 = vpack.c.b16 %v3164, %v3163
    %v3892 = vpack.c.b16 %v3166, %v3165
    %v3893 = vpack.c.b16 %v3168, %v3167
    %v3894 = vpack.c.b16 %v3170, %v3169
    %v3895 = vpack.c.b16 %v3172, %v3171
    %v3896 = vpack.c.b16 %v3174, %v3173
    %v3897 = vpack.c.b16 %v3176, %v3175
    %v3898 = vpack.c.b16 %v3178, %v3177
    %v3899 = vpack.c.b16 %v3180, %v3179
    %v3900 = vpack.c.b16 %v3182, %v3181
    %v3901 = vpack.c.b16 %v3184, %v3183
    %v3902 = vpack.c.b16 %v3186, %v3185
    %v3903 = vpack.c.b16 %v3188, %v3187
    %v3904 = vpack.c.b16 %v3190, %v3189
    %v3905 = vpack.c.b16 %v3192, %v3191
    %v3906 = vpack.c.b16 %v3194, %v3193
    %v3907 = vpack.c.b16 %v3196, %v3195
    %v3908 = vpack.c.b16 %v3198, %v3197
    %v3909 = vpack.c.b16 %v3200, %v3199
    %v3910 = vpack.c.b16 %v3202, %v3201
    %v3911 = vpack.c.b16 %v3204, %v3203
    %v3912 = vpack.c.b16 %v3206, %v3205
    %v3913 = vpack.c.b16 %v3208, %v3207
    %v3914 = vpack.c.b16 %v3210, %v3209
    %v3915 = vpack.c.b16 %v3212, %v3211
    %v3916 = vpack.c.b16 %v3214, %v3213
    %v3917 = vpack.c.b16 %v3216, %v3215
    %v3918 = vpack.c.b16 %v3218, %v3217
    %v3919 = vpack.c.b16 %v3220, %v3219
    %v3920 = vpack.c.b16 %v3222, %v3221
    %v3921 = vpack.c.b16 %v3224, %v3223
    %v3922 = vpack.c.b16 %v3226, %v3225
    %v3923 = vpack.c.b16 %v3228, %v3227
    %v3924 = vpack.c.b16 %v3230, %v3229
    %v3925 = vpack.c.b16 %v3232, %v3231
    %v3926 = vpack.c.b16 %v3234, %v3233
    %v3927 = vpack.c.b16 %v3236, %v3235
    %v3928 = vpack.c.b16 %v3238, %v3237
    %v3929 = vpack.c.b16 %v3240, %v3239
    %v3930 = vpack.c.b16 %v3242, %v3241
    %v3931 = vpack.c.b16 %v3244, %v3243
    %v3932 = vpack.c.b16 %v3246, %v3245
    %v3933 = vpack.c.b16 %v3248, %v3247
    %v3934 = vpack.c.b16 %v3250, %v3249
    %v3935 = vpack.c.b16 %v3252, %v3251
    %v3936 = vpack.c.b16 %v3254, %v3253
    %v3937 = vpack.c.b16 %v3256, %v3255
    %v3938 = vpack.c.b16 %v3258, %v3257
    %v3939 = vpack.c.b16 %v3260, %v3259
    %v3940 = vpack.c.b16 %v3262, %v3261
    %v3941 = vpack.c.b16 %v3264, %v3263
    %v3942 = vpack.c.b16 %v3266, %v3265
    %v3943 = vpack.c.b16 %v3268, %v3267
    %v3944 = vpack.c.b16 %v3270, %v3269
    %v3945 = vpack.c.b16 %v3272, %v3271
    %v3946 = vpack.c.b16 %v3274, %v3273
    %v3947 = vpack.c.b16 %v3276, %v3275
    %v3948 = vpack.c.b16 %v3278, %v3277
    %v3949 = vpack.c.b16 %v3280, %v3279
    %v3950 = vpack.c.b16 %v3282, %v3281
    %v3951 = vpack.c.b16 %v3284, %v3283
    %v3952 = vpack.c.b16 %v3286, %v3285
    %v3953 = vpack.c.b16 %v3288, %v3287
    %v3954 = vpack.c.b16 %v3290, %v3289
    %v3955 = vpack.c.b16 %v3292, %v3291
    %v3956 = vpack.c.b16 %v3294, %v3293
    %v3957 = vpack.c.b16 %v3296, %v3295
    %v3958 = vpack.c.b16 %v3298, %v3297
    %v3959 = vpack.c.b16 %v3300, %v3299
    %v3960 = vpack.c.b16 %v3302, %v3301
    %v3961 = vpack.c.b16 %v3304, %v3303
    %v3962 = vpack.c.b16 %v3306, %v3305
    %v3963 = vpack.c.b16 %v3308, %v3307
    %v3964 = vpack.c.b16 %v3310, %v3309
    %v3965 = vpack.c.b16 %v3312, %v3311
    %v3966 = vpack.c.b16 %v3314, %v3313
    %v3967 = vpack.c.b16 %v3316, %v3315
    %v3968 = vpack.c.b16 %v3318, %v3317
    %v3969 = vpack.c.b16 %v3320, %v3319
    %v3970 = vpack.c.b16 %v3322, %v3321
    %v3971 = vpack.c.b16 %v3324, %v3323
    %v3972 = vpack.c.b16 %v3326, %v3325
    %v3973 = vpack.c.b16 %v3328, %v3327
    %v3974 = vpack.c.b16 %v3330, %v3329
    %v3975 = vpack.c.b16 %v3332, %v3331
    %v3976 = vpack.c.b16 %v3334, %v3333
    %v3977 = vpack.c.b16 %v3336, %v3335
    %v3978 = vpack.c.b16 %v3338, %v3337
    %v3979 = vpack.c.b16 %v3340, %v3339
    %v3980 = vpack.c.b16 %v3342, %v3341
    %v3981 = vpack.c.b16 %v3344, %v3343
    %v3982 = vpack.c.b16 %v3346, %v3345
    %v3983 = vpack.c.b16 %v3348, %v3347
    %v3984 = vpack.c.b16 %v3350, %v3349
    %v3985 = vpack.c.b16 %v3352, %v3351
    %v3986 = vpack.c.b16 %v3354, %v3353
    %v3987 = vpack.c.b16 %v3356, %v3355
    %v3988 = vpack.c.b16 %v3358, %v3357
    %v3989 = vpack.c.b16 %v3360, %v3359
    %v3990 = vpack.c.b16 %v3362, %v3361
    %v3991 = vpack.c.b16 %v3364, %v3363
    %v3992 = vpack.c.b16 %v3366, %v3365
    %v3993 = vpack.c.b16 %v3368, %v3367
    %v3994 = vpack.c.b16 %v3370, %v3369
    %v3995 = vpack.c.b16 %v3372, %v3371
    %v3996 = vpack.c.b16 %v3374, %v3373
    %v3997 = vpack.c.b16 %v3376, %v3375
    %v3998 = vpack.c.b16 %v3378, %v3377
    %v3999 = vpack.c.b16 %v3380, %v3379
    %v4000 = vpack.c.b16 %v3382, %v3381
    %v4001 = vpack.c.b16 %v3384, %v3383
    %v4002 = vpack.c.b16 %v3386, %v3385
    %v4003 = vpack.c.b16 %v3388, %v3387
    %v4004 = vpack.c.b16 %v3390, %v3389
    %v4005 = vpack.c.b16 %v3392, %v3391
    %v4006 = vpack.c.b16 %v3394, %v3393
    %v4007 = vpack.c.b16 %v3396, %v3395
    %v4008 = vpack.c.b16 %v3398, %v3397
    %v4009 = vpack.c.b16 %v3400, %v3399
    %v4010 = vpack.c.b16 %v3402, %v3401
    %v4011 = vpack.c.b16 %v3404, %v3403
    %v4012 = vpack.c.b16 %v3406, %v3405
    %v4013 = vpack.c.b16 %v3408, %v3407
    %v4014 = vpack.c.b16 %v3410, %v3409
    %v4015 = vpack.c.b16 %v3412, %v3411
    %v4016 = vpack.c.b16 %v3414, %v3413
    %v4017 = vpack.c.b16 %v3416, %v3415
    %v4018 = vpack.c.b16 %v3418, %v3417
    %v4019 = vpack.c.b16 %v3420, %v3419
    %v4020 = vpack.c.b16 %v3422, %v3421
    %v4021 = vpack.c.b16 %v3424, %v3423
    %v4022 = vpack.c.b16 %v3426, %v3425
    %v4023 = vpack.c.b16 %v3428, %v3427
    %v4024 = vpack.c.b16 %v3430, %v3429
    %v4025 = vpack.c.b16 %v3432, %v3431
    %v4026 = vpack.c.b16 %v3434, %v3433
    %v4027 = vpack.c.b16 %v3436, %v3435
    %v4028 = vpack.c.b16 %v3438, %v3437
    %v4029 = vpack.c.b16 %v3440, %v3439
    %v4030 = vpack.c.b16 %v3442, %v3441
    %v4031 = vpack.c.b16 %v3444, %v3443
    %v4032 = vpack.c.b16 %v3446, %v3445
    %v4033 = vpack.c.b16 %v3448, %v3447
    %v4034 = vpack.c.b16 %v3450, %v3449
    %v4035 = vpack.c.b16 %v3452, %v3451
    %v4036 = vpack.c.b16 %v3454, %v3453
    %v4037 = vpack.c.b16 %v3456, %v3455
    %v4038 = vpack.c.b16 %v3458, %v3457
    %v4039 = vpack.c.b16 %v3460, %v3459
    %v4040 = vpack.c.b16 %v3462, %v3461
    %v4041 = vpack.c.b16 %v3464, %v3463
    %v4042 = vpack.c.b16 %v3466, %v3465
    %v4043 = vpack.c.b16 %v3468, %v3467
    %v4044 = vpack.c.b16 %v3470, %v3469
    %v4045 = vpack.c.b16 %v3472, %v3471
    %v4046 = vpack.c.b16 %v3474, %v3473
    %v4047 = vpack.c.b16 %v3476, %v3475
    %v4048 = vpack.c.b16 %v3478, %v3477
    %v4049 = vpack.c.b16 %v3480, %v3479
    %v4050 = vpack.c.b16 %v3482, %v3481
    %v4051 = vpack.c.b16 %v3484, %v3483
    %v4052 = vpack.c.b16 %v3486, %v3485
    %v4053 = vpack.c.b16 %v3488, %v3487
    %v4054 = vpack.c.b16 %v3490, %v3489
    %v4055 = vpack.c.b16 %v3492, %v3491
    %v4056 = vpack.c.b16 %v3494, %v3493
    %v4057 = vpack.c.b16 %v3496, %v3495
    %v4058 = vpack.c.b16 %v3498, %v3497
    %v4059 = vpack.c.b16 %v3500, %v3499
    %v4060 = vpack.c.b16 %v3502, %v3501
    %v4061 = vpack.c.b16 %v3504, %v3503
    %v4062 = vpack.c.b16 %v3506, %v3505
    %v4063 = vpack.c.b16 %v3508, %v3507
    %v4064 = vpack.c.b16 %v3510, %v3509
    %v4065 = vpack.c.b16 %v3512, %v3511
    %v4066 = vpack.c.b16 %v3514, %v3513
    %v4067 = vpack.c.b16 %v3516, %v3515
    %v4068 = vpack.c.b16 %v3518, %v3517
    %v4069 = vpack.c.b16 %v3520, %v3519
    %v4070 = vpack.c.b16 %v3522, %v3521
    %v4071 = vpack.c.b16 %v3524, %v3523
    %v4072 = vpack.c.b16 %v3526, %v3525
    %v4073 = vpack.c.b16 %v3528, %v3527
    %v4074 = vpack.c.b16 %v3530, %v3529
    %v4075 = vpack.c.b16 %v3532, %v3531
    %v4076 = vpack.c.b16 %v3534, %v3533
    %v4077 = vpack.c.b16 %v3536, %v3535
    %v4078 = vpack.c.b16 %v3538, %v3537
    %v4079 = vpack.c.b16 %v3540, %v3539
    %v4080 = vpack.c.b16 %v3542, %v3541
    %v4081 = vpack.c.b16 %v3544, %v3543
    %v4082 = vpack.c.b16 %v3546, %v3545
    %v4083 = vpack.c.b16 %v3548, %v3547
    %v4084 = vpack.c.b16 %v3550, %v3549
    %v4085 = vpack.c.b16 %v3552, %v3551
    %v4086 = vpack.c.b16 %v3554, %v3553
    %v4087 = vpack.c.b16 %v3556, %v3555
    %v4088 = vpack.c.b16 %v3558, %v3557
    %v4089 = vpack.c.b16 %v3560, %v3559
    %v4090 = vpack.c.b16 %v3562, %v3561
    %v4091 = vpack.c.b16 %v3564, %v3563
    %v4092 = vpack.c.b16 %v3566, %v3565
    %v4093 = vpack.c.b16 %v3568, %v3567
    %v4094 = vpack.c.b16 %v3570, %v3569
    %v4095 = vpack.c.b16 %v3572, %v3571
    %v4096 = vpack.c.b16 %v3574, %v3573
    %v4097 = vpack.c.b16 %v3576, %v3575
    %v4098 = vpack.c.b16 %v3578, %v3577
    %v4099 = vpack.c.b16 %v3580, %v3579
    %v4100 = vpack.c.b16 %v3582, %v3581
    %v4101 = vpack.c.b16 %v3584, %v3583
    %v4102 = vpack.c.b16 %v3586, %v3585
    %v4103 = vpack.c.b16 %v3588, %v3587
    %v4104 = vpack.c.b16 %v3590, %v3589
    %v4105 = vpack.c.b16 %v3592, %v3591
    %v4106 = vpack.c.b16 %v3594, %v3593
    %4619 = vmatprep.subr.bf16.mxu0 0
    %4620 = vmatpush1.bf16.msra.mxu0 %v3595
    %4621 = vmatprep.subr.bf16.mxu0 0
    %4622 = vmatpush1.bf16.msra.mxu0 %v3596
    %4623 = vmatprep.subr.bf16.mxu0 0
    %4624 = vmatpush1.bf16.msra.mxu0 %v3597
    %4625 = vmatprep.subr.bf16.mxu0 0
    %4626 = vmatpush1.bf16.msra.mxu0 %v3598
    %4627 = vmatprep.subr.bf16.mxu0 0
    %4628 = vmatpush1.bf16.msra.mxu0 %v3599
    %4629 = vmatprep.subr.bf16.mxu0 0
    %4630 = vmatpush1.bf16.msra.mxu0 %v3600
    %4631 = vmatprep.subr.bf16.mxu0 0
    %4632 = vmatpush1.bf16.msra.mxu0 %v3601
    %4633 = vmatprep.subr.bf16.mxu0 0
    %4634 = vmatpush1.bf16.msra.mxu0 %v3602
    %4635 = vmatprep.subr.bf16.mxu0 0
    %4636 = vmatpush1.bf16.msra.mxu0 %v3603
    %4637 = vmatprep.subr.bf16.mxu0 0
    %4638 = vmatpush1.bf16.msra.mxu0 %v3604
    %4639 = vmatprep.subr.bf16.mxu0 0
    %4640 = vmatpush1.bf16.msra.mxu0 %v3605
    %4641 = vmatprep.subr.bf16.mxu0 0
    %4642 = vmatpush1.bf16.msra.mxu0 %v3606
    %4643 = vmatprep.subr.bf16.mxu0 0
    %4644 = vmatpush1.bf16.msra.mxu0 %v3607
    %4645 = vmatprep.subr.bf16.mxu0 0
    %4646 = vmatpush1.bf16.msra.mxu0 %v3608
    %4647 = vmatprep.subr.bf16.mxu0 0
    %4648 = vmatpush1.bf16.msra.mxu0 %v3609
    %4649 = vmatprep.subr.bf16.mxu0 0
    %4650 = vmatpush1.bf16.msra.mxu0 %v3610
    %4651 = vmatprep.mubr.bf16.mxu0 %v453
    %4652 = vmatmul.mubr.bf16.gmra.mrb[0].mxu0 %v452
    %v4653 = vpop.f32.mrb[0].mxu0
    %v4654 = vadd.f32 %v1545, %v4653
    %v4655 = vpop.f32.mrb[0].mxu0
    %v4656 = vpop.f32.mrb[0].mxu0
    %v4657 = vpop.f32.mrb[0].mxu0
    %4658 = vdwg.mxu0
    %4659 = vmatprep.subr.bf16.mxu0 0
    %4660 = vmatpush1.bf16.msra.mxu0 %v3611
    %4661 = vmatprep.subr.bf16.mxu0 0
    %4662 = vmatpush1.bf16.msra.mxu0 %v3612
    %4663 = vmatprep.subr.bf16.mxu0 0
    %4664 = vmatpush1.bf16.msra.mxu0 %v3613
    %4665 = vmatprep.subr.bf16.mxu0 0
    %4666 = vmatpush1.bf16.msra.mxu0 %v3614
    %4667 = vmatprep.subr.bf16.mxu0 0
    %4668 = vmatpush1.bf16.msra.mxu0 %v3615
    %4669 = vmatprep.subr.bf16.mxu0 0
    %4670 = vmatpush1.bf16.msra.mxu0 %v3616
    %4671 = vmatprep.subr.bf16.mxu0 0
    %4672 = vmatpush1.bf16.msra.mxu0 %v3617
    %4673 = vmatprep.subr.bf16.mxu0 0
    %4674 = vmatpush1.bf16.msra.mxu0 %v3618
    %4675 = vmatprep.subr.bf16.mxu0 0
    %4676 = vmatpush1.bf16.msra.mxu0 %v3619
    %4677 = vmatprep.subr.bf16.mxu0 0
    %4678 = vmatpush1.bf16.msra.mxu0 %v3620
    %4679 = vmatprep.subr.bf16.mxu0 0
    %4680 = vmatpush1.bf16.msra.mxu0 %v3621
    %4681 = vmatprep.subr.bf16.mxu0 0
    %4682 = vmatpush1.bf16.msra.mxu0 %v3622
    %4683 = vmatprep.subr.bf16.mxu0 0
    %4684 = vmatpush1.bf16.msra.mxu0 %v3623
    %4685 = vmatprep.subr.bf16.mxu0 0
    %4686 = vmatpush1.bf16.msra.mxu0 %v3624
    %4687 = vmatprep.subr.bf16.mxu0 0
    %4688 = vmatpush1.bf16.msra.mxu0 %v3625
    %4689 = vmatprep.subr.bf16.mxu0 0
    %4690 = vmatpush1.bf16.msra.mxu0 %v3626
    %4691 = vmatprep.mubr.bf16.mxu0 %v455
    %4692 = vmatmul.mubr.bf16.gmra.mrb[0].mxu0 %v454
    %v4693 = vpop.f32.mrb[0].mxu0
    %v4694 = vadd.f32 %v4654, %v4693
    %v4695 = vpop.f32.mrb[0].mxu0
    %v4696 = vpop.f32.mrb[0].mxu0
    %v4697 = vpop.f32.mrb[0].mxu0
    %4698 = vdwg.mxu0
    %4699 = vmatprep.subr.bf16.mxu0 0
    %4700 = vmatpush1.bf16.msra.mxu0 %v3627
    %4701 = vmatprep.subr.bf16.mxu0 0
    %4702 = vmatpush1.bf16.msra.mxu0 %v3628
    %4703 = vmatprep.subr.bf16.mxu0 0
    %4704 = vmatpush1.bf16.msra.mxu0 %v3629
    %4705 = vmatprep.subr.bf16.mxu0 0
    %4706 = vmatpush1.bf16.msra.mxu0 %v3630
    %4707 = vmatprep.subr.bf16.mxu0 0
    %4708 = vmatpush1.bf16.msra.mxu0 %v3631
    %4709 = vmatprep.subr.bf16.mxu0 0
    %4710 = vmatpush1.bf16.msra.mxu0 %v3632
    %4711 = vmatprep.subr.bf16.mxu0 0
    %4712 = vmatpush1.bf16.msra.mxu0 %v3633
    %4713 = vmatprep.subr.bf16.mxu0 0
    %4714 = vmatpush1.bf16.msra.mxu0 %v3634
    %4715 = vmatprep.subr.bf16.mxu0 0
    %4716 = vmatpush1.bf16.msra.mxu0 %v3635
    %4717 = vmatprep.subr.bf16.mxu0 0
    %4718 = vmatpush1.bf16.msra.mxu0 %v3636
    %4719 = vmatprep.subr.bf16.mxu0 0
    %4720 = vmatpush1.bf16.msra.mxu0 %v3637
    %4721 = vmatprep.subr.bf16.mxu0 0
    %4722 = vmatpush1.bf16.msra.mxu0 %v3638
    %4723 = vmatprep.subr.bf16.mxu0 0
    %4724 = vmatpush1.bf16.msra.mxu0 %v3639
    %4725 = vmatprep.subr.bf16.mxu0 0
    %4726 = vmatpush1.bf16.msra.mxu0 %v3640
    %4727 = vmatprep.subr.bf16.mxu0 0
    %4728 = vmatpush1.bf16.msra.mxu0 %v3641
    %4729 = vmatprep.subr.bf16.mxu0 0
    %4730 = vmatpush1.bf16.msra.mxu0 %v3642
    %4731 = vmatprep.mubr.bf16.mxu0 %v457
    %4732 = vmatmul.mubr.bf16.gmra.mrb[0].mxu0 %v456
    %v4733 = vpop.f32.mrb[0].mxu0
    %v4734 = vadd.f32 %v4694, %v4733
    %v4735 = vpop.f32.mrb[0].mxu0
    %v4736 = vpop.f32.mrb[0].mxu0
    %v4737 = vpop.f32.mrb[0].mxu0
    %4738 = vdwg.mxu0
    %4739 = vmatprep.subr.bf16.mxu0 0
    %4740 = vmatpush1.bf16.msra.mxu0 %v3643
    %4741 = vmatprep.subr.bf16.mxu0 0
    %4742 = vmatpush1.bf16.msra.mxu0 %v3644
    %4743 = vmatprep.subr.bf16.mxu0 0
    %4744 = vmatpush1.bf16.msra.mxu0 %v3645
    %4745 = vmatprep.subr.bf16.mxu0 0
    %4746 = vmatpush1.bf16.msra.mxu0 %v3646
    %4747 = vmatprep.subr.bf16.mxu0 0
    %4748 = vmatpush1.bf16.msra.mxu0 %v3647
    %4749 = vmatprep.subr.bf16.mxu0 0
    %4750 = vmatpush1.bf16.msra.mxu0 %v3648
    %4751 = vmatprep.subr.bf16.mxu0 0
    %4752 = vmatpush1.bf16.msra.mxu0 %v3649
    %4753 = vmatprep.subr.bf16.mxu0 0
    %4754 = vmatpush1.bf16.msra.mxu0 %v3650
    %4755 = vmatprep.subr.bf16.mxu0 0
    %4756 = vmatpush1.bf16.msra.mxu0 %v3651
    %4757 = vmatprep.subr.bf16.mxu0 0
    %4758 = vmatpush1.bf16.msra.mxu0 %v3652
    %4759 = vmatprep.subr.bf16.mxu0 0
    %4760 = vmatpush1.bf16.msra.mxu0 %v3653
    %4761 = vmatprep.subr.bf16.mxu0 0
    %4762 = vmatpush1.bf16.msra.mxu0 %v3654
    %4763 = vmatprep.subr.bf16.mxu0 0
    %4764 = vmatpush1.bf16.msra.mxu0 %v3655
    %4765 = vmatprep.subr.bf16.mxu0 0
    %4766 = vmatpush1.bf16.msra.mxu0 %v3656
    %4767 = vmatprep.subr.bf16.mxu0 0
    %4768 = vmatpush1.bf16.msra.mxu0 %v3657
    %4769 = vmatprep.subr.bf16.mxu0 0
    %4770 = vmatpush1.bf16.msra.mxu0 %v3658
    %4771 = vmatprep.mubr.bf16.mxu0 %v459
    %4772 = vmatmul.mubr.bf16.gmra.mrb[0].mxu0 %v458
    %v4773 = vpop.f32.mrb[0].mxu0
    %v4774 = vadd.f32 %v4734, %v4773
    %v4775 = vpop.f32.mrb[0].mxu0
    %v4776 = vpop.f32.mrb[0].mxu0
    %v4777 = vpop.f32.mrb[0].mxu0
    %4778 = vdwg.mxu0
    %4779 = vmatprep.subr.bf16.mxu0 0
    %4780 = vmatpush1.bf16.msra.mxu0 %v3659
    %4781 = vmatprep.subr.bf16.mxu0 0
    %4782 = vmatpush1.bf16.msra.mxu0 %v3660
    %4783 = vmatprep.subr.bf16.mxu0 0
    %4784 = vmatpush1.bf16.msra.mxu0 %v3661
    %4785 = vmatprep.subr.bf16.mxu0 0
    %4786 = vmatpush1.bf16.msra.mxu0 %v3662
    %4787 = vmatprep.subr.bf16.mxu0 0
    %4788 = vmatpush1.bf16.msra.mxu0 %v3663
    %4789 = vmatprep.subr.bf16.mxu0 0
    %4790 = vmatpush1.bf16.msra.mxu0 %v3664
    %4791 = vmatprep.subr.bf16.mxu0 0
    %4792 = vmatpush1.bf16.msra.mxu0 %v3665
    %4793 = vmatprep.subr.bf16.mxu0 0
    %4794 = vmatpush1.bf16.msra.mxu0 %v3666
    %4795 = vmatprep.subr.bf16.mxu0 0
    %4796 = vmatpush1.bf16.msra.mxu0 %v3667
    %4797 = vmatprep.subr.bf16.mxu0 0
    %4798 = vmatpush1.bf16.msra.mxu0 %v3668
    %4799 = vmatprep.subr.bf16.mxu0 0
    %4800 = vmatpush1.bf16.msra.mxu0 %v3669
    %4801 = vmatprep.subr.bf16.mxu0 0
    %4802 = vmatpush1.bf16.msra.mxu0 %v3670
    %4803 = vmatprep.subr.bf16.mxu0 0
    %4804 = vmatpush1.bf16.msra.mxu0 %v3671
    %4805 = vmatprep.subr.bf16.mxu0 0
    %4806 = vmatpush1.bf16.msra.mxu0 %v3672
    %4807 = vmatprep.subr.bf16.mxu0 0
    %4808 = vmatpush1.bf16.msra.mxu0 %v3673
    %4809 = vmatprep.subr.bf16.mxu0 0
    %4810 = vmatpush1.bf16.msra.mxu0 %v3674
    %4811 = vmatprep.mubr.bf16.mxu0 %v461
    %4812 = vmatmul.mubr.bf16.gmra.mrb[0].mxu0 %v460
    %v4813 = vpop.f32.mrb[0].mxu0
    %v4814 = vadd.f32 %v4774, %v4813
    %v4815 = vpop.f32.mrb[0].mxu0
    %v4816 = vpop.f32.mrb[0].mxu0
    %v4817 = vpop.f32.mrb[0].mxu0
    %4818 = vdwg.mxu0
    %4819 = vmatprep.subr.bf16.mxu0 0
    %4820 = vmatpush1.bf16.msra.mxu0 %v3675
    %4821 = vmatprep.subr.bf16.mxu0 0
    %4822 = vmatpush1.bf16.msra.mxu0 %v3676
    %4823 = vmatprep.subr.bf16.mxu0 0
    %4824 = vmatpush1.bf16.msra.mxu0 %v3677
    %4825 = vmatprep.subr.bf16.mxu0 0
    %4826 = vmatpush1.bf16.msra.mxu0 %v3678
    %4827 = vmatprep.subr.bf16.mxu0 0
    %4828 = vmatpush1.bf16.msra.mxu0 %v3679
    %4829 = vmatprep.subr.bf16.mxu0 0
    %4830 = vmatpush1.bf16.msra.mxu0 %v3680
    %4831 = vmatprep.subr.bf16.mxu0 0
    %4832 = vmatpush1.bf16.msra.mxu0 %v3681
    %4833 = vmatprep.subr.bf16.mxu0 0
    %4834 = vmatpush1.bf16.msra.mxu0 %v3682
    %4835 = vmatprep.subr.bf16.mxu0 0
    %4836 = vmatpush1.bf16.msra.mxu0 %v3683
    %4837 = vmatprep.subr.bf16.mxu0 0
    %4838 = vmatpush1.bf16.msra.mxu0 %v3684
    %4839 = vmatprep.subr.bf16.mxu0 0
    %4840 = vmatpush1.bf16.msra.mxu0 %v3685
    %4841 = vmatprep.subr.bf16.mxu0 0
    %4842 = vmatpush1.bf16.msra.mxu0 %v3686
    %4843 = vmatprep.subr.bf16.mxu0 0
    %4844 = vmatpush1.bf16.msra.mxu0 %v3687
    %4845 = vmatprep.subr.bf16.mxu0 0
    %4846 = vmatpush1.bf16.msra.mxu0 %v3688
    %4847 = vmatprep.subr.bf16.mxu0 0
    %4848 = vmatpush1.bf16.msra.mxu0 %v3689
    %4849 = vmatprep.subr.bf16.mxu0 0
    %4850 = vmatpush1.bf16.msra.mxu0 %v3690
    %4851 = vmatprep.mubr.bf16.mxu0 %v463
    %4852 = vmatmul.mubr.bf16.gmra.mrb[0].mxu0 %v462
    %v4853 = vpop.f32.mrb[0].mxu0
    %v4854 = vadd.f32 %v4814, %v4853
    %v4855 = vpop.f32.mrb[0].mxu0
    %v4856 = vpop.f32.mrb[0].mxu0
    %v4857 = vpop.f32.mrb[0].mxu0
    %4858 = vdwg.mxu0
    %4859 = vmatprep.subr.bf16.mxu0 0
    %4860 = vmatpush1.bf16.msra.mxu0 %v3691
    %4861 = vmatprep.subr.bf16.mxu0 0
    %4862 = vmatpush1.bf16.msra.mxu0 %v3692
    %4863 = vmatprep.subr.bf16.mxu0 0
    %4864 = vmatpush1.bf16.msra.mxu0 %v3693
    %4865 = vmatprep.subr.bf16.mxu0 0
    %4866 = vmatpush1.bf16.msra.mxu0 %v3694
    %4867 = vmatprep.subr.bf16.mxu0 0
    %4868 = vmatpush1.bf16.msra.mxu0 %v3695
    %4869 = vmatprep.subr.bf16.mxu0 0
    %4870 = vmatpush1.bf16.msra.mxu0 %v3696
    %4871 = vmatprep.subr.bf16.mxu0 0
    %4872 = vmatpush1.bf16.msra.mxu0 %v3697
    %4873 = vmatprep.subr.bf16.mxu0 0
    %4874 = vmatpush1.bf16.msra.mxu0 %v3698
    %4875 = vmatprep.subr.bf16.mxu0 0
    %4876 = vmatpush1.bf16.msra.mxu0 %v3699
    %4877 = vmatprep.subr.bf16.mxu0 0
    %4878 = vmatpush1.bf16.msra.mxu0 %v3700
    %4879 = vmatprep.subr.bf16.mxu0 0
    %4880 = vmatpush1.bf16.msra.mxu0 %v3701
    %4881 = vmatprep.subr.bf16.mxu0 0
    %4882 = vmatpush1.bf16.msra.mxu0 %v3702
    %4883 = vmatprep.subr.bf16.mxu0 0
    %4884 = vmatpush1.bf16.msra.mxu0 %v3703
    %4885 = vmatprep.subr.bf16.mxu0 0
    %4886 = vmatpush1.bf16.msra.mxu0 %v3704
    %4887 = vmatprep.subr.bf16.mxu0 0
    %4888 = vmatpush1.bf16.msra.mxu0 %v3705
    %4889 = vmatprep.subr.bf16.mxu0 0
    %4890 = vmatpush1.bf16.msra.mxu0 %v3706
    %4891 = vmatprep.mubr.bf16.mxu0 %v465
    %4892 = vmatmul.mubr.bf16.gmra.mrb[0].mxu0 %v464
    %v4893 = vpop.f32.mrb[0].mxu0
    %v4894 = vadd.f32 %v4854, %v4893
    %v4895 = vpop.f32.mrb[0].mxu0
    %v4896 = vpop.f32.mrb[0].mxu0
    %v4897 = vpop.f32.mrb[0].mxu0
    %4898 = vdwg.mxu0
    %4899 = vmatprep.subr.bf16.mxu0 0
    %4900 = vmatpush1.bf16.msra.mxu0 %v3707
    %4901 = vmatprep.subr.bf16.mxu0 0
    %4902 = vmatpush1.bf16.msra.mxu0 %v3708
    %4903 = vmatprep.subr.bf16.mxu0 0
    %4904 = vmatpush1.bf16.msra.mxu0 %v3709
    %4905 = vmatprep.subr.bf16.mxu0 0
    %4906 = vmatpush1.bf16.msra.mxu0 %v3710
    %4907 = vmatprep.subr.bf16.mxu0 0
    %4908 = vmatpush1.bf16.msra.mxu0 %v3711
    %4909 = vmatprep.subr.bf16.mxu0 0
    %4910 = vmatpush1.bf16.msra.mxu0 %v3712
    %4911 = vmatprep.subr.bf16.mxu0 0
    %4912 = vmatpush1.bf16.msra.mxu0 %v3713
    %4913 = vmatprep.subr.bf16.mxu0 0
    %4914 = vmatpush1.bf16.msra.mxu0 %v3714
    %4915 = vmatprep.subr.bf16.mxu0 0
    %4916 = vmatpush1.bf16.msra.mxu0 %v3715
    %4917 = vmatprep.subr.bf16.mxu0 0
    %4918 = vmatpush1.bf16.msra.mxu0 %v3716
    %4919 = vmatprep.subr.bf16.mxu0 0
    %4920 = vmatpush1.bf16.msra.mxu0 %v3717
    %4921 = vmatprep.subr.bf16.mxu0 0
    %4922 = vmatpush1.bf16.msra.mxu0 %v3718
    %4923 = vmatprep.subr.bf16.mxu0 0
    %4924 = vmatpush1.bf16.msra.mxu0 %v3719
    %4925 = vmatprep.subr.bf16.mxu0 0
    %4926 = vmatpush1.bf16.msra.mxu0 %v3720
    %4927 = vmatprep.subr.bf16.mxu0 0
    %4928 = vmatpush1.bf16.msra.mxu0 %v3721
    %4929 = vmatprep.subr.bf16.mxu0 0
    %4930 = vmatpush1.bf16.msra.mxu0 %v3722
    %4931 = vmatprep.mubr.bf16.mxu0 %v467
    %4932 = vmatmul.mubr.bf16.gmra.mrb[0].mxu0 %v466
    %v4933 = vpop.f32.mrb[0].mxu0
    %v4934 = vadd.f32 %v4894, %v4933
    %v4935 = vpop.f32.mrb[0].mxu0
    %v4936 = vpop.f32.mrb[0].mxu0
    %v4937 = vpop.f32.mrb[0].mxu0
    %4938 = vdwg.mxu0
    %4939 = vmatprep.subr.bf16.mxu0 0
    %4940 = vmatpush1.bf16.msra.mxu0 %v3723
    %4941 = vmatprep.subr.bf16.mxu0 0
    %4942 = vmatpush1.bf16.msra.mxu0 %v3724
    %4943 = vmatprep.subr.bf16.mxu0 0
    %4944 = vmatpush1.bf16.msra.mxu0 %v3725
    %4945 = vmatprep.subr.bf16.mxu0 0
    %4946 = vmatpush1.bf16.msra.mxu0 %v3726
    %4947 = vmatprep.subr.bf16.mxu0 0
    %4948 = vmatpush1.bf16.msra.mxu0 %v3727
    %4949 = vmatprep.subr.bf16.mxu0 0
    %4950 = vmatpush1.bf16.msra.mxu0 %v3728
    %4951 = vmatprep.subr.bf16.mxu0 0
    %4952 = vmatpush1.bf16.msra.mxu0 %v3729
    %4953 = vmatprep.subr.bf16.mxu0 0
    %4954 = vmatpush1.bf16.msra.mxu0 %v3730
    %4955 = vmatprep.subr.bf16.mxu0 0
    %4956 = vmatpush1.bf16.msra.mxu0 %v3731
    %4957 = vmatprep.subr.bf16.mxu0 0
    %4958 = vmatpush1.bf16.msra.mxu0 %v3732
    %4959 = vmatprep.subr.bf16.mxu0 0
    %4960 = vmatpush1.bf16.msra.mxu0 %v3733
    %4961 = vmatprep.subr.bf16.mxu0 0
    %4962 = vmatpush1.bf16.msra.mxu0 %v3734
    %4963 = vmatprep.subr.bf16.mxu0 0
    %4964 = vmatpush1.bf16.msra.mxu0 %v3735
    %4965 = vmatprep.subr.bf16.mxu0 0
    %4966 = vmatpush1.bf16.msra.mxu0 %v3736
    %4967 = vmatprep.subr.bf16.mxu0 0
    %4968 = vmatpush1.bf16.msra.mxu0 %v3737
    %4969 = vmatprep.subr.bf16.mxu0 0
    %4970 = vmatpush1.bf16.msra.mxu0 %v3738
    %4971 = vmatprep.mubr.bf16.mxu0 %v469
    %4972 = vmatmul.mubr.bf16.gmra.mrb[0].mxu0 %v468
    %v4973 = vpop.f32.mrb[0].mxu0
    %v4974 = vadd.f32 %v4934, %v4973
    %v4975 = vpop.f32.mrb[0].mxu0
    %v4976 = vpop.f32.mrb[0].mxu0
    %v4977 = vpop.f32.mrb[0].mxu0
    %4978 = vdwg.mxu0
    %4979 = vmatprep.subr.bf16.mxu0 0
    %4980 = vmatpush1.bf16.msra.mxu0 %v3739
    %4981 = vmatprep.subr.bf16.mxu0 0
    %4982 = vmatpush1.bf16.msra.mxu0 %v3740
    %4983 = vmatprep.subr.bf16.mxu0 0
    %4984 = vmatpush1.bf16.msra.mxu0 %v3741
    %4985 = vmatprep.subr.bf16.mxu0 0
    %4986 = vmatpush1.bf16.msra.mxu0 %v3742
    %4987 = vmatprep.subr.bf16.mxu0 0
    %4988 = vmatpush1.bf16.msra.mxu0 %v3743
    %4989 = vmatprep.subr.bf16.mxu0 0
    %4990 = vmatpush1.bf16.msra.mxu0 %v3744
    %4991 = vmatprep.subr.bf16.mxu0 0
    %4992 = vmatpush1.bf16.msra.mxu0 %v3745
    %4993 = vmatprep.subr.bf16.mxu0 0
    %4994 = vmatpush1.bf16.msra.mxu0 %v3746
    %4995 = vmatprep.subr.bf16.mxu0 0
    %4996 = vmatpush1.bf16.msra.mxu0 %v3747
    %4997 = vmatprep.subr.bf16.mxu0 0
    %4998 = vmatpush1.bf16.msra.mxu0 %v3748
    %4999 = vmatprep.subr.bf16.mxu0 0
    %5000 = vmatpush1.bf16.msra.mxu0 %v3749
    %5001 = vmatprep.subr.bf16.mxu0 0
    %5002 = vmatpush1.bf16.msra.mxu0 %v3750
    %5003 = vmatprep.subr.bf16.mxu0 0
    %5004 = vmatpush1.bf16.msra.mxu0 %v3751
    %5005 = vmatprep.subr.bf16.mxu0 0
    %5006 = vmatpush1.bf16.msra.mxu0 %v3752
    %5007 = vmatprep.subr.bf16.mxu0 0
    %5008 = vmatpush1.bf16.msra.mxu0 %v3753
    %5009 = vmatprep.subr.bf16.mxu0 0
    %5010 = vmatpush1.bf16.msra.mxu0 %v3754
    %5011 = vmatprep.mubr.bf16.mxu0 %v471
    %5012 = vmatmul.mubr.bf16.gmra.mrb[0].mxu0 %v470
    %v5013 = vpop.f32.mrb[0].mxu0
    %v5014 = vadd.f32 %v4974, %v5013
    %v5015 = vpop.f32.mrb[0].mxu0
    %v5016 = vpop.f32.mrb[0].mxu0
    %v5017 = vpop.f32.mrb[0].mxu0
    %5018 = vdwg.mxu0
    %5019 = vmatprep.subr.bf16.mxu0 0
    %5020 = vmatpush1.bf16.msra.mxu0 %v3755
    %5021 = vmatprep.subr.bf16.mxu0 0
    %5022 = vmatpush1.bf16.msra.mxu0 %v3756
    %5023 = vmatprep.subr.bf16.mxu0 0
    %5024 = vmatpush1.bf16.msra.mxu0 %v3757
    %5025 = vmatprep.subr.bf16.mxu0 0
    %5026 = vmatpush1.bf16.msra.mxu0 %v3758
    %5027 = vmatprep.subr.bf16.mxu0 0
    %5028 = vmatpush1.bf16.msra.mxu0 %v3759
    %5029 = vmatprep.subr.bf16.mxu0 0
    %5030 = vmatpush1.bf16.msra.mxu0 %v3760
    %5031 = vmatprep.subr.bf16.mxu0 0
    %5032 = vmatpush1.bf16.msra.mxu0 %v3761
    %5033 = vmatprep.subr.bf16.mxu0 0
    %5034 = vmatpush1.bf16.msra.mxu0 %v3762
    %5035 = vmatprep.subr.bf16.mxu0 0
    %5036 = vmatpush1.bf16.msra.mxu0 %v3763
    %5037 = vmatprep.subr.bf16.mxu0 0
    %5038 = vmatpush1.bf16.msra.mxu0 %v3764
    %5039 = vmatprep.subr.bf16.mxu0 0
    %5040 = vmatpush1.bf16.msra.mxu0 %v3765
    %5041 = vmatprep.subr.bf16.mxu0 0
    %5042 = vmatpush1.bf16.msra.mxu0 %v3766
    %5043 = vmatprep.subr.bf16.mxu0 0
    %5044 = vmatpush1.bf16.msra.mxu0 %v3767
    %5045 = vmatprep.subr.bf16.mxu0 0
    %5046 = vmatpush1.bf16.msra.mxu0 %v3768
    %5047 = vmatprep.subr.bf16.mxu0 0
    %5048 = vmatpush1.bf16.msra.mxu0 %v3769
    %5049 = vmatprep.subr.bf16.mxu0 0
    %5050 = vmatpush1.bf16.msra.mxu0 %v3770
    %5051 = vmatprep.mubr.bf16.mxu0 %v473
    %5052 = vmatmul.mubr.bf16.gmra.mrb[0].mxu0 %v472
    %v5053 = vpop.f32.mrb[0].mxu0
    %v5054 = vadd.f32 %v5014, %v5053
    %v5055 = vpop.f32.mrb[0].mxu0
    %v5056 = vpop.f32.mrb[0].mxu0
    %v5057 = vpop.f32.mrb[0].mxu0
    %5058 = vdwg.mxu0
    %5059 = vmatprep.subr.bf16.mxu0 0
    %5060 = vmatpush1.bf16.msra.mxu0 %v3771
    %5061 = vmatprep.subr.bf16.mxu0 0
    %5062 = vmatpush1.bf16.msra.mxu0 %v3772
    %5063 = vmatprep.subr.bf16.mxu0 0
    %5064 = vmatpush1.bf16.msra.mxu0 %v3773
    %5065 = vmatprep.subr.bf16.mxu0 0
    %5066 = vmatpush1.bf16.msra.mxu0 %v3774
    %5067 = vmatprep.subr.bf16.mxu0 0
    %5068 = vmatpush1.bf16.msra.mxu0 %v3775
    %5069 = vmatprep.subr.bf16.mxu0 0
    %5070 = vmatpush1.bf16.msra.mxu0 %v3776
    %5071 = vmatprep.subr.bf16.mxu0 0
    %5072 = vmatpush1.bf16.msra.mxu0 %v3777
    %5073 = vmatprep.subr.bf16.mxu0 0
    %5074 = vmatpush1.bf16.msra.mxu0 %v3778
    %5075 = vmatprep.subr.bf16.mxu0 0
    %5076 = vmatpush1.bf16.msra.mxu0 %v3779
    %5077 = vmatprep.subr.bf16.mxu0 0
    %5078 = vmatpush1.bf16.msra.mxu0 %v3780
    %5079 = vmatprep.subr.bf16.mxu0 0
    %5080 = vmatpush1.bf16.msra.mxu0 %v3781
    %5081 = vmatprep.subr.bf16.mxu0 0
    %5082 = vmatpush1.bf16.msra.mxu0 %v3782
    %5083 = vmatprep.subr.bf16.mxu0 0
    %5084 = vmatpush1.bf16.msra.mxu0 %v3783
    %5085 = vmatprep.subr.bf16.mxu0 0
    %5086 = vmatpush1.bf16.msra.mxu0 %v3784
    %5087 = vmatprep.subr.bf16.mxu0 0
    %5088 = vmatpush1.bf16.msra.mxu0 %v3785
    %5089 = vmatprep.subr.bf16.mxu0 0
    %5090 = vmatpush1.bf16.msra.mxu0 %v3786
    %5091 = vmatprep.mubr.bf16.mxu0 %v475
    %5092 = vmatmul.mubr.bf16.gmra.mrb[0].mxu0 %v474
    %v5093 = vpop.f32.mrb[0].mxu0
    %v5094 = vadd.f32 %v5054, %v5093
    %v5095 = vpop.f32.mrb[0].mxu0
    %v5096 = vpop.f32.mrb[0].mxu0
    %v5097 = vpop.f32.mrb[0].mxu0
    %5098 = vdwg.mxu0
    %5099 = vmatprep.subr.bf16.mxu0 0
    %5100 = vmatpush1.bf16.msra.mxu0 %v3787
    %5101 = vmatprep.subr.bf16.mxu0 0
    %5102 = vmatpush1.bf16.msra.mxu0 %v3788
    %5103 = vmatprep.subr.bf16.mxu0 0
    %5104 = vmatpush1.bf16.msra.mxu0 %v3789
    %5105 = vmatprep.subr.bf16.mxu0 0
    %5106 = vmatpush1.bf16.msra.mxu0 %v3790
    %5107 = vmatprep.subr.bf16.mxu0 0
    %5108 = vmatpush1.bf16.msra.mxu0 %v3791
    %5109 = vmatprep.subr.bf16.mxu0 0
    %5110 = vmatpush1.bf16.msra.mxu0 %v3792
    %5111 = vmatprep.subr.bf16.mxu0 0
    %5112 = vmatpush1.bf16.msra.mxu0 %v3793
    %5113 = vmatprep.subr.bf16.mxu0 0
    %5114 = vmatpush1.bf16.msra.mxu0 %v3794
    %5115 = vmatprep.subr.bf16.mxu0 0
    %5116 = vmatpush1.bf16.msra.mxu0 %v3795
    %5117 = vmatprep.subr.bf16.mxu0 0
    %5118 = vmatpush1.bf16.msra.mxu0 %v3796
    %5119 = vmatprep.subr.bf16.mxu0 0
    %5120 = vmatpush1.bf16.msra.mxu0 %v3797
    %5121 = vmatprep.subr.bf16.mxu0 0
    %5122 = vmatpush1.bf16.msra.mxu0 %v3798
    %5123 = vmatprep.subr.bf16.mxu0 0
    %5124 = vmatpush1.bf16.msra.mxu0 %v3799
    %5125 = vmatprep.subr.bf16.mxu0 0
    %5126 = vmatpush1.bf16.msra.mxu0 %v3800
    %5127 = vmatprep.subr.bf16.mxu0 0
    %5128 = vmatpush1.bf16.msra.mxu0 %v3801
    %5129 = vmatprep.subr.bf16.mxu0 0
    %5130 = vmatpush1.bf16.msra.mxu0 %v3802
    %5131 = vmatprep.mubr.bf16.mxu0 %v477
    %5132 = vmatmul.mubr.bf16.gmra.mrb[0].mxu0 %v476
    %v5133 = vpop.f32.mrb[0].mxu0
    %v5134 = vadd.f32 %v5094, %v5133
    %v5135 = vpop.f32.mrb[0].mxu0
    %v5136 = vpop.f32.mrb[0].mxu0
    %v5137 = vpop.f32.mrb[0].mxu0
    %5138 = vdwg.mxu0
    %5139 = vmatprep.subr.bf16.mxu0 0
    %5140 = vmatpush1.bf16.msra.mxu0 %v3803
    %5141 = vmatprep.subr.bf16.mxu0 0
    %5142 = vmatpush1.bf16.msra.mxu0 %v3804
    %5143 = vmatprep.subr.bf16.mxu0 0
    %5144 = vmatpush1.bf16.msra.mxu0 %v3805
    %5145 = vmatprep.subr.bf16.mxu0 0
    %5146 = vmatpush1.bf16.msra.mxu0 %v3806
    %5147 = vmatprep.subr.bf16.mxu0 0
    %5148 = vmatpush1.bf16.msra.mxu0 %v3807
    %5149 = vmatprep.subr.bf16.mxu0 0
    %5150 = vmatpush1.bf16.msra.mxu0 %v3808
    %5151 = vmatprep.subr.bf16.mxu0 0
    %5152 = vmatpush1.bf16.msra.mxu0 %v3809
    %5153 = vmatprep.subr.bf16.mxu0 0
    %5154 = vmatpush1.bf16.msra.mxu0 %v3810
    %5155 = vmatprep.subr.bf16.mxu0 0
    %5156 = vmatpush1.bf16.msra.mxu0 %v3811
    %5157 = vmatprep.subr.bf16.mxu0 0
    %5158 = vmatpush1.bf16.msra.mxu0 %v3812
    %5159 = vmatprep.subr.bf16.mxu0 0
    %5160 = vmatpush1.bf16.msra.mxu0 %v3813
    %5161 = vmatprep.subr.bf16.mxu0 0
    %5162 = vmatpush1.bf16.msra.mxu0 %v3814
    %5163 = vmatprep.subr.bf16.mxu0 0
    %5164 = vmatpush1.bf16.msra.mxu0 %v3815
    %5165 = vmatprep.subr.bf16.mxu0 0
    %5166 = vmatpush1.bf16.msra.mxu0 %v3816
    %5167 = vmatprep.subr.bf16.mxu0 0
    %5168 = vmatpush1.bf16.msra.mxu0 %v3817
    %5169 = vmatprep.subr.bf16.mxu0 0
    %5170 = vmatpush1.bf16.msra.mxu0 %v3818
    %5171 = vmatprep.mubr.bf16.mxu0 %v479
    %5172 = vmatmul.mubr.bf16.gmra.mrb[0].mxu0 %v478
    %v5173 = vpop.f32.mrb[0].mxu0
    %v5174 = vadd.f32 %v5134, %v5173
    %v5175 = vpop.f32.mrb[0].mxu0
    %v5176 = vpop.f32.mrb[0].mxu0
    %v5177 = vpop.f32.mrb[0].mxu0
    %5178 = vdwg.mxu0
    %5179 = vmatprep.subr.bf16.mxu0 0
    %5180 = vmatpush1.bf16.msra.mxu0 %v3819
    %5181 = vmatprep.subr.bf16.mxu0 0
    %5182 = vmatpush1.bf16.msra.mxu0 %v3820
    %5183 = vmatprep.subr.bf16.mxu0 0
    %5184 = vmatpush1.bf16.msra.mxu0 %v3821
    %5185 = vmatprep.subr.bf16.mxu0 0
    %5186 = vmatpush1.bf16.msra.mxu0 %v3822
    %5187 = vmatprep.subr.bf16.mxu0 0
    %5188 = vmatpush1.bf16.msra.mxu0 %v3823
    %5189 = vmatprep.subr.bf16.mxu0 0
    %5190 = vmatpush1.bf16.msra.mxu0 %v3824
    %5191 = vmatprep.subr.bf16.mxu0 0
    %5192 = vmatpush1.bf16.msra.mxu0 %v3825
    %5193 = vmatprep.subr.bf16.mxu0 0
    %5194 = vmatpush1.bf16.msra.mxu0 %v3826
    %5195 = vmatprep.subr.bf16.mxu0 0
    %5196 = vmatpush1.bf16.msra.mxu0 %v3827
    %5197 = vmatprep.subr.bf16.mxu0 0
    %5198 = vmatpush1.bf16.msra.mxu0 %v3828
    %5199 = vmatprep.subr.bf16.mxu0 0
    %5200 = vmatpush1.bf16.msra.mxu0 %v3829
    %5201 = vmatprep.subr.bf16.mxu0 0
    %5202 = vmatpush1.bf16.msra.mxu0 %v3830
    %5203 = vmatprep.subr.bf16.mxu0 0
    %5204 = vmatpush1.bf16.msra.mxu0 %v3831
    %5205 = vmatprep.subr.bf16.mxu0 0
    %5206 = vmatpush1.bf16.msra.mxu0 %v3832
    %5207 = vmatprep.subr.bf16.mxu0 0
    %5208 = vmatpush1.bf16.msra.mxu0 %v3833
    %5209 = vmatprep.subr.bf16.mxu0 0
    %5210 = vmatpush1.bf16.msra.mxu0 %v3834
    %5211 = vmatprep.mubr.bf16.mxu0 %v481
    %5212 = vmatmul.mubr.bf16.gmra.mrb[0].mxu0 %v480
    %v5213 = vpop.f32.mrb[0].mxu0
    %v5214 = vadd.f32 %v5174, %v5213
    %v5215 = vpop.f32.mrb[0].mxu0
    %v5216 = vpop.f32.mrb[0].mxu0
    %v5217 = vpop.f32.mrb[0].mxu0
    %5218 = vdwg.mxu0
    %5219 = vmatprep.subr.bf16.mxu0 0
    %5220 = vmatpush1.bf16.msra.mxu0 %v3835
    %5221 = vmatprep.subr.bf16.mxu0 0
    %5222 = vmatpush1.bf16.msra.mxu0 %v3836
    %5223 = vmatprep.subr.bf16.mxu0 0
    %5224 = vmatpush1.bf16.msra.mxu0 %v3837
    %5225 = vmatprep.subr.bf16.mxu0 0
    %5226 = vmatpush1.bf16.msra.mxu0 %v3838
    %5227 = vmatprep.subr.bf16.mxu0 0
    %5228 = vmatpush1.bf16.msra.mxu0 %v3839
    %5229 = vmatprep.subr.bf16.mxu0 0
    %5230 = vmatpush1.bf16.msra.mxu0 %v3840
    %5231 = vmatprep.subr.bf16.mxu0 0
    %5232 = vmatpush1.bf16.msra.mxu0 %v3841
    %5233 = vmatprep.subr.bf16.mxu0 0
    %5234 = vmatpush1.bf16.msra.mxu0 %v3842
    %5235 = vmatprep.subr.bf16.mxu0 0
    %5236 = vmatpush1.bf16.msra.mxu0 %v3843
    %5237 = vmatprep.subr.bf16.mxu0 0
    %5238 = vmatpush1.bf16.msra.mxu0 %v3844
    %5239 = vmatprep.subr.bf16.mxu0 0
    %5240 = vmatpush1.bf16.msra.mxu0 %v3845
    %5241 = vmatprep.subr.bf16.mxu0 0
    %5242 = vmatpush1.bf16.msra.mxu0 %v3846
    %5243 = vmatprep.subr.bf16.mxu0 0
    %5244 = vmatpush1.bf16.msra.mxu0 %v3847
    %5245 = vmatprep.subr.bf16.mxu0 0
    %5246 = vmatpush1.bf16.msra.mxu0 %v3848
    %5247 = vmatprep.subr.bf16.mxu0 0
    %5248 = vmatpush1.bf16.msra.mxu0 %v3849
    %5249 = vmatprep.subr.bf16.mxu0 0
    %5250 = vmatpush1.bf16.msra.mxu0 %v3850
    %5251 = vmatprep.mubr.bf16.mxu0 %v483
    %5252 = vmatmul.mubr.bf16.gmra.mrb[0].mxu0 %v482
    %v5253 = vpop.f32.mrb[0].mxu0
    %v5254 = vadd.f32 %v5214, %v5253
    %v5255 = vpop.f32.mrb[0].mxu0
    %v5256 = vpop.f32.mrb[0].mxu0
    %v5257 = vpop.f32.mrb[0].mxu0
    %5258 = vdwg.mxu0
    %5259 = vmatprep.subr.bf16.mxu0 0
    %5260 = vmatpush1.bf16.msra.mxu0 %v3851
    %5261 = vmatprep.subr.bf16.mxu0 0
    %5262 = vmatpush1.bf16.msra.mxu0 %v3852
    %5263 = vmatprep.subr.bf16.mxu0 0
    %5264 = vmatpush1.bf16.msra.mxu0 %v3853
    %5265 = vmatprep.subr.bf16.mxu0 0
    %5266 = vmatpush1.bf16.msra.mxu0 %v3854
    %5267 = vmatprep.subr.bf16.mxu0 0
    %5268 = vmatpush1.bf16.msra.mxu0 %v3855
    %5269 = vmatprep.subr.bf16.mxu0 0
    %5270 = vmatpush1.bf16.msra.mxu0 %v3856
    %5271 = vmatprep.subr.bf16.mxu0 0
    %5272 = vmatpush1.bf16.msra.mxu0 %v3857
    %5273 = vmatprep.subr.bf16.mxu0 0
    %5274 = vmatpush1.bf16.msra.mxu0 %v3858
    %5275 = vmatprep.subr.bf16.mxu0 0
    %5276 = vmatpush1.bf16.msra.mxu0 %v3859
    %5277 = vmatprep.subr.bf16.mxu0 0
    %5278 = vmatpush1.bf16.msra.mxu0 %v3860
    %5279 = vmatprep.subr.bf16.mxu0 0
    %5280 = vmatpush1.bf16.msra.mxu0 %v3861
    %5281 = vmatprep.subr.bf16.mxu0 0
    %5282 = vmatpush1.bf16.msra.mxu0 %v3862
    %5283 = vmatprep.subr.bf16.mxu0 0
    %5284 = vmatpush1.bf16.msra.mxu0 %v3863
    %5285 = vmatprep.subr.bf16.mxu0 0
    %5286 = vmatpush1.bf16.msra.mxu0 %v3864
    %5287 = vmatprep.subr.bf16.mxu0 0
    %5288 = vmatpush1.bf16.msra.mxu0 %v3865
    %5289 = vmatprep.subr.bf16.mxu0 0
    %5290 = vmatpush1.bf16.msra.mxu0 %v3866
    %5291 = vmatprep.mubr.bf16.mxu0 %v485
    %5292 = vmatmul.mubr.bf16.gmra.mrb[0].mxu0 %v484
    %v5293 = vpop.f32.mrb[0].mxu0
    %v5294 = vadd.f32 %v5254, %v5293
    %v5295 = vpop.f32.mrb[0].mxu0
    %v5296 = vpop.f32.mrb[0].mxu0
    %v5297 = vpop.f32.mrb[0].mxu0
    %5298 = vdwg.mxu0
    %5299 = vmatprep.subr.bf16.mxu0 0
    %5300 = vmatpush1.bf16.msra.mxu0 %v3867
    %5301 = vmatprep.subr.bf16.mxu0 0
    %5302 = vmatpush1.bf16.msra.mxu0 %v3868
    %5303 = vmatprep.subr.bf16.mxu0 0
    %5304 = vmatpush1.bf16.msra.mxu0 %v3869
    %5305 = vmatprep.subr.bf16.mxu0 0
    %5306 = vmatpush1.bf16.msra.mxu0 %v3870
    %5307 = vmatprep.subr.bf16.mxu0 0
    %5308 = vmatpush1.bf16.msra.mxu0 %v3871
    %5309 = vmatprep.subr.bf16.mxu0 0
    %5310 = vmatpush1.bf16.msra.mxu0 %v3872
    %5311 = vmatprep.subr.bf16.mxu0 0
    %5312 = vmatpush1.bf16.msra.mxu0 %v3873
    %5313 = vmatprep.subr.bf16.mxu0 0
    %5314 = vmatpush1.bf16.msra.mxu0 %v3874
    %5315 = vmatprep.subr.bf16.mxu0 0
    %5316 = vmatpush1.bf16.msra.mxu0 %v3875
    %5317 = vmatprep.subr.bf16.mxu0 0
    %5318 = vmatpush1.bf16.msra.mxu0 %v3876
    %5319 = vmatprep.subr.bf16.mxu0 0
    %5320 = vmatpush1.bf16.msra.mxu0 %v3877
    %5321 = vmatprep.subr.bf16.mxu0 0
    %5322 = vmatpush1.bf16.msra.mxu0 %v3878
    %5323 = vmatprep.subr.bf16.mxu0 0
    %5324 = vmatpush1.bf16.msra.mxu0 %v3879
    %5325 = vmatprep.subr.bf16.mxu0 0
    %5326 = vmatpush1.bf16.msra.mxu0 %v3880
    %5327 = vmatprep.subr.bf16.mxu0 0
    %5328 = vmatpush1.bf16.msra.mxu0 %v3881
    %5329 = vmatprep.subr.bf16.mxu0 0
    %5330 = vmatpush1.bf16.msra.mxu0 %v3882
    %5331 = vmatprep.mubr.bf16.mxu0 %v487
    %5332 = vmatmul.mubr.bf16.gmra.mrb[0].mxu0 %v486
    %v5333 = vpop.f32.mrb[0].mxu0
    %v5334 = vadd.f32 %v5294, %v5333
    %v5335 = vpop.f32.mrb[0].mxu0
    %v5336 = vpop.f32.mrb[0].mxu0
    %v5337 = vpop.f32.mrb[0].mxu0
    %5338 = vdwg.mxu0
    %5339 = vmatprep.subr.bf16.mxu0 0
    %5340 = vmatpush1.bf16.msra.mxu0 %v3883
    %5341 = vmatprep.subr.bf16.mxu0 0
    %5342 = vmatpush1.bf16.msra.mxu0 %v3884
    %5343 = vmatprep.subr.bf16.mxu0 0
    %5344 = vmatpush1.bf16.msra.mxu0 %v3885
    %5345 = vmatprep.subr.bf16.mxu0 0
    %5346 = vmatpush1.bf16.msra.mxu0 %v3886
    %5347 = vmatprep.subr.bf16.mxu0 0
    %5348 = vmatpush1.bf16.msra.mxu0 %v3887
    %5349 = vmatprep.subr.bf16.mxu0 0
    %5350 = vmatpush1.bf16.msra.mxu0 %v3888
    %5351 = vmatprep.subr.bf16.mxu0 0
    %5352 = vmatpush1.bf16.msra.mxu0 %v3889
    %5353 = vmatprep.subr.bf16.mxu0 0
    %5354 = vmatpush1.bf16.msra.mxu0 %v3890
    %5355 = vmatprep.subr.bf16.mxu0 0
    %5356 = vmatpush1.bf16.msra.mxu0 %v3891
    %5357 = vmatprep.subr.bf16.mxu0 0
    %5358 = vmatpush1.bf16.msra.mxu0 %v3892
    %5359 = vmatprep.subr.bf16.mxu0 0
    %5360 = vmatpush1.bf16.msra.mxu0 %v3893
    %5361 = vmatprep.subr.bf16.mxu0 0
    %5362 = vmatpush1.bf16.msra.mxu0 %v3894
    %5363 = vmatprep.subr.bf16.mxu0 0
    %5364 = vmatpush1.bf16.msra.mxu0 %v3895
    %5365 = vmatprep.subr.bf16.mxu0 0
    %5366 = vmatpush1.bf16.msra.mxu0 %v3896
    %5367 = vmatprep.subr.bf16.mxu0 0
    %5368 = vmatpush1.bf16.msra.mxu0 %v3897
    %5369 = vmatprep.subr.bf16.mxu0 0
    %5370 = vmatpush1.bf16.msra.mxu0 %v3898
    %5371 = vmatprep.mubr.bf16.mxu0 %v489
    %5372 = vmatmul.mubr.bf16.gmra.mrb[0].mxu0 %v488
    %v5373 = vpop.f32.mrb[0].mxu0
    %v5374 = vadd.f32 %v5334, %v5373
    %v5375 = vpop.f32.mrb[0].mxu0
    %v5376 = vpop.f32.mrb[0].mxu0
    %v5377 = vpop.f32.mrb[0].mxu0
    %5378 = vdwg.mxu0
    %5379 = vmatprep.subr.bf16.mxu0 0
    %5380 = vmatpush1.bf16.msra.mxu0 %v3899
    %5381 = vmatprep.subr.bf16.mxu0 0
    %5382 = vmatpush1.bf16.msra.mxu0 %v3900
    %5383 = vmatprep.subr.bf16.mxu0 0
    %5384 = vmatpush1.bf16.msra.mxu0 %v3901
    %5385 = vmatprep.subr.bf16.mxu0 0
    %5386 = vmatpush1.bf16.msra.mxu0 %v3902
    %5387 = vmatprep.subr.bf16.mxu0 0
    %5388 = vmatpush1.bf16.msra.mxu0 %v3903
    %5389 = vmatprep.subr.bf16.mxu0 0
    %5390 = vmatpush1.bf16.msra.mxu0 %v3904
    %5391 = vmatprep.subr.bf16.mxu0 0
    %5392 = vmatpush1.bf16.msra.mxu0 %v3905
    %5393 = vmatprep.subr.bf16.mxu0 0
    %5394 = vmatpush1.bf16.msra.mxu0 %v3906
    %5395 = vmatprep.subr.bf16.mxu0 0
    %5396 = vmatpush1.bf16.msra.mxu0 %v3907
    %5397 = vmatprep.subr.bf16.mxu0 0
    %5398 = vmatpush1.bf16.msra.mxu0 %v3908
    %5399 = vmatprep.subr.bf16.mxu0 0
    %5400 = vmatpush1.bf16.msra.mxu0 %v3909
    %5401 = vmatprep.subr.bf16.mxu0 0
    %5402 = vmatpush1.bf16.msra.mxu0 %v3910
    %5403 = vmatprep.subr.bf16.mxu0 0
    %5404 = vmatpush1.bf16.msra.mxu0 %v3911
    %5405 = vmatprep.subr.bf16.mxu0 0
    %5406 = vmatpush1.bf16.msra.mxu0 %v3912
    %5407 = vmatprep.subr.bf16.mxu0 0
    %5408 = vmatpush1.bf16.msra.mxu0 %v3913
    %5409 = vmatprep.subr.bf16.mxu0 0
    %5410 = vmatpush1.bf16.msra.mxu0 %v3914
    %5411 = vmatprep.mubr.bf16.mxu0 %v491
    %5412 = vmatmul.mubr.bf16.gmra.mrb[0].mxu0 %v490
    %v5413 = vpop.f32.mrb[0].mxu0
    %v5414 = vadd.f32 %v5374, %v5413
    %v5415 = vpop.f32.mrb[0].mxu0
    %v5416 = vpop.f32.mrb[0].mxu0
    %v5417 = vpop.f32.mrb[0].mxu0
    %5418 = vdwg.mxu0
    %5419 = vmatprep.subr.bf16.mxu0 0
    %5420 = vmatpush1.bf16.msra.mxu0 %v3915
    %5421 = vmatprep.subr.bf16.mxu0 0
    %5422 = vmatpush1.bf16.msra.mxu0 %v3916
    %5423 = vmatprep.subr.bf16.mxu0 0
    %5424 = vmatpush1.bf16.msra.mxu0 %v3917
    %5425 = vmatprep.subr.bf16.mxu0 0
    %5426 = vmatpush1.bf16.msra.mxu0 %v3918
    %5427 = vmatprep.subr.bf16.mxu0 0
    %5428 = vmatpush1.bf16.msra.mxu0 %v3919
    %5429 = vmatprep.subr.bf16.mxu0 0
    %5430 = vmatpush1.bf16.msra.mxu0 %v3920
    %5431 = vmatprep.subr.bf16.mxu0 0
    %5432 = vmatpush1.bf16.msra.mxu0 %v3921
    %5433 = vmatprep.subr.bf16.mxu0 0
    %5434 = vmatpush1.bf16.msra.mxu0 %v3922
    %5435 = vmatprep.subr.bf16.mxu0 0
    %5436 = vmatpush1.bf16.msra.mxu0 %v3923
    %5437 = vmatprep.subr.bf16.mxu0 0
    %5438 = vmatpush1.bf16.msra.mxu0 %v3924
    %5439 = vmatprep.subr.bf16.mxu0 0
    %5440 = vmatpush1.bf16.msra.mxu0 %v3925
    %5441 = vmatprep.subr.bf16.mxu0 0
    %5442 = vmatpush1.bf16.msra.mxu0 %v3926
    %5443 = vmatprep.subr.bf16.mxu0 0
    %5444 = vmatpush1.bf16.msra.mxu0 %v3927
    %5445 = vmatprep.subr.bf16.mxu0 0
    %5446 = vmatpush1.bf16.msra.mxu0 %v3928
    %5447 = vmatprep.subr.bf16.mxu0 0
    %5448 = vmatpush1.bf16.msra.mxu0 %v3929
    %5449 = vmatprep.subr.bf16.mxu0 0
    %5450 = vmatpush1.bf16.msra.mxu0 %v3930
    %5451 = vmatprep.mubr.bf16.mxu0 %v493
    %5452 = vmatmul.mubr.bf16.gmra.mrb[0].mxu0 %v492
    %v5453 = vpop.f32.mrb[0].mxu0
    %v5454 = vadd.f32 %v5414, %v5453
    %v5455 = vpop.f32.mrb[0].mxu0
    %v5456 = vpop.f32.mrb[0].mxu0
    %v5457 = vpop.f32.mrb[0].mxu0
    %5458 = vdwg.mxu0
    %5459 = vmatprep.subr.bf16.mxu0 0
    %5460 = vmatpush1.bf16.msra.mxu0 %v3931
    %5461 = vmatprep.subr.bf16.mxu0 0
    %5462 = vmatpush1.bf16.msra.mxu0 %v3932
    %5463 = vmatprep.subr.bf16.mxu0 0
    %5464 = vmatpush1.bf16.msra.mxu0 %v3933
    %5465 = vmatprep.subr.bf16.mxu0 0
    %5466 = vmatpush1.bf16.msra.mxu0 %v3934
    %5467 = vmatprep.subr.bf16.mxu0 0
    %5468 = vmatpush1.bf16.msra.mxu0 %v3935
    %5469 = vmatprep.subr.bf16.mxu0 0
    %5470 = vmatpush1.bf16.msra.mxu0 %v3936
    %5471 = vmatprep.subr.bf16.mxu0 0
    %5472 = vmatpush1.bf16.msra.mxu0 %v3937
    %5473 = vmatprep.subr.bf16.mxu0 0
    %5474 = vmatpush1.bf16.msra.mxu0 %v3938
    %5475 = vmatprep.subr.bf16.mxu0 0
    %5476 = vmatpush1.bf16.msra.mxu0 %v3939
    %5477 = vmatprep.subr.bf16.mxu0 0
    %5478 = vmatpush1.bf16.msra.mxu0 %v3940
    %5479 = vmatprep.subr.bf16.mxu0 0
    %5480 = vmatpush1.bf16.msra.mxu0 %v3941
    %5481 = vmatprep.subr.bf16.mxu0 0
    %5482 = vmatpush1.bf16.msra.mxu0 %v3942
    %5483 = vmatprep.subr.bf16.mxu0 0
    %5484 = vmatpush1.bf16.msra.mxu0 %v3943
    %5485 = vmatprep.subr.bf16.mxu0 0
    %5486 = vmatpush1.bf16.msra.mxu0 %v3944
    %5487 = vmatprep.subr.bf16.mxu0 0
    %5488 = vmatpush1.bf16.msra.mxu0 %v3945
    %5489 = vmatprep.subr.bf16.mxu0 0
    %5490 = vmatpush1.bf16.msra.mxu0 %v3946
    %5491 = vmatprep.mubr.bf16.mxu0 %v495
    %5492 = vmatmul.mubr.bf16.gmra.mrb[0].mxu0 %v494
    %v5493 = vpop.f32.mrb[0].mxu0
    %v5494 = vadd.f32 %v5454, %v5493
    %v5495 = vpop.f32.mrb[0].mxu0
    %v5496 = vpop.f32.mrb[0].mxu0
    %v5497 = vpop.f32.mrb[0].mxu0
    %5498 = vdwg.mxu0
    %5499 = vmatprep.subr.bf16.mxu0 0
    %5500 = vmatpush1.bf16.msra.mxu0 %v3947
    %5501 = vmatprep.subr.bf16.mxu0 0
    %5502 = vmatpush1.bf16.msra.mxu0 %v3948
    %5503 = vmatprep.subr.bf16.mxu0 0
    %5504 = vmatpush1.bf16.msra.mxu0 %v3949
    %5505 = vmatprep.subr.bf16.mxu0 0
    %5506 = vmatpush1.bf16.msra.mxu0 %v3950
    %5507 = vmatprep.subr.bf16.mxu0 0
    %5508 = vmatpush1.bf16.msra.mxu0 %v3951
    %5509 = vmatprep.subr.bf16.mxu0 0
    %5510 = vmatpush1.bf16.msra.mxu0 %v3952
    %5511 = vmatprep.subr.bf16.mxu0 0
    %5512 = vmatpush1.bf16.msra.mxu0 %v3953
    %5513 = vmatprep.subr.bf16.mxu0 0
    %5514 = vmatpush1.bf16.msra.mxu0 %v3954
    %5515 = vmatprep.subr.bf16.mxu0 0
    %5516 = vmatpush1.bf16.msra.mxu0 %v3955
    %5517 = vmatprep.subr.bf16.mxu0 0
    %5518 = vmatpush1.bf16.msra.mxu0 %v3956
    %5519 = vmatprep.subr.bf16.mxu0 0
    %5520 = vmatpush1.bf16.msra.mxu0 %v3957
    %5521 = vmatprep.subr.bf16.mxu0 0
    %5522 = vmatpush1.bf16.msra.mxu0 %v3958
    %5523 = vmatprep.subr.bf16.mxu0 0
    %5524 = vmatpush1.bf16.msra.mxu0 %v3959
    %5525 = vmatprep.subr.bf16.mxu0 0
    %5526 = vmatpush1.bf16.msra.mxu0 %v3960
    %5527 = vmatprep.subr.bf16.mxu0 0
    %5528 = vmatpush1.bf16.msra.mxu0 %v3961
    %5529 = vmatprep.subr.bf16.mxu0 0
    %5530 = vmatpush1.bf16.msra.mxu0 %v3962
    %5531 = vmatprep.mubr.bf16.mxu0 %v497
    %5532 = vmatmul.mubr.bf16.gmra.mrb[0].mxu0 %v496
    %v5533 = vpop.f32.mrb[0].mxu0
    %v5534 = vadd.f32 %v5494, %v5533
    %v5535 = vpop.f32.mrb[0].mxu0
    %v5536 = vpop.f32.mrb[0].mxu0
    %v5537 = vpop.f32.mrb[0].mxu0
    %5538 = vdwg.mxu0
    %5539 = vmatprep.subr.bf16.mxu0 0
    %5540 = vmatpush1.bf16.msra.mxu0 %v3963
    %5541 = vmatprep.subr.bf16.mxu0 0
    %5542 = vmatpush1.bf16.msra.mxu0 %v3964
    %5543 = vmatprep.subr.bf16.mxu0 0
    %5544 = vmatpush1.bf16.msra.mxu0 %v3965
    %5545 = vmatprep.subr.bf16.mxu0 0
    %5546 = vmatpush1.bf16.msra.mxu0 %v3966
    %5547 = vmatprep.subr.bf16.mxu0 0
    %5548 = vmatpush1.bf16.msra.mxu0 %v3967
    %5549 = vmatprep.subr.bf16.mxu0 0
    %5550 = vmatpush1.bf16.msra.mxu0 %v3968
    %5551 = vmatprep.subr.bf16.mxu0 0
    %5552 = vmatpush1.bf16.msra.mxu0 %v3969
    %5553 = vmatprep.subr.bf16.mxu0 0
    %5554 = vmatpush1.bf16.msra.mxu0 %v3970
    %5555 = vmatprep.subr.bf16.mxu0 0
    %5556 = vmatpush1.bf16.msra.mxu0 %v3971
    %5557 = vmatprep.subr.bf16.mxu0 0
    %5558 = vmatpush1.bf16.msra.mxu0 %v3972
    %5559 = vmatprep.subr.bf16.mxu0 0
    %5560 = vmatpush1.bf16.msra.mxu0 %v3973
    %5561 = vmatprep.subr.bf16.mxu0 0
    %5562 = vmatpush1.bf16.msra.mxu0 %v3974
    %5563 = vmatprep.subr.bf16.mxu0 0
    %5564 = vmatpush1.bf16.msra.mxu0 %v3975
    %5565 = vmatprep.subr.bf16.mxu0 0
    %5566 = vmatpush1.bf16.msra.mxu0 %v3976
    %5567 = vmatprep.subr.bf16.mxu0 0
    %5568 = vmatpush1.bf16.msra.mxu0 %v3977
    %5569 = vmatprep.subr.bf16.mxu0 0
    %5570 = vmatpush1.bf16.msra.mxu0 %v3978
    %5571 = vmatprep.mubr.bf16.mxu0 %v499
    %5572 = vmatmul.mubr.bf16.gmra.mrb[0].mxu0 %v498
    %v5573 = vpop.f32.mrb[0].mxu0
    %v5574 = vadd.f32 %v5534, %v5573
    %v5575 = vpop.f32.mrb[0].mxu0
    %v5576 = vpop.f32.mrb[0].mxu0
    %v5577 = vpop.f32.mrb[0].mxu0
    %5578 = vdwg.mxu0
    %5579 = vmatprep.subr.bf16.mxu0 0
    %5580 = vmatpush1.bf16.msra.mxu0 %v3979
    %5581 = vmatprep.subr.bf16.mxu0 0
    %5582 = vmatpush1.bf16.msra.mxu0 %v3980
    %5583 = vmatprep.subr.bf16.mxu0 0
    %5584 = vmatpush1.bf16.msra.mxu0 %v3981
    %5585 = vmatprep.subr.bf16.mxu0 0
    %5586 = vmatpush1.bf16.msra.mxu0 %v3982
    %5587 = vmatprep.subr.bf16.mxu0 0
    %5588 = vmatpush1.bf16.msra.mxu0 %v3983
    %5589 = vmatprep.subr.bf16.mxu0 0
    %5590 = vmatpush1.bf16.msra.mxu0 %v3984
    %5591 = vmatprep.subr.bf16.mxu0 0
    %5592 = vmatpush1.bf16.msra.mxu0 %v3985
    %5593 = vmatprep.subr.bf16.mxu0 0
    %5594 = vmatpush1.bf16.msra.mxu0 %v3986
    %5595 = vmatprep.subr.bf16.mxu0 0
    %5596 = vmatpush1.bf16.msra.mxu0 %v3987
    %5597 = vmatprep.subr.bf16.mxu0 0
    %5598 = vmatpush1.bf16.msra.mxu0 %v3988
    %5599 = vmatprep.subr.bf16.mxu0 0
    %5600 = vmatpush1.bf16.msra.mxu0 %v3989
    %5601 = vmatprep.subr.bf16.mxu0 0
    %5602 = vmatpush1.bf16.msra.mxu0 %v3990
    %5603 = vmatprep.subr.bf16.mxu0 0
    %5604 = vmatpush1.bf16.msra.mxu0 %v3991
    %5605 = vmatprep.subr.bf16.mxu0 0
    %5606 = vmatpush1.bf16.msra.mxu0 %v3992
    %5607 = vmatprep.subr.bf16.mxu0 0
    %5608 = vmatpush1.bf16.msra.mxu0 %v3993
    %5609 = vmatprep.subr.bf16.mxu0 0
    %5610 = vmatpush1.bf16.msra.mxu0 %v3994
    %5611 = vmatprep.mubr.bf16.mxu0 %v501
    %5612 = vmatmul.mubr.bf16.gmra.mrb[0].mxu0 %v500
    %v5613 = vpop.f32.mrb[0].mxu0
    %v5614 = vadd.f32 %v5574, %v5613
    %v5615 = vpop.f32.mrb[0].mxu0
    %v5616 = vpop.f32.mrb[0].mxu0
    %v5617 = vpop.f32.mrb[0].mxu0
    %5618 = vdwg.mxu0
    %5619 = vmatprep.subr.bf16.mxu0 0
    %5620 = vmatpush1.bf16.msra.mxu0 %v3995
    %5621 = vmatprep.subr.bf16.mxu0 0
    %5622 = vmatpush1.bf16.msra.mxu0 %v3996
    %5623 = vmatprep.subr.bf16.mxu0 0
    %5624 = vmatpush1.bf16.msra.mxu0 %v3997
    %5625 = vmatprep.subr.bf16.mxu0 0
    %5626 = vmatpush1.bf16.msra.mxu0 %v3998
    %5627 = vmatprep.subr.bf16.mxu0 0
    %5628 = vmatpush1.bf16.msra.mxu0 %v3999
    %5629 = vmatprep.subr.bf16.mxu0 0
    %5630 = vmatpush1.bf16.msra.mxu0 %v4000
    %5631 = vmatprep.subr.bf16.mxu0 0
    %5632 = vmatpush1.bf16.msra.mxu0 %v4001
    %5633 = vmatprep.subr.bf16.mxu0 0
    %5634 = vmatpush1.bf16.msra.mxu0 %v4002
    %5635 = vmatprep.subr.bf16.mxu0 0
    %5636 = vmatpush1.bf16.msra.mxu0 %v4003
    %5637 = vmatprep.subr.bf16.mxu0 0
    %5638 = vmatpush1.bf16.msra.mxu0 %v4004
    %5639 = vmatprep.subr.bf16.mxu0 0
    %5640 = vmatpush1.bf16.msra.mxu0 %v4005
    %5641 = vmatprep.subr.bf16.mxu0 0
    %5642 = vmatpush1.bf16.msra.mxu0 %v4006
    %5643 = vmatprep.subr.bf16.mxu0 0
    %5644 = vmatpush1.bf16.msra.mxu0 %v4007
    %5645 = vmatprep.subr.bf16.mxu0 0
    %5646 = vmatpush1.bf16.msra.mxu0 %v4008
    %5647 = vmatprep.subr.bf16.mxu0 0
    %5648 = vmatpush1.bf16.msra.mxu0 %v4009
    %5649 = vmatprep.subr.bf16.mxu0 0
    %5650 = vmatpush1.bf16.msra.mxu0 %v4010
    %5651 = vmatprep.mubr.bf16.mxu0 %v503
    %5652 = vmatmul.mubr.bf16.gmra.mrb[0].mxu0 %v502
    %v5653 = vpop.f32.mrb[0].mxu0
    %v5654 = vadd.f32 %v5614, %v5653
    %v5655 = vpop.f32.mrb[0].mxu0
    %v5656 = vpop.f32.mrb[0].mxu0
    %v5657 = vpop.f32.mrb[0].mxu0
    %5658 = vdwg.mxu0
    %5659 = vmatprep.subr.bf16.mxu0 0
    %5660 = vmatpush1.bf16.msra.mxu0 %v4011
    %5661 = vmatprep.subr.bf16.mxu0 0
    %5662 = vmatpush1.bf16.msra.mxu0 %v4012
    %5663 = vmatprep.subr.bf16.mxu0 0
    %5664 = vmatpush1.bf16.msra.mxu0 %v4013
    %5665 = vmatprep.subr.bf16.mxu0 0
    %5666 = vmatpush1.bf16.msra.mxu0 %v4014
    %5667 = vmatprep.subr.bf16.mxu0 0
    %5668 = vmatpush1.bf16.msra.mxu0 %v4015
    %5669 = vmatprep.subr.bf16.mxu0 0
    %5670 = vmatpush1.bf16.msra.mxu0 %v4016
    %5671 = vmatprep.subr.bf16.mxu0 0
    %5672 = vmatpush1.bf16.msra.mxu0 %v4017
    %5673 = vmatprep.subr.bf16.mxu0 0
    %5674 = vmatpush1.bf16.msra.mxu0 %v4018
    %5675 = vmatprep.subr.bf16.mxu0 0
    %5676 = vmatpush1.bf16.msra.mxu0 %v4019
    %5677 = vmatprep.subr.bf16.mxu0 0
    %5678 = vmatpush1.bf16.msra.mxu0 %v4020
    %5679 = vmatprep.subr.bf16.mxu0 0
    %5680 = vmatpush1.bf16.msra.mxu0 %v4021
    %5681 = vmatprep.subr.bf16.mxu0 0
    %5682 = vmatpush1.bf16.msra.mxu0 %v4022
    %5683 = vmatprep.subr.bf16.mxu0 0
    %5684 = vmatpush1.bf16.msra.mxu0 %v4023
    %5685 = vmatprep.subr.bf16.mxu0 0
    %5686 = vmatpush1.bf16.msra.mxu0 %v4024
    %5687 = vmatprep.subr.bf16.mxu0 0
    %5688 = vmatpush1.bf16.msra.mxu0 %v4025
    %5689 = vmatprep.subr.bf16.mxu0 0
    %5690 = vmatpush1.bf16.msra.mxu0 %v4026
    %5691 = vmatprep.mubr.bf16.mxu0 %v505
    %5692 = vmatmul.mubr.bf16.gmra.mrb[0].mxu0 %v504
    %v5693 = vpop.f32.mrb[0].mxu0
    %v5694 = vadd.f32 %v5654, %v5693
    %v5695 = vpop.f32.mrb[0].mxu0
    %v5696 = vpop.f32.mrb[0].mxu0
    %v5697 = vpop.f32.mrb[0].mxu0
    %5698 = vdwg.mxu0
    %5699 = vmatprep.subr.bf16.mxu0 0
    %5700 = vmatpush1.bf16.msra.mxu0 %v4027
    %5701 = vmatprep.subr.bf16.mxu0 0
    %5702 = vmatpush1.bf16.msra.mxu0 %v4028
    %5703 = vmatprep.subr.bf16.mxu0 0
    %5704 = vmatpush1.bf16.msra.mxu0 %v4029
    %5705 = vmatprep.subr.bf16.mxu0 0
    %5706 = vmatpush1.bf16.msra.mxu0 %v4030
    %5707 = vmatprep.subr.bf16.mxu0 0
    %5708 = vmatpush1.bf16.msra.mxu0 %v4031
    %5709 = vmatprep.subr.bf16.mxu0 0
    %5710 = vmatpush1.bf16.msra.mxu0 %v4032
    %5711 = vmatprep.subr.bf16.mxu0 0
    %5712 = vmatpush1.bf16.msra.mxu0 %v4033
    %5713 = vmatprep.subr.bf16.mxu0 0
    %5714 = vmatpush1.bf16.msra.mxu0 %v4034
    %5715 = vmatprep.subr.bf16.mxu0 0
    %5716 = vmatpush1.bf16.msra.mxu0 %v4035
    %5717 = vmatprep.subr.bf16.mxu0 0
    %5718 = vmatpush1.bf16.msra.mxu0 %v4036
    %5719 = vmatprep.subr.bf16.mxu0 0
    %5720 = vmatpush1.bf16.msra.mxu0 %v4037
    %5721 = vmatprep.subr.bf16.mxu0 0
    %5722 = vmatpush1.bf16.msra.mxu0 %v4038
    %5723 = vmatprep.subr.bf16.mxu0 0
    %5724 = vmatpush1.bf16.msra.mxu0 %v4039
    %5725 = vmatprep.subr.bf16.mxu0 0
    %5726 = vmatpush1.bf16.msra.mxu0 %v4040
    %5727 = vmatprep.subr.bf16.mxu0 0
    %5728 = vmatpush1.bf16.msra.mxu0 %v4041
    %5729 = vmatprep.subr.bf16.mxu0 0
    %5730 = vmatpush1.bf16.msra.mxu0 %v4042
    %5731 = vmatprep.mubr.bf16.mxu0 %v507
    %5732 = vmatmul.mubr.bf16.gmra.mrb[0].mxu0 %v506
    %v5733 = vpop.f32.mrb[0].mxu0
    %v5734 = vadd.f32 %v5694, %v5733
    %v5735 = vpop.f32.mrb[0].mxu0
    %v5736 = vpop.f32.mrb[0].mxu0
    %v5737 = vpop.f32.mrb[0].mxu0
    %5738 = vdwg.mxu0
    %5739 = vmatprep.subr.bf16.mxu0 0
    %5740 = vmatpush1.bf16.msra.mxu0 %v4043
    %5741 = vmatprep.subr.bf16.mxu0 0
    %5742 = vmatpush1.bf16.msra.mxu0 %v4044
    %5743 = vmatprep.subr.bf16.mxu0 0
    %5744 = vmatpush1.bf16.msra.mxu0 %v4045
    %5745 = vmatprep.subr.bf16.mxu0 0
    %5746 = vmatpush1.bf16.msra.mxu0 %v4046
    %5747 = vmatprep.subr.bf16.mxu0 0
    %5748 = vmatpush1.bf16.msra.mxu0 %v4047
    %5749 = vmatprep.subr.bf16.mxu0 0
    %5750 = vmatpush1.bf16.msra.mxu0 %v4048
    %5751 = vmatprep.subr.bf16.mxu0 0
    %5752 = vmatpush1.bf16.msra.mxu0 %v4049
    %5753 = vmatprep.subr.bf16.mxu0 0
    %5754 = vmatpush1.bf16.msra.mxu0 %v4050
    %5755 = vmatprep.subr.bf16.mxu0 0
    %5756 = vmatpush1.bf16.msra.mxu0 %v4051
    %5757 = vmatprep.subr.bf16.mxu0 0
    %5758 = vmatpush1.bf16.msra.mxu0 %v4052
    %5759 = vmatprep.subr.bf16.mxu0 0
    %5760 = vmatpush1.bf16.msra.mxu0 %v4053
    %5761 = vmatprep.subr.bf16.mxu0 0
    %5762 = vmatpush1.bf16.msra.mxu0 %v4054
    %5763 = vmatprep.subr.bf16.mxu0 0
    %5764 = vmatpush1.bf16.msra.mxu0 %v4055
    %5765 = vmatprep.subr.bf16.mxu0 0
    %5766 = vmatpush1.bf16.msra.mxu0 %v4056
    %5767 = vmatprep.subr.bf16.mxu0 0
    %5768 = vmatpush1.bf16.msra.mxu0 %v4057
    %5769 = vmatprep.subr.bf16.mxu0 0
    %5770 = vmatpush1.bf16.msra.mxu0 %v4058
    %5771 = vmatprep.mubr.bf16.mxu0 %v509
    %5772 = vmatmul.mubr.bf16.gmra.mrb[0].mxu0 %v508
    %v5773 = vpop.f32.mrb[0].mxu0
    %v5774 = vadd.f32 %v5734, %v5773
    %v5775 = vpop.f32.mrb[0].mxu0
    %v5776 = vpop.f32.mrb[0].mxu0
    %v5777 = vpop.f32.mrb[0].mxu0
    %5778 = vdwg.mxu0
    %5779 = vmatprep.subr.bf16.mxu0 0
    %5780 = vmatpush1.bf16.msra.mxu0 %v4059
    %5781 = vmatprep.subr.bf16.mxu0 0
    %5782 = vmatpush1.bf16.msra.mxu0 %v4060
    %5783 = vmatprep.subr.bf16.mxu0 0
    %5784 = vmatpush1.bf16.msra.mxu0 %v4061
    %5785 = vmatprep.subr.bf16.mxu0 0
    %5786 = vmatpush1.bf16.msra.mxu0 %v4062
    %5787 = vmatprep.subr.bf16.mxu0 0
    %5788 = vmatpush1.bf16.msra.mxu0 %v4063
    %5789 = vmatprep.subr.bf16.mxu0 0
    %5790 = vmatpush1.bf16.msra.mxu0 %v4064
    %5791 = vmatprep.subr.bf16.mxu0 0
    %5792 = vmatpush1.bf16.msra.mxu0 %v4065
    %5793 = vmatprep.subr.bf16.mxu0 0
    %5794 = vmatpush1.bf16.msra.mxu0 %v4066
    %5795 = vmatprep.subr.bf16.mxu0 0
    %5796 = vmatpush1.bf16.msra.mxu0 %v4067
    %5797 = vmatprep.subr.bf16.mxu0 0
    %5798 = vmatpush1.bf16.msra.mxu0 %v4068
    %5799 = vmatprep.subr.bf16.mxu0 0
    %5800 = vmatpush1.bf16.msra.mxu0 %v4069
    %5801 = vmatprep.subr.bf16.mxu0 0
    %5802 = vmatpush1.bf16.msra.mxu0 %v4070
    %5803 = vmatprep.subr.bf16.mxu0 0
    %5804 = vmatpush1.bf16.msra.mxu0 %v4071
    %5805 = vmatprep.subr.bf16.mxu0 0
    %5806 = vmatpush1.bf16.msra.mxu0 %v4072
    %5807 = vmatprep.subr.bf16.mxu0 0
    %5808 = vmatpush1.bf16.msra.mxu0 %v4073
    %5809 = vmatprep.subr.bf16.mxu0 0
    %5810 = vmatpush1.bf16.msra.mxu0 %v4074
    %5811 = vmatprep.mubr.bf16.mxu0 %v511
    %5812 = vmatmul.mubr.bf16.gmra.mrb[0].mxu0 %v510
    %v5813 = vpop.f32.mrb[0].mxu0
    %v5814 = vadd.f32 %v5774, %v5813
    %v5815 = vpop.f32.mrb[0].mxu0
    %v5816 = vpop.f32.mrb[0].mxu0
    %v5817 = vpop.f32.mrb[0].mxu0
    %5818 = vdwg.mxu0
    %5819 = vmatprep.subr.bf16.mxu0 0
    %5820 = vmatpush1.bf16.msra.mxu0 %v4075
    %5821 = vmatprep.subr.bf16.mxu0 0
    %5822 = vmatpush1.bf16.msra.mxu0 %v4076
    %5823 = vmatprep.subr.bf16.mxu0 0
    %5824 = vmatpush1.bf16.msra.mxu0 %v4077
    %5825 = vmatprep.subr.bf16.mxu0 0
    %5826 = vmatpush1.bf16.msra.mxu0 %v4078
    %5827 = vmatprep.subr.bf16.mxu0 0
    %5828 = vmatpush1.bf16.msra.mxu0 %v4079
    %5829 = vmatprep.subr.bf16.mxu0 0
    %5830 = vmatpush1.bf16.msra.mxu0 %v4080
    %5831 = vmatprep.subr.bf16.mxu0 0
    %5832 = vmatpush1.bf16.msra.mxu0 %v4081
    %5833 = vmatprep.subr.bf16.mxu0 0
    %5834 = vmatpush1.bf16.msra.mxu0 %v4082
    %5835 = vmatprep.subr.bf16.mxu0 0
    %5836 = vmatpush1.bf16.msra.mxu0 %v4083
    %5837 = vmatprep.subr.bf16.mxu0 0
    %5838 = vmatpush1.bf16.msra.mxu0 %v4084
    %5839 = vmatprep.subr.bf16.mxu0 0
    %5840 = vmatpush1.bf16.msra.mxu0 %v4085
    %5841 = vmatprep.subr.bf16.mxu0 0
    %5842 = vmatpush1.bf16.msra.mxu0 %v4086
    %5843 = vmatprep.subr.bf16.mxu0 0
    %5844 = vmatpush1.bf16.msra.mxu0 %v4087
    %5845 = vmatprep.subr.bf16.mxu0 0
    %5846 = vmatpush1.bf16.msra.mxu0 %v4088
    %5847 = vmatprep.subr.bf16.mxu0 0
    %5848 = vmatpush1.bf16.msra.mxu0 %v4089
    %5849 = vmatprep.subr.bf16.mxu0 0
    %5850 = vmatpush1.bf16.msra.mxu0 %v4090
    %5851 = vmatprep.mubr.bf16.mxu0 %v513
    %5852 = vmatmul.mubr.bf16.gmra.mrb[0].mxu0 %v512
    %v5853 = vpop.f32.mrb[0].mxu0
    %v5854 = vadd.f32 %v5814, %v5853
    %v5855 = vpop.f32.mrb[0].mxu0
    %v5856 = vpop.f32.mrb[0].mxu0
    %v5857 = vpop.f32.mrb[0].mxu0
    %5858 = vdwg.mxu0
    %5859 = vmatprep.subr.bf16.mxu0 0
    %5860 = vmatpush1.bf16.msra.mxu0 %v4091
    %5861 = vmatprep.subr.bf16.mxu0 0
    %5862 = vmatpush1.bf16.msra.mxu0 %v4092
    %5863 = vmatprep.subr.bf16.mxu0 0
    %5864 = vmatpush1.bf16.msra.mxu0 %v4093
    %5865 = vmatprep.subr.bf16.mxu0 0
    %5866 = vmatpush1.bf16.msra.mxu0 %v4094
    %5867 = vmatprep.subr.bf16.mxu0 0
    %5868 = vmatpush1.bf16.msra.mxu0 %v4095
    %5869 = vmatprep.subr.bf16.mxu0 0
    %5870 = vmatpush1.bf16.msra.mxu0 %v4096
    %5871 = vmatprep.subr.bf16.mxu0 0
    %5872 = vmatpush1.bf16.msra.mxu0 %v4097
    %5873 = vmatprep.subr.bf16.mxu0 0
    %5874 = vmatpush1.bf16.msra.mxu0 %v4098
    %5875 = vmatprep.subr.bf16.mxu0 0
    %5876 = vmatpush1.bf16.msra.mxu0 %v4099
    %5877 = vmatprep.subr.bf16.mxu0 0
    %5878 = vmatpush1.bf16.msra.mxu0 %v4100
    %5879 = vmatprep.subr.bf16.mxu0 0
    %5880 = vmatpush1.bf16.msra.mxu0 %v4101
    %5881 = vmatprep.subr.bf16.mxu0 0
    %5882 = vmatpush1.bf16.msra.mxu0 %v4102
    %5883 = vmatprep.subr.bf16.mxu0 0
    %5884 = vmatpush1.bf16.msra.mxu0 %v4103
    %5885 = vmatprep.subr.bf16.mxu0 0
    %5886 = vmatpush1.bf16.msra.mxu0 %v4104
    %5887 = vmatprep.subr.bf16.mxu0 0
    %5888 = vmatpush1.bf16.msra.mxu0 %v4105
    %5889 = vmatprep.subr.bf16.mxu0 0
    %5890 = vmatpush1.bf16.msra.mxu0 %v4106
    %5891 = vmatprep.mubr.bf16.mxu0 %v515
    %5892 = vmatmul.mubr.bf16.gmra.mrb[0].mxu0 %v514
    %v5893 = vpop.f32.mrb[0].mxu0
    %v5894 = vadd.f32 %v5854, %v5893
    %v5895 = vpop.f32.mrb[0].mxu0
    %v5896 = vpop.f32.mrb[0].mxu0
    %v5897 = vpop.f32.mrb[0].mxu0
    %5898 = vdwg.mxu0
    %v5899 = vmax.f32 %v5894, 0.0
    %v5900 = vld [vmem:[#allocation8] sm:$0xff]
    %v5901 = vld [vmem:[#allocation8 + $0x8] sm:$0xff]
    %v5902 = vld [vmem:[#allocation8 + $0x10] sm:$0xff]
    %v5903 = vld [vmem:[#allocation8 + $0x18] sm:$0xff]
    %v5904 = vld [vmem:[#allocation8 + $0x20] sm:$0xff]
    %v5905 = vld [vmem:[#allocation8 + $0x28] sm:$0xff]
    %v5906 = vld [vmem:[#allocation8 + $0x30] sm:$0xff]
    %v5907 = vld [vmem:[#allocation8 + $0x38] sm:$0xff]
    %v5908 = vld [vmem:[#allocation8 + $0x40] sm:$0xff]
    %v5909 = vld [vmem:[#allocation8 + $0x48] sm:$0xff]
    %v5910 = vld [vmem:[#allocation8 + $0x50] sm:$0xff]
    %v5911 = vld [vmem:[#allocation8 + $0x58] sm:$0xff]
    %v5912 = vld [vmem:[#allocation8 + $0x60] sm:$0xff]
    %v5913 = vld [vmem:[#allocation8 + $0x68] sm:$0xff]
    %v5914 = vld [vmem:[#allocation8 + $0x70] sm:$0xff]
    %v5915 = vld [vmem:[#allocation8 + $0x78] sm:$0xff]
    %v5916 = vld [vmem:[#allocation10] sm:$0x1]
    %v5918 = vlaneseq
    %v5919 = vshrl.u32 %v5918, 7
    %v5920 = vsub.s32 0, %v5919
    %v5921 = vrot.slane %v5916, %v5920
    %5923 = vmatprep.subr.mxu0 0.0
    %5924 = vmatpush1.msra.mxu0 %v5900
    %5925 = vmatprep.subr.mxu0 0.0
    %5926 = vmatpush1.msra.mxu0 %v5901
    %5927 = vmatprep.subr.mxu0 0.0
    %5928 = vmatpush1.msra.mxu0 %v5902
    %5929 = vmatprep.subr.mxu0 0.0
    %5930 = vmatpush1.msra.mxu0 %v5903
    %5931 = vmatprep.subr.mxu0 0.0
    %5932 = vmatpush1.msra.mxu0 %v5904
    %5933 = vmatprep.subr.mxu0 0.0
    %5934 = vmatpush1.msra.mxu0 %v5905
    %5935 = vmatprep.subr.mxu0 0.0
    %5936 = vmatpush1.msra.mxu0 %v5906
    %5937 = vmatprep.subr.mxu0 0.0
    %5938 = vmatpush1.msra.mxu0 %v5907
    %5939 = vmatprep.subr.mxu0 0.0
    %5940 = vmatpush1.msra.mxu0 %v5908
    %5941 = vmatprep.subr.mxu0 0.0
    %5942 = vmatpush1.msra.mxu0 %v5909
    %5943 = vmatprep.subr.mxu0 0.0
    %5944 = vmatpush1.msra.mxu0 %v5910
    %5945 = vmatprep.subr.mxu0 0.0
    %5946 = vmatpush1.msra.mxu0 %v5911
    %5947 = vmatprep.subr.mxu0 0.0
    %5948 = vmatpush1.msra.mxu0 %v5912
    %5949 = vmatprep.subr.mxu0 0.0
    %5950 = vmatpush1.msra.mxu0 %v5913
    %5951 = vmatprep.subr.mxu0 0.0
    %5952 = vmatpush1.msra.mxu0 %v5914
    %5953 = vmatprep.subr.mxu0 0.0
    %5954 = vmatpush1.msra.mxu0 %v5915
    %5955 = vmatprep.subr.mxu0 0.0
    %5956 = vmatpush1.msra.mxu0 0.0
    %5957 = vmatprep.subr.mxu0 0.0
    %5958 = vmatpush1.msra.mxu0 0.0
    %5959 = vmatprep.subr.mxu0 0.0
    %5960 = vmatpush1.msra.mxu0 0.0
    %5961 = vmatprep.subr.mxu0 0.0
    %5962 = vmatpush1.msra.mxu0 0.0
    %5963 = vmatprep.subr.mxu0 0.0
    %5964 = vmatpush1.msra.mxu0 0.0
    %5965 = vmatprep.subr.mxu0 0.0
    %5966 = vmatpush1.msra.mxu0 0.0
    %5967 = vmatprep.subr.mxu0 0.0
    %5968 = vmatpush1.msra.mxu0 0.0
    %5969 = vmatprep.subr.mxu0 0.0
    %5970 = vmatpush1.msra.mxu0 0.0
    %5971 = vmatprep.subr.mxu0 0.0
    %5972 = vmatpush1.msra.mxu0 0.0
    %5973 = vmatprep.subr.mxu0 0.0
    %5974 = vmatpush1.msra.mxu0 0.0
    %5975 = vmatprep.subr.mxu0 0.0
    %5976 = vmatpush1.msra.mxu0 0.0
    %5977 = vmatprep.subr.mxu0 0.0
    %5978 = vmatpush1.msra.mxu0 0.0
    %5979 = vmatprep.subr.mxu0 0.0
    %5980 = vmatpush1.msra.mxu0 0.0
    %5981 = vmatprep.subr.mxu0 0.0
    %5982 = vmatpush1.msra.mxu0 0.0
    %5983 = vmatprep.subr.mxu0 0.0
    %5984 = vmatpush1.msra.mxu0 0.0
    %5985 = vmatprep.subr.mxu0 0.0
    %5986 = vmatpush1.msra.mxu0 0.0
    %5987 = vmatprep.mubr.f32.mxu0 0.0
    %5988 = vmatmul.mubr.f32.gmra.mrb[0].mxu0 %v5899
    %v5989 = vpop.f32.mrb[0].mxu0
    %v5990 = vadd.f32 %v5921, %v5989
    %v5991 = vpop.f32.mrb[0].mxu0
    %5992 = vdwg.mxu0
    %v5993 = vlaneseq
    %v5994 = vand.u32 %v5993, 127
    %vm5995 = vcmp.ge.s32.totalorder %v5994, 14
    %vm5996 = vcmp.lt.s32.totalorder %v5994, 18
    %vm5997 = vmand %vm5995, %vm5996
    %v5998 = vmul.f32 %v5990, 1.442695
    %v5999 = vpow.pop %v5998
    %v6000 = vsel %vm5997, %v5999, %v5990
    %6001 = vst [vmem:[#allocation11] sm:$0x3] %v6000
    // Predicated region
    $region42: #{tpu_custom_call.1} parent=1 // pred_check
      _
    $region43: #{tpu_custom_call.1} parent=1 // pred_check_branch
      %6003 = sbr.rel (0) target = $region45
    $region44: #{tpu_custom_call.1} parent=1 // pred_region
      %s6005 = ssub.s32 32, 32
      %6006 = vsyncadd [#allocation4], %s6005
      %s6008 = sshll.u32 [#allocation11], 4
      %s6009 = int_to_ptr.vmem [resolvable:$true] %s6008
      %6011 = dma.vmem_to_hbm [thread:$0]  %s6009, 32, %s5, [#allocation4]
    $region45: #{tpu_custom_call.1} parent=1 // pred_fallthru
      _
    // Predicated region
    $region46: #{tpu_custom_call.1} parent=1 // pred_check
      _
    $region47: #{tpu_custom_call.1} parent=1 // pred_check_branch
      %6013 = sbr.rel (0) target = $region49
    $region48: #{tpu_custom_call.1} parent=1 // pred_region
      %6014 = dma.done [#allocation4], 32
    $region49: #{tpu_custom_call.1} parent=1 // pred_fallthru
      _
    %6015 = vsyncpa [#allocation3], 1
    %6016 = vsyncpa [#allocation6], 1
    %6017 = vsyncpa [#allocation9], 1
    %6018 = vsyncpa [#allocation4], 1

</llo_original>
